<compile_context>
chip_gen: v7x
topology: tpu7x:2x2x1
jax: 0.10.0
libtpu: 0.0.40
codegen_flags: <defaults>
</compile_context>

<pallas_src>
import functools

import numpy as np
import jax
import jax.numpy as jnp
from jax.experimental import pallas as pl
from jax.experimental.pallas import tpu as pltpu

_BN_EPS = 1e-5


def _round_up(x, m):
    return (x + m - 1) // m * m


def _vmem_limit_bytes():
    """Per-generation scoped-VMEM limit (v7x: 64 MiB/TC, v5e/v6e: 128 MiB)."""
    try:
        cap = int(pltpu.get_tpu_info().vmem_capacity_bytes)
    except Exception:
        cap = 64 * 1024 * 1024
    return max(32 * 1024 * 1024, min(cap * 3 // 4, 96 * 1024 * 1024))


# ---------------------------------------------------------------- kernel 1a (preferred)
# Full-K matmul: W is VMEM-resident (constant block), one MXU pass per M tile, fused
# per-M-tile BatchNorm partial statistics written to a distinct stats row per tile.
def _make_fullk_kernel(m_valid, tm):
    need_mask = (m_valid % tm) != 0

    def kernel(x_ref, w_ref, y_ref, stats_ref):
        y = jnp.dot(x_ref[...], w_ref[...], preferred_element_type=jnp.float32)
        y_ref[...] = y.astype(y_ref.dtype)
        if need_mask:  # mask padded rows out of the BN statistics
            row = pl.program_id(0) * tm + jax.lax.broadcasted_iota(jnp.int32, y.shape, 0)
            y = jnp.where(row < m_valid, y, 0.0)
        stats_ref[0, 0:1, :] = jnp.sum(y, axis=0, keepdims=True)
        stats_ref[0, 1:2, :] = jnp.sum(y * y, axis=0, keepdims=True)

    return kernel


# ---------------------------------------------------------------- kernel 1b (fallback)
# Chunked-K matmul (only when the full-K working set would not fit VMEM, e.g. huge Cin).
def _make_chunked_kernel(m_valid, tm):
    need_mask = (m_valid % tm) != 0

    def kernel(x_ref, w_ref, y_ref, stats_ref, acc_ref):
        k_i = pl.program_id(2)
        part = jnp.dot(x_ref[...], w_ref[...], preferred_element_type=jnp.float32)

        @pl.when(k_i == 0)
        def _():
            acc_ref[...] = part

        @pl.when(k_i > 0)
        def _():
            acc_ref[...] += part

        @pl.when(k_i == pl.num_programs(2) - 1)
        def _():
            y = acc_ref[...]
            y_ref[...] = y.astype(y_ref.dtype)
            if need_mask:
                row = pl.program_id(1) * tm + jax.lax.broadcasted_iota(jnp.int32, y.shape, 0)
                y = jnp.where(row < m_valid, y, 0.0)
            stats_ref[0, 0:1, :] = jnp.sum(y, axis=0, keepdims=True)
            stats_ref[0, 1:2, :] = jnp.sum(y * y, axis=0, keepdims=True)

    return kernel


# ---------------------------------------------------------------- kernel 2
# Elementwise BN apply (precomputed scale/shift) + ReLU on lane-dense (tm2, Cout_p) tiles.
def _bn_relu_kernel(y_ref, scale_ref, shift_ref, o_ref):
    y = y_ref[...].astype(jnp.float32)
    o = y * scale_ref[...] + shift_ref[...]
    o_ref[...] = jnp.maximum(o, 0.0).astype(o_ref.dtype)


# ---------------------------------------------------------------- glue
def _im2col_bf16(x_nhwc, kh, kw, dilation, padding):
    """Build im2col patches directly in bf16 (MXU-native, half the f32 HBM footprint)."""
    x_bf = x_nhwc.astype(jnp.bfloat16)
    n, h, w, c = x_bf.shape
    xp = jnp.pad(x_bf, ((0, 0), (padding, padding), (padding, padding), (0, 0)))
    hp, wp = h + 2 * padding, w + 2 * padding
    oh = hp - dilation * (kh - 1)
    ow = wp - dilation * (kw - 1)
    cols = [xp[:, i * dilation:i * dilation + oh, j * dilation:j * dilation + ow, :]
            for i in range(kh) for j in range(kw)]
    patches = jnp.concatenate(cols, axis=-1) if len(cols) > 1 else cols[0]
    return patches.reshape(n * oh * ow, kh * kw * c), (n, oh, ow)


def conv_bn_relu(x_nhwc, w, gamma, beta, *, dilation, padding):
    """x: [N,H,W,Cin] NHWC.  w: [KH,KW,Cin,Cout].  Train-mode BN + ReLU fused in."""
    kh, kw, cin, cout = w.shape
    assert x_nhwc.shape[-1] == cin

    cin_p = _round_up(cin, 128)
    cout_p = _round_up(cout, 128)
    if cin_p != cin:
        x_nhwc = jnp.pad(x_nhwc, ((0, 0), (0, 0), (0, 0), (0, cin_p - cin)))
        w = jnp.pad(w, ((0, 0), (0, 0), (0, cin_p - cin), (0, 0)))
    if cout_p != cout:
        w = jnp.pad(w, ((0, 0), (0, 0), (0, 0), (0, cout_p - cout)))
        gamma = jnp.pad(gamma, (0, cout_p - cout))
        beta = jnp.pad(beta, (0, cout_p - cout))

    patches, (n, oh, ow) = _im2col_bf16(x_nhwc, kh, kw, dilation, padding)
    m, k = patches.shape
    w_bf = w.reshape(k, cout_p).astype(jnp.bfloat16)

    vmem_limit = _vmem_limit_bytes()
    budget = int(vmem_limit * 0.6)          # headroom for compiler-internal scratch
    pad_cap = max(256, m // 16)             # never pad M by more than ~6% / one 256 chunk

    def pad_ok(tm):
        return tm <= 256 or (_round_up(m, tm) - m) <= pad_cap

    def fits_fullk(tm):
        use = (tm * k * 2 * 2            # bf16 x tile, double buffered
               + k * cout_p * 2 * 2      # bf16 weights (constant block)
               + tm * cout_p * 2 * 2     # bf16 y tile, double buffered
               + tm * cout_p * 4         # f32 matmul result
               + 2 * cout_p * 4 * 2)     # stats tile
        return use <= budget

    tm_fullk = next((t for t in (1024, 512, 256, 128) if pad_ok(t) and fits_fullk(t)), None)

    if tm_fullk is not None:
        # Preferred path: K collapsed, W VMEM-resident, grid parallel over M only.
        tm = tm_fullk
        m_pad = _round_up(m, tm)
        if m_pad != m:
            patches = jnp.pad(patches, ((0, m_pad - m), (0, 0)))
        n_m = m_pad // tm
        y, stats = pl.pallas_call(
            _make_fullk_kernel(m, tm),
            out_shape=(jax.ShapeDtypeStruct((m_pad, cout_p), jnp.bfloat16),
                       jax.ShapeDtypeStruct((n_m, 2, cout_p), jnp.float32)),
            grid_spec=pltpu.PrefetchScalarGridSpec(
                num_scalar_prefetch=0,
                grid=(n_m,),
                in_specs=[pl.BlockSpec((tm, k), lambda mi: (mi, 0)),
                          pl.BlockSpec((k, cout_p), lambda mi: (0, 0))],
                out_specs=[pl.BlockSpec((tm, cout_p), lambda mi: (mi, 0)),
                           pl.BlockSpec((1, 2, cout_p), lambda mi: (mi, 0, 0))]),
            compiler_params=pltpu.CompilerParams(
                dimension_semantics=("parallel",),
                vmem_limit_bytes=vmem_limit),
        )(patches, w_bf)
    else:
        # Fallback for very large Cin: chunk K by whole taps (tk = Cin_p always divides K).
        tn = 256 if cout_p % 256 == 0 else 128
        tk = cin_p
        tm = 128
        for cand in (512, 256, 128):
            use = cand * tk * 2 * 2 + tk * tn * 2 * 2 + cand * tn * 2 * 2 + cand * tn * 4
            if pad_ok(cand) and use <= budget:
                tm = cand
                break
        m_pad = _round_up(m, tm)
        if m_pad != m:
            patches = jnp.pad(patches, ((0, m_pad - m), (0, 0)))
        n_m = m_pad // tm
        y, stats = pl.pallas_call(
            _make_chunked_kernel(m, tm),
            out_shape=(jax.ShapeDtypeStruct((m_pad, cout_p), jnp.bfloat16),
                       jax.ShapeDtypeStruct((n_m, 2, cout_p), jnp.float32)),
            grid_spec=pltpu.PrefetchScalarGridSpec(
                num_scalar_prefetch=0,
                grid=(cout_p // tn, n_m, k // tk),
                in_specs=[pl.BlockSpec((tm, tk), lambda ni, mi, ki: (mi, ki)),
                          pl.BlockSpec((tk, tn), lambda ni, mi, ki: (ki, ni))],
                out_specs=[pl.BlockSpec((tm, tn), lambda ni, mi, ki: (mi, ni)),
                           pl.BlockSpec((1, 2, tn), lambda ni, mi, ki: (mi, 0, ni))],
                scratch_shapes=[pltpu.VMEM((tm, tn), jnp.float32)]),
            compiler_params=pltpu.CompilerParams(
                dimension_semantics=("parallel", "parallel", "arbitrary"),
                vmem_limit_bytes=vmem_limit),
        )(patches, w_bf)

    # Finalize BN statistics (tiny [n_m, 2, Cout_p] reduction in plain JAX, f32).
    sums = jnp.sum(stats, axis=0)                              # (2, Cout_p)
    mean = sums[0] / m
    var = jnp.maximum(sums[1] / m - mean * mean, 0.0)          # biased var (PyTorch train fwd)
    scale = gamma * jax.lax.rsqrt(var + _BN_EPS)
    shift = beta - mean * scale

    # BN apply + ReLU: purely HBM-bound -> largest lane-dense row tile that divides m_pad.
    tm2 = tm
    for c in (8, 4, 2):
        cand = tm * c
        if cand <= 2048 and m_pad % cand == 0 and cand * cout_p * 12 <= budget:
            tm2 = cand
            break

    out = pl.pallas_call(
        _bn_relu_kernel,
        out_shape=jax.ShapeDtypeStruct((m_pad, cout_p), jnp.float32),
        grid_spec=pltpu.PrefetchScalarGridSpec(
            num_scalar_prefetch=0,
            grid=(m_pad // tm2,),
            in_specs=[pl.BlockSpec((tm2, cout_p), lambda mi: (mi, 0)),
                      pl.BlockSpec((1, cout_p), lambda mi: (0, 0)),
                      pl.BlockSpec((1, cout_p), lambda mi: (0, 0))],
            out_specs=pl.BlockSpec((tm2, cout_p), lambda mi: (mi, 0))),
        compiler_params=pltpu.CompilerParams(
            dimension_semantics=("parallel",),
            vmem_limit_bytes=vmem_limit),
    )(y, scale.reshape(1, cout_p).astype(jnp.float32),
      shift.reshape(1, cout_p).astype(jnp.float32))

    return out[:m, :cout].reshape(n, oh, ow, cout)


# ---------------------------------------------------------------- ASPP module
def init_aspp_params(key, inplanes, planes, rate):
    kh = kw = (1 if rate == 1 else 3)
    fan_in = kh * kw * inplanes
    w = jax.random.normal(key, (kh, kw, inplanes, planes), jnp.float32) * np.sqrt(2.0 / fan_in)
    return dict(w=w,
                gamma=jnp.ones((planes,), jnp.float32),
                beta=jnp.zeros((planes,), jnp.float32))


def aspp_forward(params, x_nchw, *, rate):
    """Matches ASPP_module.forward in PyTorch train() mode (BN uses batch statistics)."""
    x = jnp.transpose(x_nchw, (0, 2, 3, 1)).astype(jnp.float32)     # NCHW -> NHWC
    padding = 0 if rate == 1 else rate
    out = conv_bn_relu(x, params['w'], params['gamma'], params['beta'],
                       dilation=rate, padding=padding)
    # TODO(synk): keep NHWC downstream if the surrounding model allows; this transpose only
    #             exists to match the PyTorch module's NCHW layout.
    return jnp.transpose(out, (0, 3, 1, 2))


# ---------------------------------------------------------------- reference (plain JAX)
def _reference_forward(params, x_nchw, rate):
    x = jnp.transpose(x_nchw, (0, 2, 3, 1))
    padding = 0 if rate == 1 else rate
    y = jax.lax.conv_general_dilated(
        x, params['w'], window_strides=(1, 1),
        padding=((padding, padding), (padding, padding)),
        rhs_dilation=(rate, rate),
        dimension_numbers=('NHWC', 'HWIO', 'NHWC'),
        precision=jax.lax.Precision.HIGHEST)
    mean = jnp.mean(y, axis=(0, 1, 2))
    var = jnp.mean(jnp.square(y - mean), axis=(0, 1, 2))
    yn = (y - mean) * jax.lax.rsqrt(var + _BN_EPS) * params['gamma'] + params['beta']
    return jnp.transpose(jnp.maximum(yn, 0.0), (0, 3, 1, 2))


# ---------------------------------------------------------------- main
if __name__ == "__main__":
    key = jax.random.PRNGKey(0)

    # Two ASPP configurations: the dilated 3x3 branch (rate>1) and the 1x1 branch (rate=1).
    # The second config also exercises Cin/Cout padding, multiple M tiles and row masking.
    configs = [
        dict(inplanes=128, planes=128, rate=6, n=2, h=16, w=16),
        dict(inplanes=96,  planes=160, rate=1, n=4, h=13, w=13),
    ]

    for i, cfg in enumerate(configs):
        key, pkey, xkey = jax.random.split(key, 3)
        params = init_aspp_params(pkey, cfg['inplanes'], cfg['planes'], cfg['rate'])
        x = jax.random.normal(xkey, (cfg['n'], cfg['inplanes'], cfg['h'], cfg['w']),
                              jnp.float32)                        # NCHW like PyTorch

        fwd = jax.jit(functools.partial(aspp_forward, rate=cfg['rate']))
        out = fwd(params, x)
        jax.block_until_ready(out)

        assert out.shape == (cfg['n'], cfg['planes'], cfg['h'], cfg['w']), out.shape
        assert bool(jnp.all(jnp.isfinite(out)))

        # Numerical check vs plain-JAX f32 reference (bf16 operands/intermediate -> loose tol).
        ref = _reference_forward(params, x, cfg['rate'])
        max_err = float(jnp.max(jnp.abs(out - ref)))
        assert max_err < 5e-2, (i, max_err)

    print("KERNEL_OK")
</pallas_src>

<mosaic_0001>
module attributes {stable_mosaic.version = 11 : i64} {
  func.func @kernel(%arg0: i32, %arg1: memref<512x1152xbf16, #tpu.memory_space<vmem>>, %arg2: memref<1152x128xbf16, #tpu.memory_space<vmem>>, %arg3: memref<512x128xbf16, #tpu.memory_space<vmem>>, %arg4: memref<1x2x128xf32, #tpu.memory_space<vmem>>) attributes {dimension_semantics = [#tpu.dimension_semantics<parallel>], iteration_bounds = array<i64: 1>, scalar_prefetch = 0 : i64, scratch_operands = 0 : i64, tpu.core_type = #tpu.core_type<tc>, window_params = [{transform_indices = @transform_0, window_bounds = array<i64: 512, 1152>}, {pipeline_mode = #tpu.pipeline_mode<synchronous>, transform_indices = @transform_1, window_bounds = array<i64: 1152, 128>}, {transform_indices = @transform_2, window_bounds = array<i64: 512, 128>}, {transform_indices = @transform_3, window_bounds = array<i64: 1, 2, 128>}]} {
    %c0 = arith.constant 0 : index
    %c0_0 = arith.constant 0 : index
    %0 = vector.load %arg1[%c0, %c0_0] : memref<512x1152xbf16, #tpu.memory_space<vmem>>, vector<512x1152xbf16>
    %c0_1 = arith.constant 0 : index
    %c0_2 = arith.constant 0 : index
    %1 = vector.load %arg2[%c0_1, %c0_2] : memref<1152x128xbf16, #tpu.memory_space<vmem>>, vector<1152x128xbf16>
    %cst = arith.constant dense<0.000000e+00> : vector<512x128xf32>
    %2 = tpu.matmul %0, %1, %cst {dimension_numbers = #tpu.dot_dimension_numbers<[1], [0], [0], [1], [0, 0, 1, 1], [], []>} : vector<512x1152xbf16>, vector<1152x128xbf16>, vector<512x128xf32> -> vector<512x128xf32>
    %3 = arith.truncf %2 : vector<512x128xf32> to vector<512x128xbf16>
    %c0_3 = arith.constant 0 : index
    %c0_4 = arith.constant 0 : index
    %4 = vector.load %arg3[%c0_3, %c0_4] : memref<512x128xbf16, #tpu.memory_space<vmem>>, vector<512x128xbf16>
    tpu.vector_store %arg3[%c0_3, %c0_4], %3 {strides = array<i32>} : memref<512x128xbf16, #tpu.memory_space<vmem>>, vector<512x128xbf16>,
    %cst_5 = arith.constant dense<0.000000e+00> : vector<128xf32>
    %5 = vector.multi_reduction <add>, %2, %cst_5 [0] : vector<512x128xf32> to vector<128xf32>
    %6 = vector.shape_cast %5 : vector<128xf32> to vector<1x128xf32>
    %c0_6 = arith.constant 0 : index
    %c0_7 = arith.constant 0 : index
    %c0_8 = arith.constant 0 : index
    %7 = vector.load %arg4[%c0_6, %c0_7, %c0_8] : memref<1x2x128xf32, #tpu.memory_space<vmem>>, vector<1x1x128xf32>
    %8 = vector.shape_cast %7 : vector<1x1x128xf32> to vector<1x128xf32>
    %9 = vector.shape_cast %6 : vector<1x128xf32> to vector<1x1x128xf32>
    tpu.vector_store %arg4[%c0_6, %c0_7, %c0_8], %9 {strides = array<i32>} : memref<1x2x128xf32, #tpu.memory_space<vmem>>, vector<1x1x128xf32>,
    %10 = arith.mulf %2, %2 : vector<512x128xf32>
    %cst_9 = arith.constant dense<0.000000e+00> : vector<128xf32>
    %11 = vector.multi_reduction <add>, %10, %cst_9 [0] : vector<512x128xf32> to vector<128xf32>
    %12 = vector.shape_cast %11 : vector<128xf32> to vector<1x128xf32>
    %c0_10 = arith.constant 0 : index
    %c1 = arith.constant 1 : index
    %c0_11 = arith.constant 0 : index
    %13 = vector.load %arg4[%c0_10, %c1, %c0_11] : memref<1x2x128xf32, #tpu.memory_space<vmem>>, vector<1x1x128xf32>
    %14 = vector.shape_cast %13 : vector<1x1x128xf32> to vector<1x128xf32>
    %15 = vector.shape_cast %12 : vector<1x128xf32> to vector<1x1x128xf32>
    tpu.vector_store %arg4[%c0_10, %c1, %c0_11], %15 {strides = array<i32>} : memref<1x2x128xf32, #tpu.memory_space<vmem>>, vector<1x1x128xf32>,
    return
  }
  func.func @transform_0(%arg0: i32) -> (i32, i32) {
    %c0_i32 = arith.constant 0 : i32
    %c0_i32_0 = arith.constant 0 : i32
    return %arg0, %c0_i32 : i32, i32
  }
  func.func @transform_1(%arg0: i32) -> (i32, i32) {
    %c0_i32 = arith.constant 0 : i32
    %c0_i32_0 = arith.constant 0 : i32
    %c0_i32_1 = arith.constant 0 : i32
    return %c0_i32, %c0_i32_0 : i32, i32
  }
  func.func @transform_2(%arg0: i32) -> (i32, i32) {
    %c0_i32 = arith.constant 0 : i32
    %c0_i32_0 = arith.constant 0 : i32
    return %arg0, %c0_i32 : i32, i32
  }
  func.func @transform_3(%arg0: i32) -> (i32, i32, i32) {
    %c0_i32 = arith.constant 0 : i32
    %c0_i32_0 = arith.constant 0 : i32
    %c0_i32_1 = arith.constant 0 : i32
    return %arg0, %c0_i32, %c0_i32_0 : i32, i32, i32
  }
}

module attributes {stable_mosaic.version = 11 : i64} {
  func.func @_bn_relu_kernel(%arg0: i32, %arg1: memref<512x128xbf16, #tpu.memory_space<vmem>>, %arg2: memref<1x128xf32, #tpu.memory_space<vmem>>, %arg3: memref<1x128xf32, #tpu.memory_space<vmem>>, %arg4: memref<512x128xf32, #tpu.memory_space<vmem>>) attributes {dimension_semantics = [#tpu.dimension_semantics<parallel>], iteration_bounds = array<i64: 1>, scalar_prefetch = 0 : i64, scratch_operands = 0 : i64, tpu.core_type = #tpu.core_type<tc>, window_params = [{transform_indices = @transform_0, window_bounds = array<i64: 512, 128>}, {pipeline_mode = #tpu.pipeline_mode<synchronous>, transform_indices = @transform_1, window_bounds = array<i64: 1, 128>}, {pipeline_mode = #tpu.pipeline_mode<synchronous>, transform_indices = @transform_2, window_bounds = array<i64: 1, 128>}, {transform_indices = @transform_3, window_bounds = array<i64: 512, 128>}]} {
    %c0 = arith.constant 0 : index
    %c0_0 = arith.constant 0 : index
    %0 = vector.load %arg1[%c0, %c0_0] : memref<512x128xbf16, #tpu.memory_space<vmem>>, vector<512x128xbf16>
    %1 = arith.extf %0 : vector<512x128xbf16> to vector<512x128xf32>
    %c0_1 = arith.constant 0 : index
    %c0_2 = arith.constant 0 : index
    %2 = vector.load %arg2[%c0_1, %c0_2] : memref<1x128xf32, #tpu.memory_space<vmem>>, vector<1x128xf32>
    %3 = vector.broadcast %2 : vector<1x128xf32> to vector<512x128xf32>
    %4 = arith.mulf %1, %3 : vector<512x128xf32>
    %c0_3 = arith.constant 0 : index
    %c0_4 = arith.constant 0 : index
    %5 = vector.load %arg3[%c0_3, %c0_4] : memref<1x128xf32, #tpu.memory_space<vmem>>, vector<1x128xf32>
    %6 = vector.broadcast %5 : vector<1x128xf32> to vector<512x128xf32>
    %7 = arith.addf %4, %6 : vector<512x128xf32>
    %cst = arith.constant 0.000000e+00 : f32
    %8 = vector.broadcast %cst : f32 to vector<512x128xf32>
    %9 = arith.maximumf %7, %8 : vector<512x128xf32>
    %c0_5 = arith.constant 0 : index
    %c0_6 = arith.constant 0 : index
    %10 = vector.load %arg4[%c0_5, %c0_6] : memref<512x128xf32, #tpu.memory_space<vmem>>, vector<512x128xf32>
    tpu.vector_store %arg4[%c0_5, %c0_6], %9 {strides = array<i32>} : memref<512x128xf32, #tpu.memory_space<vmem>>, vector<512x128xf32>,
    return
  }
  func.func @transform_0(%arg0: i32) -> (i32, i32) {
    %c0_i32 = arith.constant 0 : i32
    %c0_i32_0 = arith.constant 0 : i32
    return %arg0, %c0_i32 : i32, i32
  }
  func.func @transform_1(%arg0: i32) -> (i32, i32) {
    %c0_i32 = arith.constant 0 : i32
    %c0_i32_0 = arith.constant 0 : i32
    %c0_i32_1 = arith.constant 0 : i32
    return %c0_i32, %c0_i32_0 : i32, i32
  }
  func.func @transform_2(%arg0: i32) -> (i32, i32) {
    %c0_i32 = arith.constant 0 : i32
    %c0_i32_0 = arith.constant 0 : i32
    %c0_i32_1 = arith.constant 0 : i32
    return %c0_i32, %c0_i32_0 : i32, i32
  }
  func.func @transform_3(%arg0: i32) -> (i32, i32) {
    %c0_i32 = arith.constant 0 : i32
    %c0_i32_0 = arith.constant 0 : i32
    return %arg0, %c0_i32 : i32, i32
  }
}

</mosaic_0001>

<llo_original>
// kernel: aspp_forward.3
$region0: #{aspp_forward.3}
  #allocation0 [shape = 'u32[]', space=smem, size = 0x4, offset = 0x4, fixed_abs, tag = 'smem constant byte address 0x4 - core index']
  #allocation1 [shape = 'u32[144,128]{1,0:T(1,128)}', space=vmem, size = 0x12000, scoped, tag = 'internal scratch']
  %s0 = inlined_call_operand.vmem [shape: bf16[512,128], index: 0, kind: input, shape index: {}]
  %s1 = inlined_call_operand.vmem [shape: f32[1,128], index: 1, kind: input, shape index: {}]
  %s2 = inlined_call_operand.vmem [shape: f32[1,128], index: 2, kind: input, shape index: {}]
  %s3 = inlined_call_operand.hbm [shape: f32[512,128], index: 3, kind: output, shape index: {}]
  %s4 = sld [smem:[#allocation0]]
  $region22: #{aspp_forward.3} parent=0
    _
  %s6 = ssub.s32 1, %s4
  %s7 = scalar_select 0, %s6, %s4
  $region1: #{aspp_forward.3} parent=0
    #allocation2 [shape = 'u8[262144]{0}', space=vmem, size = 0x40000, scoped, tag = 'output window, operand 0, single buffered']
    #allocation3 [shape = 's32[1]{0}', space=sflag, size = 0x4, scoped, tag = 'scoped memory for aspp_forward.3']
    %8 = vsyncpa [#allocation3], 0
    // Predicated region
    $region2: #{aspp_forward.3} parent=1 // pred_check
      _
    $region3: #{aspp_forward.3} parent=1 // pred_check_branch
      %10 = sbr.rel (0) target = $region5
    $region4: #{aspp_forward.3} parent=1 // pred_region
      _
    $region5: #{aspp_forward.3} parent=1 // pred_fallthru
      _
    // Predicated region
    $region6: #{aspp_forward.3} parent=1 // pred_check
      _
    $region7: #{aspp_forward.3} parent=1 // pred_check_branch
      %12 = sbr.rel (0) target = $region9
    $region8: #{aspp_forward.3} parent=1 // pred_region
      _
    $region9: #{aspp_forward.3} parent=1 // pred_fallthru
      _
    // Predicated region
    $region10: #{aspp_forward.3} parent=1 // pred_check
      _
    $region11: #{aspp_forward.3} parent=1 // pred_check_branch
      %14 = sbr.rel (0) target = $region13
    $region12: #{aspp_forward.3} parent=1 // pred_region
      _
    $region13: #{aspp_forward.3} parent=1 // pred_fallthru
      _
    %v15 = vld [vmem:[%s0] sm:$0xf]
    %v16 = vld [vmem:[%s0 + $0x4] sm:$0xf]
    %v17 = vld [vmem:[%s0 + $0x8] sm:$0xf]
    %v18 = vld [vmem:[%s0 + $0xc] sm:$0xf]
    %v19 = vld [vmem:[%s0 + $0x10] sm:$0xf]
    %v20 = vld [vmem:[%s0 + $0x14] sm:$0xf]
    %v21 = vld [vmem:[%s0 + $0x18] sm:$0xf]
    %v22 = vld [vmem:[%s0 + $0x1c] sm:$0xf]
    %v23 = vld [vmem:[%s0 + $0x20] sm:$0xf]
    %v24 = vld [vmem:[%s0 + $0x24] sm:$0xf]
    %v25 = vld [vmem:[%s0 + $0x28] sm:$0xf]
    %v26 = vld [vmem:[%s0 + $0x2c] sm:$0xf]
    %v27 = vld [vmem:[%s0 + $0x30] sm:$0xf]
    %v28 = vld [vmem:[%s0 + $0x34] sm:$0xf]
    %v29 = vld [vmem:[%s0 + $0x38] sm:$0xf]
    %v30 = vld [vmem:[%s0 + $0x3c] sm:$0xf]
    %v31 = vld [vmem:[%s0 + $0x40] sm:$0xf]
    %v32 = vld [vmem:[%s0 + $0x44] sm:$0xf]
    %v33 = vld [vmem:[%s0 + $0x48] sm:$0xf]
    %v34 = vld [vmem:[%s0 + $0x4c] sm:$0xf]
    %v35 = vld [vmem:[%s0 + $0x50] sm:$0xf]
    %v36 = vld [vmem:[%s0 + $0x54] sm:$0xf]
    %v37 = vld [vmem:[%s0 + $0x58] sm:$0xf]
    %v38 = vld [vmem:[%s0 + $0x5c] sm:$0xf]
    %v39 = vld [vmem:[%s0 + $0x60] sm:$0xf]
    %v40 = vld [vmem:[%s0 + $0x64] sm:$0xf]
    %v41 = vld [vmem:[%s0 + $0x68] sm:$0xf]
    %v42 = vld [vmem:[%s0 + $0x6c] sm:$0xf]
    %v43 = vld [vmem:[%s0 + $0x70] sm:$0xf]
    %v44 = vld [vmem:[%s0 + $0x74] sm:$0xf]
    %v45 = vld [vmem:[%s0 + $0x78] sm:$0xf]
    %v46 = vld [vmem:[%s0 + $0x7c] sm:$0xf]
    %v47 = vld [vmem:[%s0 + $0x80] sm:$0xf]
    %v48 = vld [vmem:[%s0 + $0x84] sm:$0xf]
    %v49 = vld [vmem:[%s0 + $0x88] sm:$0xf]
    %v50 = vld [vmem:[%s0 + $0x8c] sm:$0xf]
    %v51 = vld [vmem:[%s0 + $0x90] sm:$0xf]
    %v52 = vld [vmem:[%s0 + $0x94] sm:$0xf]
    %v53 = vld [vmem:[%s0 + $0x98] sm:$0xf]
    %v54 = vld [vmem:[%s0 + $0x9c] sm:$0xf]
    %v55 = vld [vmem:[%s0 + $0xa0] sm:$0xf]
    %v56 = vld [vmem:[%s0 + $0xa4] sm:$0xf]
    %v57 = vld [vmem:[%s0 + $0xa8] sm:$0xf]
    %v58 = vld [vmem:[%s0 + $0xac] sm:$0xf]
    %v59 = vld [vmem:[%s0 + $0xb0] sm:$0xf]
    %v60 = vld [vmem:[%s0 + $0xb4] sm:$0xf]
    %v61 = vld [vmem:[%s0 + $0xb8] sm:$0xf]
    %v62 = vld [vmem:[%s0 + $0xbc] sm:$0xf]
    %v63 = vld [vmem:[%s0 + $0xc0] sm:$0xf]
    %v64 = vld [vmem:[%s0 + $0xc4] sm:$0xf]
    %v65 = vld [vmem:[%s0 + $0xc8] sm:$0xf]
    %v66 = vld [vmem:[%s0 + $0xcc] sm:$0xf]
    %v67 = vld [vmem:[%s0 + $0xd0] sm:$0xf]
    %v68 = vld [vmem:[%s0 + $0xd4] sm:$0xf]
    %v69 = vld [vmem:[%s0 + $0xd8] sm:$0xf]
    %v70 = vld [vmem:[%s0 + $0xdc] sm:$0xf]
    %v71 = vld [vmem:[%s0 + $0xe0] sm:$0xf]
    %v72 = vld [vmem:[%s0 + $0xe4] sm:$0xf]
    %v73 = vld [vmem:[%s0 + $0xe8] sm:$0xf]
    %v74 = vld [vmem:[%s0 + $0xec] sm:$0xf]
    %v75 = vld [vmem:[%s0 + $0xf0] sm:$0xf]
    %v76 = vld [vmem:[%s0 + $0xf4] sm:$0xf]
    %v77 = vld [vmem:[%s0 + $0xf8] sm:$0xf]
    %v78 = vld [vmem:[%s0 + $0xfc] sm:$0xf]
    %v79 = vunpack.c.l.bf16 %v15
    %v80 = vunpack.c.l.bf16 %v16
    %v81 = vunpack.c.l.bf16 %v17
    %v82 = vunpack.c.l.bf16 %v18
    %v83 = vunpack.c.l.bf16 %v19
    %v84 = vunpack.c.l.bf16 %v20
    %v85 = vunpack.c.l.bf16 %v21
    %v86 = vunpack.c.l.bf16 %v22
    %v87 = vunpack.c.l.bf16 %v23
    %v88 = vunpack.c.l.bf16 %v24
    %v89 = vunpack.c.l.bf16 %v25
    %v90 = vunpack.c.l.bf16 %v26
    %v91 = vunpack.c.l.bf16 %v27
    %v92 = vunpack.c.l.bf16 %v28
    %v93 = vunpack.c.l.bf16 %v29
    %v94 = vunpack.c.l.bf16 %v30
    %v95 = vunpack.c.l.bf16 %v31
    %v96 = vunpack.c.l.bf16 %v32
    %v97 = vunpack.c.l.bf16 %v33
    %v98 = vunpack.c.l.bf16 %v34
    %v99 = vunpack.c.l.bf16 %v35
    %v100 = vunpack.c.l.bf16 %v36
    %v101 = vunpack.c.l.bf16 %v37
    %v102 = vunpack.c.l.bf16 %v38
    %v103 = vunpack.c.l.bf16 %v39
    %v104 = vunpack.c.l.bf16 %v40
    %v105 = vunpack.c.l.bf16 %v41
    %v106 = vunpack.c.l.bf16 %v42
    %v107 = vunpack.c.l.bf16 %v43
    %v108 = vunpack.c.l.bf16 %v44
    %v109 = vunpack.c.l.bf16 %v45
    %v110 = vunpack.c.l.bf16 %v46
    %v111 = vunpack.c.l.bf16 %v47
    %v112 = vunpack.c.l.bf16 %v48
    %v113 = vunpack.c.l.bf16 %v49
    %v114 = vunpack.c.l.bf16 %v50
    %v115 = vunpack.c.l.bf16 %v51
    %v116 = vunpack.c.l.bf16 %v52
    %v117 = vunpack.c.l.bf16 %v53
    %v118 = vunpack.c.l.bf16 %v54
    %v119 = vunpack.c.l.bf16 %v55
    %v120 = vunpack.c.l.bf16 %v56
    %v121 = vunpack.c.l.bf16 %v57
    %v122 = vunpack.c.l.bf16 %v58
    %v123 = vunpack.c.l.bf16 %v59
    %v124 = vunpack.c.l.bf16 %v60
    %v125 = vunpack.c.l.bf16 %v61
    %v126 = vunpack.c.l.bf16 %v62
    %v127 = vunpack.c.l.bf16 %v63
    %v128 = vunpack.c.l.bf16 %v64
    %v129 = vunpack.c.l.bf16 %v65
    %v130 = vunpack.c.l.bf16 %v66
    %v131 = vunpack.c.l.bf16 %v67
    %v132 = vunpack.c.l.bf16 %v68
    %v133 = vunpack.c.l.bf16 %v69
    %v134 = vunpack.c.l.bf16 %v70
    %v135 = vunpack.c.l.bf16 %v71
    %v136 = vunpack.c.l.bf16 %v72
    %v137 = vunpack.c.l.bf16 %v73
    %v138 = vunpack.c.l.bf16 %v74
    %v139 = vunpack.c.l.bf16 %v75
    %v140 = vunpack.c.l.bf16 %v76
    %v141 = vunpack.c.l.bf16 %v77
    %v142 = vunpack.c.l.bf16 %v78
    %v143 = vld [vmem:[%s1] sm:$0x1]
    %v145 = vlaneseq
    %v146 = vshrl.u32 %v145, 7
    %v147 = vsub.s32 0, %v146
    %v148 = vrot.slane %v143, %v147
    %v150 = vmul.f32 %v79, %v148
    %v151 = vmul.f32 %v80, %v148
    %v152 = vmul.f32 %v81, %v148
    %v153 = vmul.f32 %v82, %v148
    %v154 = vmul.f32 %v83, %v148
    %v155 = vmul.f32 %v84, %v148
    %v156 = vmul.f32 %v85, %v148
    %v157 = vmul.f32 %v86, %v148
    %v158 = vmul.f32 %v87, %v148
    %v159 = vmul.f32 %v88, %v148
    %v160 = vmul.f32 %v89, %v148
    %v161 = vmul.f32 %v90, %v148
    %v162 = vmul.f32 %v91, %v148
    %v163 = vmul.f32 %v92, %v148
    %v164 = vmul.f32 %v93, %v148
    %v165 = vmul.f32 %v94, %v148
    %v166 = vmul.f32 %v95, %v148
    %v167 = vmul.f32 %v96, %v148
    %v168 = vmul.f32 %v97, %v148
    %v169 = vmul.f32 %v98, %v148
    %v170 = vmul.f32 %v99, %v148
    %v171 = vmul.f32 %v100, %v148
    %v172 = vmul.f32 %v101, %v148
    %v173 = vmul.f32 %v102, %v148
    %v174 = vmul.f32 %v103, %v148
    %v175 = vmul.f32 %v104, %v148
    %v176 = vmul.f32 %v105, %v148
    %v177 = vmul.f32 %v106, %v148
    %v178 = vmul.f32 %v107, %v148
    %v179 = vmul.f32 %v108, %v148
    %v180 = vmul.f32 %v109, %v148
    %v181 = vmul.f32 %v110, %v148
    %v182 = vmul.f32 %v111, %v148
    %v183 = vmul.f32 %v112, %v148
    %v184 = vmul.f32 %v113, %v148
    %v185 = vmul.f32 %v114, %v148
    %v186 = vmul.f32 %v115, %v148
    %v187 = vmul.f32 %v116, %v148
    %v188 = vmul.f32 %v117, %v148
    %v189 = vmul.f32 %v118, %v148
    %v190 = vmul.f32 %v119, %v148
    %v191 = vmul.f32 %v120, %v148
    %v192 = vmul.f32 %v121, %v148
    %v193 = vmul.f32 %v122, %v148
    %v194 = vmul.f32 %v123, %v148
    %v195 = vmul.f32 %v124, %v148
    %v196 = vmul.f32 %v125, %v148
    %v197 = vmul.f32 %v126, %v148
    %v198 = vmul.f32 %v127, %v148
    %v199 = vmul.f32 %v128, %v148
    %v200 = vmul.f32 %v129, %v148
    %v201 = vmul.f32 %v130, %v148
    %v202 = vmul.f32 %v131, %v148
    %v203 = vmul.f32 %v132, %v148
    %v204 = vmul.f32 %v133, %v148
    %v205 = vmul.f32 %v134, %v148
    %v206 = vmul.f32 %v135, %v148
    %v207 = vmul.f32 %v136, %v148
    %v208 = vmul.f32 %v137, %v148
    %v209 = vmul.f32 %v138, %v148
    %v210 = vmul.f32 %v139, %v148
    %v211 = vmul.f32 %v140, %v148
    %v212 = vmul.f32 %v141, %v148
    %v213 = vmul.f32 %v142, %v148
    %v214 = vld [vmem:[%s2] sm:$0x1]
    %v216 = vlaneseq
    %v217 = vshrl.u32 %v216, 7
    %v218 = vsub.s32 0, %v217
    %v219 = vrot.slane %v214, %v218
    %v221 = vadd.f32 %v150, %v219
    %v222 = vadd.f32 %v151, %v219
    %v223 = vadd.f32 %v152, %v219
    %v224 = vadd.f32 %v153, %v219
    %v225 = vadd.f32 %v154, %v219
    %v226 = vadd.f32 %v155, %v219
    %v227 = vadd.f32 %v156, %v219
    %v228 = vadd.f32 %v157, %v219
    %v229 = vadd.f32 %v158, %v219
    %v230 = vadd.f32 %v159, %v219
    %v231 = vadd.f32 %v160, %v219
    %v232 = vadd.f32 %v161, %v219
    %v233 = vadd.f32 %v162, %v219
    %v234 = vadd.f32 %v163, %v219
    %v235 = vadd.f32 %v164, %v219
    %v236 = vadd.f32 %v165, %v219
    %v237 = vadd.f32 %v166, %v219
    %v238 = vadd.f32 %v167, %v219
    %v239 = vadd.f32 %v168, %v219
    %v240 = vadd.f32 %v169, %v219
    %v241 = vadd.f32 %v170, %v219
    %v242 = vadd.f32 %v171, %v219
    %v243 = vadd.f32 %v172, %v219
    %v244 = vadd.f32 %v173, %v219
    %v245 = vadd.f32 %v174, %v219
    %v246 = vadd.f32 %v175, %v219
    %v247 = vadd.f32 %v176, %v219
    %v248 = vadd.f32 %v177, %v219
    %v249 = vadd.f32 %v178, %v219
    %v250 = vadd.f32 %v179, %v219
    %v251 = vadd.f32 %v180, %v219
    %v252 = vadd.f32 %v181, %v219
    %v253 = vadd.f32 %v182, %v219
    %v254 = vadd.f32 %v183, %v219
    %v255 = vadd.f32 %v184, %v219
    %v256 = vadd.f32 %v185, %v219
    %v257 = vadd.f32 %v186, %v219
    %v258 = vadd.f32 %v187, %v219
    %v259 = vadd.f32 %v188, %v219
    %v260 = vadd.f32 %v189, %v219
    %v261 = vadd.f32 %v190, %v219
    %v262 = vadd.f32 %v191, %v219
    %v263 = vadd.f32 %v192, %v219
    %v264 = vadd.f32 %v193, %v219
    %v265 = vadd.f32 %v194, %v219
    %v266 = vadd.f32 %v195, %v219
    %v267 = vadd.f32 %v196, %v219
    %v268 = vadd.f32 %v197, %v219
    %v269 = vadd.f32 %v198, %v219
    %v270 = vadd.f32 %v199, %v219
    %v271 = vadd.f32 %v200, %v219
    %v272 = vadd.f32 %v201, %v219
    %v273 = vadd.f32 %v202, %v219
    %v274 = vadd.f32 %v203, %v219
    %v275 = vadd.f32 %v204, %v219
    %v276 = vadd.f32 %v205, %v219
    %v277 = vadd.f32 %v206, %v219
    %v278 = vadd.f32 %v207, %v219
    %v279 = vadd.f32 %v208, %v219
    %v280 = vadd.f32 %v209, %v219
    %v281 = vadd.f32 %v210, %v219
    %v282 = vadd.f32 %v211, %v219
    %v283 = vadd.f32 %v212, %v219
    %v284 = vadd.f32 %v213, %v219
    %v285 = vmax.f32 %v221, 0.0
    %v286 = vmax.f32 %v222, 0.0
    %v287 = vmax.f32 %v223, 0.0
    %v288 = vmax.f32 %v224, 0.0
    %v289 = vmax.f32 %v225, 0.0
    %v290 = vmax.f32 %v226, 0.0
    %v291 = vmax.f32 %v227, 0.0
    %v292 = vmax.f32 %v228, 0.0
    %v293 = vmax.f32 %v229, 0.0
    %v294 = vmax.f32 %v230, 0.0
    %v295 = vmax.f32 %v231, 0.0
    %v296 = vmax.f32 %v232, 0.0
    %v297 = vmax.f32 %v233, 0.0
    %v298 = vmax.f32 %v234, 0.0
    %v299 = vmax.f32 %v235, 0.0
    %v300 = vmax.f32 %v236, 0.0
    %v301 = vmax.f32 %v237, 0.0
    %v302 = vmax.f32 %v238, 0.0
    %v303 = vmax.f32 %v239, 0.0
    %v304 = vmax.f32 %v240, 0.0
    %v305 = vmax.f32 %v241, 0.0
    %v306 = vmax.f32 %v242, 0.0
    %v307 = vmax.f32 %v243, 0.0
    %v308 = vmax.f32 %v244, 0.0
    %v309 = vmax.f32 %v245, 0.0
    %v310 = vmax.f32 %v246, 0.0
    %v311 = vmax.f32 %v247, 0.0
    %v312 = vmax.f32 %v248, 0.0
    %v313 = vmax.f32 %v249, 0.0
    %v314 = vmax.f32 %v250, 0.0
    %v315 = vmax.f32 %v251, 0.0
    %v316 = vmax.f32 %v252, 0.0
    %v317 = vmax.f32 %v253, 0.0
    %v318 = vmax.f32 %v254, 0.0
    %v319 = vmax.f32 %v255, 0.0
    %v320 = vmax.f32 %v256, 0.0
    %v321 = vmax.f32 %v257, 0.0
    %v322 = vmax.f32 %v258, 0.0
    %v323 = vmax.f32 %v259, 0.0
    %v324 = vmax.f32 %v260, 0.0
    %v325 = vmax.f32 %v261, 0.0
    %v326 = vmax.f32 %v262, 0.0
    %v327 = vmax.f32 %v263, 0.0
    %v328 = vmax.f32 %v264, 0.0
    %v329 = vmax.f32 %v265, 0.0
    %v330 = vmax.f32 %v266, 0.0
    %v331 = vmax.f32 %v267, 0.0
    %v332 = vmax.f32 %v268, 0.0
    %v333 = vmax.f32 %v269, 0.0
    %v334 = vmax.f32 %v270, 0.0
    %v335 = vmax.f32 %v271, 0.0
    %v336 = vmax.f32 %v272, 0.0
    %v337 = vmax.f32 %v273, 0.0
    %v338 = vmax.f32 %v274, 0.0
    %v339 = vmax.f32 %v275, 0.0
    %v340 = vmax.f32 %v276, 0.0
    %v341 = vmax.f32 %v277, 0.0
    %v342 = vmax.f32 %v278, 0.0
    %v343 = vmax.f32 %v279, 0.0
    %v344 = vmax.f32 %v280, 0.0
    %v345 = vmax.f32 %v281, 0.0
    %v346 = vmax.f32 %v282, 0.0
    %v347 = vmax.f32 %v283, 0.0
    %v348 = vmax.f32 %v284, 0.0
    %349 = vst [vmem:[#allocation2] sm:$0xff] %v285
    %350 = vst [vmem:[#allocation2 + $0x8] sm:$0xff] %v286
    %351 = vst [vmem:[#allocation2 + $0x10] sm:$0xff] %v287
    %352 = vst [vmem:[#allocation2 + $0x18] sm:$0xff] %v288
    %353 = vst [vmem:[#allocation2 + $0x20] sm:$0xff] %v289
    %354 = vst [vmem:[#allocation2 + $0x28] sm:$0xff] %v290
    %355 = vst [vmem:[#allocation2 + $0x30] sm:$0xff] %v291
    %356 = vst [vmem:[#allocation2 + $0x38] sm:$0xff] %v292
    %357 = vst [vmem:[#allocation2 + $0x40] sm:$0xff] %v293
    %358 = vst [vmem:[#allocation2 + $0x48] sm:$0xff] %v294
    %359 = vst [vmem:[#allocation2 + $0x50] sm:$0xff] %v295
    %360 = vst [vmem:[#allocation2 + $0x58] sm:$0xff] %v296
    %361 = vst [vmem:[#allocation2 + $0x60] sm:$0xff] %v297
    %362 = vst [vmem:[#allocation2 + $0x68] sm:$0xff] %v298
    %363 = vst [vmem:[#allocation2 + $0x70] sm:$0xff] %v299
    %364 = vst [vmem:[#allocation2 + $0x78] sm:$0xff] %v300
    %365 = vst [vmem:[#allocation2 + $0x80] sm:$0xff] %v301
    %366 = vst [vmem:[#allocation2 + $0x88] sm:$0xff] %v302
    %367 = vst [vmem:[#allocation2 + $0x90] sm:$0xff] %v303
    %368 = vst [vmem:[#allocation2 + $0x98] sm:$0xff] %v304
    %369 = vst [vmem:[#allocation2 + $0xa0] sm:$0xff] %v305
    %370 = vst [vmem:[#allocation2 + $0xa8] sm:$0xff] %v306
    %371 = vst [vmem:[#allocation2 + $0xb0] sm:$0xff] %v307
    %372 = vst [vmem:[#allocation2 + $0xb8] sm:$0xff] %v308
    %373 = vst [vmem:[#allocation2 + $0xc0] sm:$0xff] %v309
    %374 = vst [vmem:[#allocation2 + $0xc8] sm:$0xff] %v310
    %375 = vst [vmem:[#allocation2 + $0xd0] sm:$0xff] %v311
    %376 = vst [vmem:[#allocation2 + $0xd8] sm:$0xff] %v312
    %377 = vst [vmem:[#allocation2 + $0xe0] sm:$0xff] %v313
    %378 = vst [vmem:[#allocation2 + $0xe8] sm:$0xff] %v314
    %379 = vst [vmem:[#allocation2 + $0xf0] sm:$0xff] %v315
    %380 = vst [vmem:[#allocation2 + $0xf8] sm:$0xff] %v316
    %381 = vst [vmem:[#allocation2 + $0x100] sm:$0xff] %v317
    %382 = vst [vmem:[#allocation2 + $0x108] sm:$0xff] %v318
    %383 = vst [vmem:[#allocation2 + $0x110] sm:$0xff] %v319
    %384 = vst [vmem:[#allocation2 + $0x118] sm:$0xff] %v320
    %385 = vst [vmem:[#allocation2 + $0x120] sm:$0xff] %v321
    %386 = vst [vmem:[#allocation2 + $0x128] sm:$0xff] %v322
    %387 = vst [vmem:[#allocation2 + $0x130] sm:$0xff] %v323
    %388 = vst [vmem:[#allocation2 + $0x138] sm:$0xff] %v324
    %389 = vst [vmem:[#allocation2 + $0x140] sm:$0xff] %v325
    %390 = vst [vmem:[#allocation2 + $0x148] sm:$0xff] %v326
    %391 = vst [vmem:[#allocation2 + $0x150] sm:$0xff] %v327
    %392 = vst [vmem:[#allocation2 + $0x158] sm:$0xff] %v328
    %393 = vst [vmem:[#allocation2 + $0x160] sm:$0xff] %v329
    %394 = vst [vmem:[#allocation2 + $0x168] sm:$0xff] %v330
    %395 = vst [vmem:[#allocation2 + $0x170] sm:$0xff] %v331
    %396 = vst [vmem:[#allocation2 + $0x178] sm:$0xff] %v332
    %397 = vst [vmem:[#allocation2 + $0x180] sm:$0xff] %v333
    %398 = vst [vmem:[#allocation2 + $0x188] sm:$0xff] %v334
    %399 = vst [vmem:[#allocation2 + $0x190] sm:$0xff] %v335
    %400 = vst [vmem:[#allocation2 + $0x198] sm:$0xff] %v336
    %401 = vst [vmem:[#allocation2 + $0x1a0] sm:$0xff] %v337
    %402 = vst [vmem:[#allocation2 + $0x1a8] sm:$0xff] %v338
    %403 = vst [vmem:[#allocation2 + $0x1b0] sm:$0xff] %v339
    %404 = vst [vmem:[#allocation2 + $0x1b8] sm:$0xff] %v340
    %405 = vst [vmem:[#allocation2 + $0x1c0] sm:$0xff] %v341
    %406 = vst [vmem:[#allocation2 + $0x1c8] sm:$0xff] %v342
    %407 = vst [vmem:[#allocation2 + $0x1d0] sm:$0xff] %v343
    %408 = vst [vmem:[#allocation2 + $0x1d8] sm:$0xff] %v344
    %409 = vst [vmem:[#allocation2 + $0x1e0] sm:$0xff] %v345
    %410 = vst [vmem:[#allocation2 + $0x1e8] sm:$0xff] %v346
    %411 = vst [vmem:[#allocation2 + $0x1f0] sm:$0xff] %v347
    %412 = vst [vmem:[#allocation2 + $0x1f8] sm:$0xff] %v348
    // Predicated region
    $region14: #{aspp_forward.3} parent=1 // pred_check
      _
    $region15: #{aspp_forward.3} parent=1 // pred_check_branch
      %414 = sbr.rel (0) target = $region17
    $region16: #{aspp_forward.3} parent=1 // pred_region
      %s416 = ssub.s32 8192, 8192
      %417 = vsyncadd [#allocation3], %s416
      %s418 = sshll.u32 [#allocation2], 4
      %s419 = int_to_ptr.vmem [resolvable:$true] %s418
      %424 = dma.vmem_to_hbm [thread:$0]  %s419, 8192, %s3, [#allocation3], 128, 128, 8
    $region17: #{aspp_forward.3} parent=1 // pred_fallthru
      _
    // Predicated region
    $region18: #{aspp_forward.3} parent=1 // pred_check
      _
    $region19: #{aspp_forward.3} parent=1 // pred_check_branch
      %426 = sbr.rel (0) target = $region21
    $region20: #{aspp_forward.3} parent=1 // pred_region
      %427 = dma.done [#allocation3], 8192
    $region21: #{aspp_forward.3} parent=1 // pred_fallthru
      _
    %428 = vsyncpa [#allocation3], 1

// kernel: aspp_forward.2
$region0: #{aspp_forward.2}
  #allocation0 [shape = 'u32[]', space=smem, size = 0x4, offset = 0x4, fixed_abs, tag = 'smem constant byte address 0x4 - core index']
  #allocation1 [shape = 'u32[144,128]{1,0:T(1,128)}', space=vmem, size = 0x12000, scoped, tag = 'internal scratch']
  %s0 = inlined_call_operand.vmem [shape: bf16[512,1152], index: 0, kind: input, shape index: {}]
  %s1 = inlined_call_operand.vmem [shape: bf16[1152,128], index: 1, kind: input, shape index: {}]
  %s2 = inlined_call_operand.vmem [shape: bf16[512,128], index: 2, kind: output, shape index: {0}]
  %s3 = inlined_call_operand.vmem [shape: f32[1,2,128], index: 3, kind: output, shape index: {1}]
  %4 = xla_tuple %s2, %s3
  %s5 = sld [smem:[#allocation0]]
  $region26: #{aspp_forward.2} parent=0
    _
  %s7 = ssub.s32 1, %s5
  %s8 = scalar_select 0, %s7, %s5
  // Predicated region
  $region2: #{aspp_forward.2} parent=0 // pred_check
    _
  $region3: #{aspp_forward.2} parent=0 // pred_check_branch
    %10 = sbr.rel (0) target = $region5
  $region4: #{aspp_forward.2} parent=0 // pred_region
    _
  $region5: #{aspp_forward.2} parent=0 // pred_fallthru
    _
  // Predicated region
  $region6: #{aspp_forward.2} parent=0 // pred_check
    _
  $region7: #{aspp_forward.2} parent=0 // pred_check_branch
    %12 = sbr.rel (0) target = $region9
  $region8: #{aspp_forward.2} parent=0 // pred_region
    _
  $region9: #{aspp_forward.2} parent=0 // pred_fallthru
    _
  %v14 = vld [vmem:[%s0] sm:$0xff]
  %v15 = vld [vmem:[%s0 + $0x8] sm:$0xff]
  %v16 = vld [vmem:[%s0 + $0x10] sm:$0xff]
  %v17 = vld [vmem:[%s0 + $0x18] sm:$0xff]
  %v18 = vld [vmem:[%s0 + $0x20] sm:$0xf]
  %v19 = vld [vmem:[%s0 + $0x24] sm:$0xff]
  %v20 = vld [vmem:[%s0 + $0x2c] sm:$0xff]
  %v21 = vld [vmem:[%s0 + $0x34] sm:$0xff]
  %v22 = vld [vmem:[%s0 + $0x3c] sm:$0xff]
  %v23 = vld [vmem:[%s0 + $0x44] sm:$0xf]
  %v24 = vld [vmem:[%s0 + $0x48] sm:$0xff]
  %v25 = vld [vmem:[%s0 + $0x50] sm:$0xff]
  %v26 = vld [vmem:[%s0 + $0x58] sm:$0xff]
  %v27 = vld [vmem:[%s0 + $0x60] sm:$0xff]
  %v28 = vld [vmem:[%s0 + $0x68] sm:$0xf]
  %v29 = vld [vmem:[%s0 + $0x6c] sm:$0xff]
  %v30 = vld [vmem:[%s0 + $0x74] sm:$0xff]
  %v31 = vld [vmem:[%s0 + $0x7c] sm:$0xff]
  %v32 = vld [vmem:[%s0 + $0x84] sm:$0xff]
  %v33 = vld [vmem:[%s0 + $0x8c] sm:$0xf]
  %v34 = vld [vmem:[%s0 + $0x90] sm:$0xff]
  %v35 = vld [vmem:[%s0 + $0x98] sm:$0xff]
  %v36 = vld [vmem:[%s0 + $0xa0] sm:$0xff]
  %v37 = vld [vmem:[%s0 + $0xa8] sm:$0xff]
  %v38 = vld [vmem:[%s0 + $0xb0] sm:$0xf]
  %v39 = vld [vmem:[%s0 + $0xb4] sm:$0xff]
  %v40 = vld [vmem:[%s0 + $0xbc] sm:$0xff]
  %v41 = vld [vmem:[%s0 + $0xc4] sm:$0xff]
  %v42 = vld [vmem:[%s0 + $0xcc] sm:$0xff]
  %v43 = vld [vmem:[%s0 + $0xd4] sm:$0xf]
  %v44 = vld [vmem:[%s0 + $0xd8] sm:$0xff]
  %v45 = vld [vmem:[%s0 + $0xe0] sm:$0xff]
  %v46 = vld [vmem:[%s0 + $0xe8] sm:$0xff]
  %v47 = vld [vmem:[%s0 + $0xf0] sm:$0xff]
  %v48 = vld [vmem:[%s0 + $0xf8] sm:$0xf]
  %v49 = vld [vmem:[%s0 + $0xfc] sm:$0xff]
  %v50 = vld [vmem:[%s0 + $0x104] sm:$0xff]
  %v51 = vld [vmem:[%s0 + $0x10c] sm:$0xff]
  %v52 = vld [vmem:[%s0 + $0x114] sm:$0xff]
  %v53 = vld [vmem:[%s0 + $0x11c] sm:$0xf]
  %v54 = vld [vmem:[%s0 + $0x120] sm:$0xff]
  %v55 = vld [vmem:[%s0 + $0x128] sm:$0xff]
  %v56 = vld [vmem:[%s0 + $0x130] sm:$0xff]
  %v57 = vld [vmem:[%s0 + $0x138] sm:$0xff]
  %v58 = vld [vmem:[%s0 + $0x140] sm:$0xf]
  %v59 = vld [vmem:[%s0 + $0x144] sm:$0xff]
  %v60 = vld [vmem:[%s0 + $0x14c] sm:$0xff]
  %v61 = vld [vmem:[%s0 + $0x154] sm:$0xff]
  %v62 = vld [vmem:[%s0 + $0x15c] sm:$0xff]
  %v63 = vld [vmem:[%s0 + $0x164] sm:$0xf]
  %v64 = vld [vmem:[%s0 + $0x168] sm:$0xff]
  %v65 = vld [vmem:[%s0 + $0x170] sm:$0xff]
  %v66 = vld [vmem:[%s0 + $0x178] sm:$0xff]
  %v67 = vld [vmem:[%s0 + $0x180] sm:$0xff]
  %v68 = vld [vmem:[%s0 + $0x188] sm:$0xf]
  %v69 = vld [vmem:[%s0 + $0x18c] sm:$0xff]
  %v70 = vld [vmem:[%s0 + $0x194] sm:$0xff]
  %v71 = vld [vmem:[%s0 + $0x19c] sm:$0xff]
  %v72 = vld [vmem:[%s0 + $0x1a4] sm:$0xff]
  %v73 = vld [vmem:[%s0 + $0x1ac] sm:$0xf]
  %v74 = vld [vmem:[%s0 + $0x1b0] sm:$0xff]
  %v75 = vld [vmem:[%s0 + $0x1b8] sm:$0xff]
  %v76 = vld [vmem:[%s0 + $0x1c0] sm:$0xff]
  %v77 = vld [vmem:[%s0 + $0x1c8] sm:$0xff]
  %v78 = vld [vmem:[%s0 + $0x1d0] sm:$0xf]
  %v79 = vld [vmem:[%s0 + $0x1d4] sm:$0xff]
  %v80 = vld [vmem:[%s0 + $0x1dc] sm:$0xff]
  %v81 = vld [vmem:[%s0 + $0x1e4] sm:$0xff]
  %v82 = vld [vmem:[%s0 + $0x1ec] sm:$0xff]
  %v83 = vld [vmem:[%s0 + $0x1f4] sm:$0xf]
  %v84 = vld [vmem:[%s0 + $0x1f8] sm:$0xff]
  %v85 = vld [vmem:[%s0 + $0x200] sm:$0xff]
  %v86 = vld [vmem:[%s0 + $0x208] sm:$0xff]
  %v87 = vld [vmem:[%s0 + $0x210] sm:$0xff]
  %v88 = vld [vmem:[%s0 + $0x218] sm:$0xf]
  %v89 = vld [vmem:[%s0 + $0x21c] sm:$0xff]
  %v90 = vld [vmem:[%s0 + $0x224] sm:$0xff]
  %v91 = vld [vmem:[%s0 + $0x22c] sm:$0xff]
  %v92 = vld [vmem:[%s0 + $0x234] sm:$0xff]
  %v93 = vld [vmem:[%s0 + $0x23c] sm:$0xf]
  %v94 = vld [vmem:[%s0 + $0x240] sm:$0xff]
  %v95 = vld [vmem:[%s0 + $0x248] sm:$0xff]
  %v96 = vld [vmem:[%s0 + $0x250] sm:$0xff]
  %v97 = vld [vmem:[%s0 + $0x258] sm:$0xff]
  %v98 = vld [vmem:[%s0 + $0x260] sm:$0xf]
  %v99 = vld [vmem:[%s0 + $0x264] sm:$0xff]
  %v100 = vld [vmem:[%s0 + $0x26c] sm:$0xff]
  %v101 = vld [vmem:[%s0 + $0x274] sm:$0xff]
  %v102 = vld [vmem:[%s0 + $0x27c] sm:$0xff]
  %v103 = vld [vmem:[%s0 + $0x284] sm:$0xf]
  %v104 = vld [vmem:[%s0 + $0x288] sm:$0xff]
  %v105 = vld [vmem:[%s0 + $0x290] sm:$0xff]
  %v106 = vld [vmem:[%s0 + $0x298] sm:$0xff]
  %v107 = vld [vmem:[%s0 + $0x2a0] sm:$0xff]
  %v108 = vld [vmem:[%s0 + $0x2a8] sm:$0xf]
  %v109 = vld [vmem:[%s0 + $0x2ac] sm:$0xff]
  %v110 = vld [vmem:[%s0 + $0x2b4] sm:$0xff]
  %v111 = vld [vmem:[%s0 + $0x2bc] sm:$0xff]
  %v112 = vld [vmem:[%s0 + $0x2c4] sm:$0xff]
  %v113 = vld [vmem:[%s0 + $0x2cc] sm:$0xf]
  %v114 = vld [vmem:[%s0 + $0x2d0] sm:$0xff]
  %v115 = vld [vmem:[%s0 + $0x2d8] sm:$0xff]
  %v116 = vld [vmem:[%s0 + $0x2e0] sm:$0xff]
  %v117 = vld [vmem:[%s0 + $0x2e8] sm:$0xff]
  %v118 = vld [vmem:[%s0 + $0x2f0] sm:$0xf]
  %v119 = vld [vmem:[%s0 + $0x2f4] sm:$0xff]
  %v120 = vld [vmem:[%s0 + $0x2fc] sm:$0xff]
  %v121 = vld [vmem:[%s0 + $0x304] sm:$0xff]
  %v122 = vld [vmem:[%s0 + $0x30c] sm:$0xff]
  %v123 = vld [vmem:[%s0 + $0x314] sm:$0xf]
  %v124 = vld [vmem:[%s0 + $0x318] sm:$0xff]
  %v125 = vld [vmem:[%s0 + $0x320] sm:$0xff]
  %v126 = vld [vmem:[%s0 + $0x328] sm:$0xff]
  %v127 = vld [vmem:[%s0 + $0x330] sm:$0xff]
  %v128 = vld [vmem:[%s0 + $0x338] sm:$0xf]
  %v129 = vld [vmem:[%s0 + $0x33c] sm:$0xff]
  %v130 = vld [vmem:[%s0 + $0x344] sm:$0xff]
  %v131 = vld [vmem:[%s0 + $0x34c] sm:$0xff]
  %v132 = vld [vmem:[%s0 + $0x354] sm:$0xff]
  %v133 = vld [vmem:[%s0 + $0x35c] sm:$0xf]
  %v134 = vld [vmem:[%s0 + $0x360] sm:$0xff]
  %v135 = vld [vmem:[%s0 + $0x368] sm:$0xff]
  %v136 = vld [vmem:[%s0 + $0x370] sm:$0xff]
  %v137 = vld [vmem:[%s0 + $0x378] sm:$0xff]
  %v138 = vld [vmem:[%s0 + $0x380] sm:$0xf]
  %v139 = vld [vmem:[%s0 + $0x384] sm:$0xff]
  %v140 = vld [vmem:[%s0 + $0x38c] sm:$0xff]
  %v141 = vld [vmem:[%s0 + $0x394] sm:$0xff]
  %v142 = vld [vmem:[%s0 + $0x39c] sm:$0xff]
  %v143 = vld [vmem:[%s0 + $0x3a4] sm:$0xf]
  %v144 = vld [vmem:[%s0 + $0x3a8] sm:$0xff]
  %v145 = vld [vmem:[%s0 + $0x3b0] sm:$0xff]
  %v146 = vld [vmem:[%s0 + $0x3b8] sm:$0xff]
  %v147 = vld [vmem:[%s0 + $0x3c0] sm:$0xff]
  %v148 = vld [vmem:[%s0 + $0x3c8] sm:$0xf]
  %v149 = vld [vmem:[%s0 + $0x3cc] sm:$0xff]
  %v150 = vld [vmem:[%s0 + $0x3d4] sm:$0xff]
  %v151 = vld [vmem:[%s0 + $0x3dc] sm:$0xff]
  %v152 = vld [vmem:[%s0 + $0x3e4] sm:$0xff]
  %v153 = vld [vmem:[%s0 + $0x3ec] sm:$0xf]
  %v154 = vld [vmem:[%s0 + $0x3f0] sm:$0xff]
  %v155 = vld [vmem:[%s0 + $0x3f8] sm:$0xff]
  %v156 = vld [vmem:[%s0 + $0x400] sm:$0xff]
  %v157 = vld [vmem:[%s0 + $0x408] sm:$0xff]
  %v158 = vld [vmem:[%s0 + $0x410] sm:$0xf]
  %v159 = vld [vmem:[%s0 + $0x414] sm:$0xff]
  %v160 = vld [vmem:[%s0 + $0x41c] sm:$0xff]
  %v161 = vld [vmem:[%s0 + $0x424] sm:$0xff]
  %v162 = vld [vmem:[%s0 + $0x42c] sm:$0xff]
  %v163 = vld [vmem:[%s0 + $0x434] sm:$0xf]
  %v164 = vld [vmem:[%s0 + $0x438] sm:$0xff]
  %v165 = vld [vmem:[%s0 + $0x440] sm:$0xff]
  %v166 = vld [vmem:[%s0 + $0x448] sm:$0xff]
  %v167 = vld [vmem:[%s0 + $0x450] sm:$0xff]
  %v168 = vld [vmem:[%s0 + $0x458] sm:$0xf]
  %v169 = vld [vmem:[%s0 + $0x45c] sm:$0xff]
  %v170 = vld [vmem:[%s0 + $0x464] sm:$0xff]
  %v171 = vld [vmem:[%s0 + $0x46c] sm:$0xff]
  %v172 = vld [vmem:[%s0 + $0x474] sm:$0xff]
  %v173 = vld [vmem:[%s0 + $0x47c] sm:$0xf]
  %v174 = vld [vmem:[%s0 + $0x480] sm:$0xff]
  %v175 = vld [vmem:[%s0 + $0x488] sm:$0xff]
  %v176 = vld [vmem:[%s0 + $0x490] sm:$0xff]
  %v177 = vld [vmem:[%s0 + $0x498] sm:$0xff]
  %v178 = vld [vmem:[%s0 + $0x4a0] sm:$0xf]
  %v179 = vld [vmem:[%s0 + $0x4a4] sm:$0xff]
  %v180 = vld [vmem:[%s0 + $0x4ac] sm:$0xff]
  %v181 = vld [vmem:[%s0 + $0x4b4] sm:$0xff]
  %v182 = vld [vmem:[%s0 + $0x4bc] sm:$0xff]
  %v183 = vld [vmem:[%s0 + $0x4c4] sm:$0xf]
  %v184 = vld [vmem:[%s0 + $0x4c8] sm:$0xff]
  %v185 = vld [vmem:[%s0 + $0x4d0] sm:$0xff]
  %v186 = vld [vmem:[%s0 + $0x4d8] sm:$0xff]
  %v187 = vld [vmem:[%s0 + $0x4e0] sm:$0xff]
  %v188 = vld [vmem:[%s0 + $0x4e8] sm:$0xf]
  %v189 = vld [vmem:[%s0 + $0x4ec] sm:$0xff]
  %v190 = vld [vmem:[%s0 + $0x4f4] sm:$0xff]
  %v191 = vld [vmem:[%s0 + $0x4fc] sm:$0xff]
  %v192 = vld [vmem:[%s0 + $0x504] sm:$0xff]
  %v193 = vld [vmem:[%s0 + $0x50c] sm:$0xf]
  %v194 = vld [vmem:[%s0 + $0x510] sm:$0xff]
  %v195 = vld [vmem:[%s0 + $0x518] sm:$0xff]
  %v196 = vld [vmem:[%s0 + $0x520] sm:$0xff]
  %v197 = vld [vmem:[%s0 + $0x528] sm:$0xff]
  %v198 = vld [vmem:[%s0 + $0x530] sm:$0xf]
  %v199 = vld [vmem:[%s0 + $0x534] sm:$0xff]
  %v200 = vld [vmem:[%s0 + $0x53c] sm:$0xff]
  %v201 = vld [vmem:[%s0 + $0x544] sm:$0xff]
  %v202 = vld [vmem:[%s0 + $0x54c] sm:$0xff]
  %v203 = vld [vmem:[%s0 + $0x554] sm:$0xf]
  %v204 = vld [vmem:[%s0 + $0x558] sm:$0xff]
  %v205 = vld [vmem:[%s0 + $0x560] sm:$0xff]
  %v206 = vld [vmem:[%s0 + $0x568] sm:$0xff]
  %v207 = vld [vmem:[%s0 + $0x570] sm:$0xff]
  %v208 = vld [vmem:[%s0 + $0x578] sm:$0xf]
  %v209 = vld [vmem:[%s0 + $0x57c] sm:$0xff]
  %v210 = vld [vmem:[%s0 + $0x584] sm:$0xff]
  %v211 = vld [vmem:[%s0 + $0x58c] sm:$0xff]
  %v212 = vld [vmem:[%s0 + $0x594] sm:$0xff]
  %v213 = vld [vmem:[%s0 + $0x59c] sm:$0xf]
  %v214 = vld [vmem:[%s0 + $0x5a0] sm:$0xff]
  %v215 = vld [vmem:[%s0 + $0x5a8] sm:$0xff]
  %v216 = vld [vmem:[%s0 + $0x5b0] sm:$0xff]
  %v217 = vld [vmem:[%s0 + $0x5b8] sm:$0xff]
  %v218 = vld [vmem:[%s0 + $0x5c0] sm:$0xf]
  %v219 = vld [vmem:[%s0 + $0x5c4] sm:$0xff]
  %v220 = vld [vmem:[%s0 + $0x5cc] sm:$0xff]
  %v221 = vld [vmem:[%s0 + $0x5d4] sm:$0xff]
  %v222 = vld [vmem:[%s0 + $0x5dc] sm:$0xff]
  %v223 = vld [vmem:[%s0 + $0x5e4] sm:$0xf]
  %v224 = vld [vmem:[%s0 + $0x5e8] sm:$0xff]
  %v225 = vld [vmem:[%s0 + $0x5f0] sm:$0xff]
  %v226 = vld [vmem:[%s0 + $0x5f8] sm:$0xff]
  %v227 = vld [vmem:[%s0 + $0x600] sm:$0xff]
  %v228 = vld [vmem:[%s0 + $0x608] sm:$0xf]
  %v229 = vld [vmem:[%s0 + $0x60c] sm:$0xff]
  %v230 = vld [vmem:[%s0 + $0x614] sm:$0xff]
  %v231 = vld [vmem:[%s0 + $0x61c] sm:$0xff]
  %v232 = vld [vmem:[%s0 + $0x624] sm:$0xff]
  %v233 = vld [vmem:[%s0 + $0x62c] sm:$0xf]
  %v234 = vld [vmem:[%s0 + $0x630] sm:$0xff]
  %v235 = vld [vmem:[%s0 + $0x638] sm:$0xff]
  %v236 = vld [vmem:[%s0 + $0x640] sm:$0xff]
  %v237 = vld [vmem:[%s0 + $0x648] sm:$0xff]
  %v238 = vld [vmem:[%s0 + $0x650] sm:$0xf]
  %v239 = vld [vmem:[%s0 + $0x654] sm:$0xff]
  %v240 = vld [vmem:[%s0 + $0x65c] sm:$0xff]
  %v241 = vld [vmem:[%s0 + $0x664] sm:$0xff]
  %v242 = vld [vmem:[%s0 + $0x66c] sm:$0xff]
  %v243 = vld [vmem:[%s0 + $0x674] sm:$0xf]
  %v244 = vld [vmem:[%s0 + $0x678] sm:$0xff]
  %v245 = vld [vmem:[%s0 + $0x680] sm:$0xff]
  %v246 = vld [vmem:[%s0 + $0x688] sm:$0xff]
  %v247 = vld [vmem:[%s0 + $0x690] sm:$0xff]
  %v248 = vld [vmem:[%s0 + $0x698] sm:$0xf]
  %v249 = vld [vmem:[%s0 + $0x69c] sm:$0xff]
  %v250 = vld [vmem:[%s0 + $0x6a4] sm:$0xff]
  %v251 = vld [vmem:[%s0 + $0x6ac] sm:$0xff]
  %v252 = vld [vmem:[%s0 + $0x6b4] sm:$0xff]
  %v253 = vld [vmem:[%s0 + $0x6bc] sm:$0xf]
  %v254 = vld [vmem:[%s0 + $0x6c0] sm:$0xff]
  %v255 = vld [vmem:[%s0 + $0x6c8] sm:$0xff]
  %v256 = vld [vmem:[%s0 + $0x6d0] sm:$0xff]
  %v257 = vld [vmem:[%s0 + $0x6d8] sm:$0xff]
  %v258 = vld [vmem:[%s0 + $0x6e0] sm:$0xf]
  %v259 = vld [vmem:[%s0 + $0x6e4] sm:$0xff]
  %v260 = vld [vmem:[%s0 + $0x6ec] sm:$0xff]
  %v261 = vld [vmem:[%s0 + $0x6f4] sm:$0xff]
  %v262 = vld [vmem:[%s0 + $0x6fc] sm:$0xff]
  %v263 = vld [vmem:[%s0 + $0x704] sm:$0xf]
  %v264 = vld [vmem:[%s0 + $0x708] sm:$0xff]
  %v265 = vld [vmem:[%s0 + $0x710] sm:$0xff]
  %v266 = vld [vmem:[%s0 + $0x718] sm:$0xff]
  %v267 = vld [vmem:[%s0 + $0x720] sm:$0xff]
  %v268 = vld [vmem:[%s0 + $0x728] sm:$0xf]
  %v269 = vld [vmem:[%s0 + $0x72c] sm:$0xff]
  %v270 = vld [vmem:[%s0 + $0x734] sm:$0xff]
  %v271 = vld [vmem:[%s0 + $0x73c] sm:$0xff]
  %v272 = vld [vmem:[%s0 + $0x744] sm:$0xff]
  %v273 = vld [vmem:[%s0 + $0x74c] sm:$0xf]
  %v274 = vld [vmem:[%s0 + $0x750] sm:$0xff]
  %v275 = vld [vmem:[%s0 + $0x758] sm:$0xff]
  %v276 = vld [vmem:[%s0 + $0x760] sm:$0xff]
  %v277 = vld [vmem:[%s0 + $0x768] sm:$0xff]
  %v278 = vld [vmem:[%s0 + $0x770] sm:$0xf]
  %v279 = vld [vmem:[%s0 + $0x774] sm:$0xff]
  %v280 = vld [vmem:[%s0 + $0x77c] sm:$0xff]
  %v281 = vld [vmem:[%s0 + $0x784] sm:$0xff]
  %v282 = vld [vmem:[%s0 + $0x78c] sm:$0xff]
  %v283 = vld [vmem:[%s0 + $0x794] sm:$0xf]
  %v284 = vld [vmem:[%s0 + $0x798] sm:$0xff]
  %v285 = vld [vmem:[%s0 + $0x7a0] sm:$0xff]
  %v286 = vld [vmem:[%s0 + $0x7a8] sm:$0xff]
  %v287 = vld [vmem:[%s0 + $0x7b0] sm:$0xff]
  %v288 = vld [vmem:[%s0 + $0x7b8] sm:$0xf]
  %v289 = vld [vmem:[%s0 + $0x7bc] sm:$0xff]
  %v290 = vld [vmem:[%s0 + $0x7c4] sm:$0xff]
  %v291 = vld [vmem:[%s0 + $0x7cc] sm:$0xff]
  %v292 = vld [vmem:[%s0 + $0x7d4] sm:$0xff]
  %v293 = vld [vmem:[%s0 + $0x7dc] sm:$0xf]
  %v294 = vld [vmem:[%s0 + $0x7e0] sm:$0xff]
  %v295 = vld [vmem:[%s0 + $0x7e8] sm:$0xff]
  %v296 = vld [vmem:[%s0 + $0x7f0] sm:$0xff]
  %v297 = vld [vmem:[%s0 + $0x7f8] sm:$0xff]
  %v298 = vld [vmem:[%s0 + $0x800] sm:$0xf]
  %v299 = vld [vmem:[%s0 + $0x804] sm:$0xff]
  %v300 = vld [vmem:[%s0 + $0x80c] sm:$0xff]
  %v301 = vld [vmem:[%s0 + $0x814] sm:$0xff]
  %v302 = vld [vmem:[%s0 + $0x81c] sm:$0xff]
  %v303 = vld [vmem:[%s0 + $0x824] sm:$0xf]
  %v304 = vld [vmem:[%s0 + $0x828] sm:$0xff]
  %v305 = vld [vmem:[%s0 + $0x830] sm:$0xff]
  %v306 = vld [vmem:[%s0 + $0x838] sm:$0xff]
  %v307 = vld [vmem:[%s0 + $0x840] sm:$0xff]
  %v308 = vld [vmem:[%s0 + $0x848] sm:$0xf]
  %v309 = vld [vmem:[%s0 + $0x84c] sm:$0xff]
  %v310 = vld [vmem:[%s0 + $0x854] sm:$0xff]
  %v311 = vld [vmem:[%s0 + $0x85c] sm:$0xff]
  %v312 = vld [vmem:[%s0 + $0x864] sm:$0xff]
  %v313 = vld [vmem:[%s0 + $0x86c] sm:$0xf]
  %v314 = vld [vmem:[%s0 + $0x870] sm:$0xff]
  %v315 = vld [vmem:[%s0 + $0x878] sm:$0xff]
  %v316 = vld [vmem:[%s0 + $0x880] sm:$0xff]
  %v317 = vld [vmem:[%s0 + $0x888] sm:$0xff]
  %v318 = vld [vmem:[%s0 + $0x890] sm:$0xf]
  %v319 = vld [vmem:[%s0 + $0x894] sm:$0xff]
  %v320 = vld [vmem:[%s0 + $0x89c] sm:$0xff]
  %v321 = vld [vmem:[%s0 + $0x8a4] sm:$0xff]
  %v322 = vld [vmem:[%s0 + $0x8ac] sm:$0xff]
  %v323 = vld [vmem:[%s0 + $0x8b4] sm:$0xf]
  %v324 = vld [vmem:[%s0 + $0x8b8] sm:$0xff]
  %v325 = vld [vmem:[%s0 + $0x8c0] sm:$0xff]
  %v326 = vld [vmem:[%s0 + $0x8c8] sm:$0xff]
  %v327 = vld [vmem:[%s0 + $0x8d0] sm:$0xff]
  %v328 = vld [vmem:[%s0 + $0x8d8] sm:$0xf]
  %v329 = vld [vmem:[%s0 + $0x8dc] sm:$0xff]
  %v330 = vld [vmem:[%s0 + $0x8e4] sm:$0xff]
  %v331 = vld [vmem:[%s0 + $0x8ec] sm:$0xff]
  %v332 = vld [vmem:[%s0 + $0x8f4] sm:$0xff]
  %v333 = vld [vmem:[%s0 + $0x8fc] sm:$0xf]
  %v334 = vld [vmem:[%s1] sm:$0xf]
  %v335 = vld [vmem:[%s1 + $0x4] sm:$0xf]
  %v336 = vld [vmem:[%s1 + $0x8] sm:$0xf]
  %v337 = vld [vmem:[%s1 + $0xc] sm:$0xf]
  %v338 = vld [vmem:[%s1 + $0x10] sm:$0xf]
  %v339 = vld [vmem:[%s1 + $0x14] sm:$0xf]
  %v340 = vld [vmem:[%s1 + $0x18] sm:$0xf]
  %v341 = vld [vmem:[%s1 + $0x1c] sm:$0xf]
  %v342 = vld [vmem:[%s1 + $0x20] sm:$0xf]
  %v343 = vld [vmem:[%s1 + $0x24] sm:$0xf]
  %v344 = vld [vmem:[%s1 + $0x28] sm:$0xf]
  %v345 = vld [vmem:[%s1 + $0x2c] sm:$0xf]
  %v346 = vld [vmem:[%s1 + $0x30] sm:$0xf]
  %v347 = vld [vmem:[%s1 + $0x34] sm:$0xf]
  %v348 = vld [vmem:[%s1 + $0x38] sm:$0xf]
  %v349 = vld [vmem:[%s1 + $0x3c] sm:$0xf]
  %v350 = vld [vmem:[%s1 + $0x40] sm:$0xf]
  %v351 = vld [vmem:[%s1 + $0x44] sm:$0xf]
  %v352 = vld [vmem:[%s1 + $0x48] sm:$0xf]
  %v353 = vld [vmem:[%s1 + $0x4c] sm:$0xf]
  %v354 = vld [vmem:[%s1 + $0x50] sm:$0xf]
  %v355 = vld [vmem:[%s1 + $0x54] sm:$0xf]
  %v356 = vld [vmem:[%s1 + $0x58] sm:$0xf]
  %v357 = vld [vmem:[%s1 + $0x5c] sm:$0xf]
  %v358 = vld [vmem:[%s1 + $0x60] sm:$0xf]
  %v359 = vld [vmem:[%s1 + $0x64] sm:$0xf]
  %v360 = vld [vmem:[%s1 + $0x68] sm:$0xf]
  %v361 = vld [vmem:[%s1 + $0x6c] sm:$0xf]
  %v362 = vld [vmem:[%s1 + $0x70] sm:$0xf]
  %v363 = vld [vmem:[%s1 + $0x74] sm:$0xf]
  %v364 = vld [vmem:[%s1 + $0x78] sm:$0xf]
  %v365 = vld [vmem:[%s1 + $0x7c] sm:$0xf]
  %v366 = vld [vmem:[%s1 + $0x80] sm:$0xf]
  %v367 = vld [vmem:[%s1 + $0x84] sm:$0xf]
  %v368 = vld [vmem:[%s1 + $0x88] sm:$0xf]
  %v369 = vld [vmem:[%s1 + $0x8c] sm:$0xf]
  %v370 = vld [vmem:[%s1 + $0x90] sm:$0xf]
  %v371 = vld [vmem:[%s1 + $0x94] sm:$0xf]
  %v372 = vld [vmem:[%s1 + $0x98] sm:$0xf]
  %v373 = vld [vmem:[%s1 + $0x9c] sm:$0xf]
  %v374 = vld [vmem:[%s1 + $0xa0] sm:$0xf]
  %v375 = vld [vmem:[%s1 + $0xa4] sm:$0xf]
  %v376 = vld [vmem:[%s1 + $0xa8] sm:$0xf]
  %v377 = vld [vmem:[%s1 + $0xac] sm:$0xf]
  %v378 = vld [vmem:[%s1 + $0xb0] sm:$0xf]
  %v379 = vld [vmem:[%s1 + $0xb4] sm:$0xf]
  %v380 = vld [vmem:[%s1 + $0xb8] sm:$0xf]
  %v381 = vld [vmem:[%s1 + $0xbc] sm:$0xf]
  %v382 = vld [vmem:[%s1 + $0xc0] sm:$0xf]
  %v383 = vld [vmem:[%s1 + $0xc4] sm:$0xf]
  %v384 = vld [vmem:[%s1 + $0xc8] sm:$0xf]
  %v385 = vld [vmem:[%s1 + $0xcc] sm:$0xf]
  %v386 = vld [vmem:[%s1 + $0xd0] sm:$0xf]
  %v387 = vld [vmem:[%s1 + $0xd4] sm:$0xf]
  %v388 = vld [vmem:[%s1 + $0xd8] sm:$0xf]
  %v389 = vld [vmem:[%s1 + $0xdc] sm:$0xf]
  %v390 = vld [vmem:[%s1 + $0xe0] sm:$0xf]
  %v391 = vld [vmem:[%s1 + $0xe4] sm:$0xf]
  %v392 = vld [vmem:[%s1 + $0xe8] sm:$0xf]
  %v393 = vld [vmem:[%s1 + $0xec] sm:$0xf]
  %v394 = vld [vmem:[%s1 + $0xf0] sm:$0xf]
  %v395 = vld [vmem:[%s1 + $0xf4] sm:$0xf]
  %v396 = vld [vmem:[%s1 + $0xf8] sm:$0xf]
  %v397 = vld [vmem:[%s1 + $0xfc] sm:$0xf]
  %v398 = vld [vmem:[%s1 + $0x100] sm:$0xf]
  %v399 = vld [vmem:[%s1 + $0x104] sm:$0xf]
  %v400 = vld [vmem:[%s1 + $0x108] sm:$0xf]
  %v401 = vld [vmem:[%s1 + $0x10c] sm:$0xf]
  %v402 = vld [vmem:[%s1 + $0x110] sm:$0xf]
  %v403 = vld [vmem:[%s1 + $0x114] sm:$0xf]
  %v404 = vld [vmem:[%s1 + $0x118] sm:$0xf]
  %v405 = vld [vmem:[%s1 + $0x11c] sm:$0xf]
  %v406 = vld [vmem:[%s1 + $0x120] sm:$0xf]
  %v407 = vld [vmem:[%s1 + $0x124] sm:$0xf]
  %v408 = vld [vmem:[%s1 + $0x128] sm:$0xf]
  %v409 = vld [vmem:[%s1 + $0x12c] sm:$0xf]
  %v410 = vld [vmem:[%s1 + $0x130] sm:$0xf]
  %v411 = vld [vmem:[%s1 + $0x134] sm:$0xf]
  %v412 = vld [vmem:[%s1 + $0x138] sm:$0xf]
  %v413 = vld [vmem:[%s1 + $0x13c] sm:$0xf]
  %v414 = vld [vmem:[%s1 + $0x140] sm:$0xf]
  %v415 = vld [vmem:[%s1 + $0x144] sm:$0xf]
  %v416 = vld [vmem:[%s1 + $0x148] sm:$0xf]
  %v417 = vld [vmem:[%s1 + $0x14c] sm:$0xf]
  %v418 = vld [vmem:[%s1 + $0x150] sm:$0xf]
  %v419 = vld [vmem:[%s1 + $0x154] sm:$0xf]
  %v420 = vld [vmem:[%s1 + $0x158] sm:$0xf]
  %v421 = vld [vmem:[%s1 + $0x15c] sm:$0xf]
  %v422 = vld [vmem:[%s1 + $0x160] sm:$0xf]
  %v423 = vld [vmem:[%s1 + $0x164] sm:$0xf]
  %v424 = vld [vmem:[%s1 + $0x168] sm:$0xf]
  %v425 = vld [vmem:[%s1 + $0x16c] sm:$0xf]
  %v426 = vld [vmem:[%s1 + $0x170] sm:$0xf]
  %v427 = vld [vmem:[%s1 + $0x174] sm:$0xf]
  %v428 = vld [vmem:[%s1 + $0x178] sm:$0xf]
  %v429 = vld [vmem:[%s1 + $0x17c] sm:$0xf]
  %v430 = vld [vmem:[%s1 + $0x180] sm:$0xf]
  %v431 = vld [vmem:[%s1 + $0x184] sm:$0xf]
  %v432 = vld [vmem:[%s1 + $0x188] sm:$0xf]
  %v433 = vld [vmem:[%s1 + $0x18c] sm:$0xf]
  %v434 = vld [vmem:[%s1 + $0x190] sm:$0xf]
  %v435 = vld [vmem:[%s1 + $0x194] sm:$0xf]
  %v436 = vld [vmem:[%s1 + $0x198] sm:$0xf]
  %v437 = vld [vmem:[%s1 + $0x19c] sm:$0xf]
  %v438 = vld [vmem:[%s1 + $0x1a0] sm:$0xf]
  %v439 = vld [vmem:[%s1 + $0x1a4] sm:$0xf]
  %v440 = vld [vmem:[%s1 + $0x1a8] sm:$0xf]
  %v441 = vld [vmem:[%s1 + $0x1ac] sm:$0xf]
  %v442 = vld [vmem:[%s1 + $0x1b0] sm:$0xf]
  %v443 = vld [vmem:[%s1 + $0x1b4] sm:$0xf]
  %v444 = vld [vmem:[%s1 + $0x1b8] sm:$0xf]
  %v445 = vld [vmem:[%s1 + $0x1bc] sm:$0xf]
  %v446 = vld [vmem:[%s1 + $0x1c0] sm:$0xf]
  %v447 = vld [vmem:[%s1 + $0x1c4] sm:$0xf]
  %v448 = vld [vmem:[%s1 + $0x1c8] sm:$0xf]
  %v449 = vld [vmem:[%s1 + $0x1cc] sm:$0xf]
  %v450 = vld [vmem:[%s1 + $0x1d0] sm:$0xf]
  %v451 = vld [vmem:[%s1 + $0x1d4] sm:$0xf]
  %v452 = vld [vmem:[%s1 + $0x1d8] sm:$0xf]
  %v453 = vld [vmem:[%s1 + $0x1dc] sm:$0xf]
  %v454 = vld [vmem:[%s1 + $0x1e0] sm:$0xf]
  %v455 = vld [vmem:[%s1 + $0x1e4] sm:$0xf]
  %v456 = vld [vmem:[%s1 + $0x1e8] sm:$0xf]
  %v457 = vld [vmem:[%s1 + $0x1ec] sm:$0xf]
  %v458 = vld [vmem:[%s1 + $0x1f0] sm:$0xf]
  %v459 = vld [vmem:[%s1 + $0x1f4] sm:$0xf]
  %v460 = vld [vmem:[%s1 + $0x1f8] sm:$0xf]
  %v461 = vld [vmem:[%s1 + $0x1fc] sm:$0xf]
  %v462 = vld [vmem:[%s1 + $0x200] sm:$0xf]
  %v463 = vld [vmem:[%s1 + $0x204] sm:$0xf]
  %v464 = vld [vmem:[%s1 + $0x208] sm:$0xf]
  %v465 = vld [vmem:[%s1 + $0x20c] sm:$0xf]
  %v466 = vld [vmem:[%s1 + $0x210] sm:$0xf]
  %v467 = vld [vmem:[%s1 + $0x214] sm:$0xf]
  %v468 = vld [vmem:[%s1 + $0x218] sm:$0xf]
  %v469 = vld [vmem:[%s1 + $0x21c] sm:$0xf]
  %v470 = vld [vmem:[%s1 + $0x220] sm:$0xf]
  %v471 = vld [vmem:[%s1 + $0x224] sm:$0xf]
  %v472 = vld [vmem:[%s1 + $0x228] sm:$0xf]
  %v473 = vld [vmem:[%s1 + $0x22c] sm:$0xf]
  %v474 = vld [vmem:[%s1 + $0x230] sm:$0xf]
  %v475 = vld [vmem:[%s1 + $0x234] sm:$0xf]
  %v476 = vld [vmem:[%s1 + $0x238] sm:$0xf]
  %v477 = vld [vmem:[%s1 + $0x23c] sm:$0xf]
  %v798 = vunpack.c.l.b16 %v14
  %v799 = vunpack.c.h.b16 %v14
  %v800 = vunpack.c.l.b16 %v15
  %v801 = vunpack.c.h.b16 %v15
  %v802 = vunpack.c.l.b16 %v16
  %v803 = vunpack.c.h.b16 %v16
  %v804 = vunpack.c.l.b16 %v17
  %v805 = vunpack.c.h.b16 %v17
  %v806 = vunpack.c.l.b16 %v18
  %v807 = vunpack.c.l.b16 %v19
  %v808 = vunpack.c.h.b16 %v19
  %v809 = vunpack.c.l.b16 %v20
  %v810 = vunpack.c.h.b16 %v20
  %v811 = vunpack.c.l.b16 %v21
  %v812 = vunpack.c.h.b16 %v21
  %v813 = vunpack.c.l.b16 %v22
  %v814 = vunpack.c.h.b16 %v22
  %v815 = vunpack.c.l.b16 %v23
  %v816 = vunpack.c.l.b16 %v24
  %v817 = vunpack.c.h.b16 %v24
  %v818 = vunpack.c.l.b16 %v25
  %v819 = vunpack.c.h.b16 %v25
  %v820 = vunpack.c.l.b16 %v26
  %v821 = vunpack.c.h.b16 %v26
  %v822 = vunpack.c.l.b16 %v27
  %v823 = vunpack.c.h.b16 %v27
  %v824 = vunpack.c.l.b16 %v28
  %v825 = vunpack.c.l.b16 %v29
  %v826 = vunpack.c.h.b16 %v29
  %v827 = vunpack.c.l.b16 %v30
  %v828 = vunpack.c.h.b16 %v30
  %v829 = vunpack.c.l.b16 %v31
  %v830 = vunpack.c.h.b16 %v31
  %v831 = vunpack.c.l.b16 %v32
  %v832 = vunpack.c.h.b16 %v32
  %v833 = vunpack.c.l.b16 %v33
  %v834 = vunpack.c.l.b16 %v34
  %v835 = vunpack.c.h.b16 %v34
  %v836 = vunpack.c.l.b16 %v35
  %v837 = vunpack.c.h.b16 %v35
  %v838 = vunpack.c.l.b16 %v36
  %v839 = vunpack.c.h.b16 %v36
  %v840 = vunpack.c.l.b16 %v37
  %v841 = vunpack.c.h.b16 %v37
  %v842 = vunpack.c.l.b16 %v38
  %v843 = vunpack.c.l.b16 %v39
  %v844 = vunpack.c.h.b16 %v39
  %v845 = vunpack.c.l.b16 %v40
  %v846 = vunpack.c.h.b16 %v40
  %v847 = vunpack.c.l.b16 %v41
  %v848 = vunpack.c.h.b16 %v41
  %v849 = vunpack.c.l.b16 %v42
  %v850 = vunpack.c.h.b16 %v42
  %v851 = vunpack.c.l.b16 %v43
  %v852 = vunpack.c.l.b16 %v44
  %v853 = vunpack.c.h.b16 %v44
  %v854 = vunpack.c.l.b16 %v45
  %v855 = vunpack.c.h.b16 %v45
  %v856 = vunpack.c.l.b16 %v46
  %v857 = vunpack.c.h.b16 %v46
  %v858 = vunpack.c.l.b16 %v47
  %v859 = vunpack.c.h.b16 %v47
  %v860 = vunpack.c.l.b16 %v48
  %v861 = vunpack.c.l.b16 %v49
  %v862 = vunpack.c.h.b16 %v49
  %v863 = vunpack.c.l.b16 %v50
  %v864 = vunpack.c.h.b16 %v50
  %v865 = vunpack.c.l.b16 %v51
  %v866 = vunpack.c.h.b16 %v51
  %v867 = vunpack.c.l.b16 %v52
  %v868 = vunpack.c.h.b16 %v52
  %v869 = vunpack.c.l.b16 %v53
  %v870 = vunpack.c.l.b16 %v54
  %v871 = vunpack.c.h.b16 %v54
  %v872 = vunpack.c.l.b16 %v55
  %v873 = vunpack.c.h.b16 %v55
  %v874 = vunpack.c.l.b16 %v56
  %v875 = vunpack.c.h.b16 %v56
  %v876 = vunpack.c.l.b16 %v57
  %v877 = vunpack.c.h.b16 %v57
  %v878 = vunpack.c.l.b16 %v58
  %v879 = vunpack.c.l.b16 %v59
  %v880 = vunpack.c.h.b16 %v59
  %v881 = vunpack.c.l.b16 %v60
  %v882 = vunpack.c.h.b16 %v60
  %v883 = vunpack.c.l.b16 %v61
  %v884 = vunpack.c.h.b16 %v61
  %v885 = vunpack.c.l.b16 %v62
  %v886 = vunpack.c.h.b16 %v62
  %v887 = vunpack.c.l.b16 %v63
  %v888 = vunpack.c.l.b16 %v64
  %v889 = vunpack.c.h.b16 %v64
  %v890 = vunpack.c.l.b16 %v65
  %v891 = vunpack.c.h.b16 %v65
  %v892 = vunpack.c.l.b16 %v66
  %v893 = vunpack.c.h.b16 %v66
  %v894 = vunpack.c.l.b16 %v67
  %v895 = vunpack.c.h.b16 %v67
  %v896 = vunpack.c.l.b16 %v68
  %v897 = vunpack.c.l.b16 %v69
  %v898 = vunpack.c.h.b16 %v69
  %v899 = vunpack.c.l.b16 %v70
  %v900 = vunpack.c.h.b16 %v70
  %v901 = vunpack.c.l.b16 %v71
  %v902 = vunpack.c.h.b16 %v71
  %v903 = vunpack.c.l.b16 %v72
  %v904 = vunpack.c.h.b16 %v72
  %v905 = vunpack.c.l.b16 %v73
  %v906 = vunpack.c.l.b16 %v74
  %v907 = vunpack.c.h.b16 %v74
  %v908 = vunpack.c.l.b16 %v75
  %v909 = vunpack.c.h.b16 %v75
  %v910 = vunpack.c.l.b16 %v76
  %v911 = vunpack.c.h.b16 %v76
  %v912 = vunpack.c.l.b16 %v77
  %v913 = vunpack.c.h.b16 %v77
  %v914 = vunpack.c.l.b16 %v78
  %v915 = vunpack.c.l.b16 %v79
  %v916 = vunpack.c.h.b16 %v79
  %v917 = vunpack.c.l.b16 %v80
  %v918 = vunpack.c.h.b16 %v80
  %v919 = vunpack.c.l.b16 %v81
  %v920 = vunpack.c.h.b16 %v81
  %v921 = vunpack.c.l.b16 %v82
  %v922 = vunpack.c.h.b16 %v82
  %v923 = vunpack.c.l.b16 %v83
  %v924 = vunpack.c.l.b16 %v84
  %v925 = vunpack.c.h.b16 %v84
  %v926 = vunpack.c.l.b16 %v85
  %v927 = vunpack.c.h.b16 %v85
  %v928 = vunpack.c.l.b16 %v86
  %v929 = vunpack.c.h.b16 %v86
  %v930 = vunpack.c.l.b16 %v87
  %v931 = vunpack.c.h.b16 %v87
  %v932 = vunpack.c.l.b16 %v88
  %v933 = vunpack.c.l.b16 %v89
  %v934 = vunpack.c.h.b16 %v89
  %v935 = vunpack.c.l.b16 %v90
  %v936 = vunpack.c.h.b16 %v90
  %v937 = vunpack.c.l.b16 %v91
  %v938 = vunpack.c.h.b16 %v91
  %v939 = vunpack.c.l.b16 %v92
  %v940 = vunpack.c.h.b16 %v92
  %v941 = vunpack.c.l.b16 %v93
  %v942 = vunpack.c.l.b16 %v94
  %v943 = vunpack.c.h.b16 %v94
  %v944 = vunpack.c.l.b16 %v95
  %v945 = vunpack.c.h.b16 %v95
  %v946 = vunpack.c.l.b16 %v96
  %v947 = vunpack.c.h.b16 %v96
  %v948 = vunpack.c.l.b16 %v97
  %v949 = vunpack.c.h.b16 %v97
  %v950 = vunpack.c.l.b16 %v98
  %v951 = vunpack.c.l.b16 %v99
  %v952 = vunpack.c.h.b16 %v99
  %v953 = vunpack.c.l.b16 %v100
  %v954 = vunpack.c.h.b16 %v100
  %v955 = vunpack.c.l.b16 %v101
  %v956 = vunpack.c.h.b16 %v101
  %v957 = vunpack.c.l.b16 %v102
  %v958 = vunpack.c.h.b16 %v102
  %v959 = vunpack.c.l.b16 %v103
  %v960 = vunpack.c.l.b16 %v104
  %v961 = vunpack.c.h.b16 %v104
  %v962 = vunpack.c.l.b16 %v105
  %v963 = vunpack.c.h.b16 %v105
  %v964 = vunpack.c.l.b16 %v106
  %v965 = vunpack.c.h.b16 %v106
  %v966 = vunpack.c.l.b16 %v107
  %v967 = vunpack.c.h.b16 %v107
  %v968 = vunpack.c.l.b16 %v108
  %v969 = vunpack.c.l.b16 %v109
  %v970 = vunpack.c.h.b16 %v109
  %v971 = vunpack.c.l.b16 %v110
  %v972 = vunpack.c.h.b16 %v110
  %v973 = vunpack.c.l.b16 %v111
  %v974 = vunpack.c.h.b16 %v111
  %v975 = vunpack.c.l.b16 %v112
  %v976 = vunpack.c.h.b16 %v112
  %v977 = vunpack.c.l.b16 %v113
  %v978 = vunpack.c.l.b16 %v114
  %v979 = vunpack.c.h.b16 %v114
  %v980 = vunpack.c.l.b16 %v115
  %v981 = vunpack.c.h.b16 %v115
  %v982 = vunpack.c.l.b16 %v116
  %v983 = vunpack.c.h.b16 %v116
  %v984 = vunpack.c.l.b16 %v117
  %v985 = vunpack.c.h.b16 %v117
  %v986 = vunpack.c.l.b16 %v118
  %v987 = vunpack.c.l.b16 %v119
  %v988 = vunpack.c.h.b16 %v119
  %v989 = vunpack.c.l.b16 %v120
  %v990 = vunpack.c.h.b16 %v120
  %v991 = vunpack.c.l.b16 %v121
  %v992 = vunpack.c.h.b16 %v121
  %v993 = vunpack.c.l.b16 %v122
  %v994 = vunpack.c.h.b16 %v122
  %v995 = vunpack.c.l.b16 %v123
  %v996 = vunpack.c.l.b16 %v124
  %v997 = vunpack.c.h.b16 %v124
  %v998 = vunpack.c.l.b16 %v125
  %v999 = vunpack.c.h.b16 %v125
  %v1000 = vunpack.c.l.b16 %v126
  %v1001 = vunpack.c.h.b16 %v126
  %v1002 = vunpack.c.l.b16 %v127
  %v1003 = vunpack.c.h.b16 %v127
  %v1004 = vunpack.c.l.b16 %v128
  %v1005 = vunpack.c.l.b16 %v129
  %v1006 = vunpack.c.h.b16 %v129
  %v1007 = vunpack.c.l.b16 %v130
  %v1008 = vunpack.c.h.b16 %v130
  %v1009 = vunpack.c.l.b16 %v131
  %v1010 = vunpack.c.h.b16 %v131
  %v1011 = vunpack.c.l.b16 %v132
  %v1012 = vunpack.c.h.b16 %v132
  %v1013 = vunpack.c.l.b16 %v133
  %v1014 = vunpack.c.l.b16 %v134
  %v1015 = vunpack.c.h.b16 %v134
  %v1016 = vunpack.c.l.b16 %v135
  %v1017 = vunpack.c.h.b16 %v135
  %v1018 = vunpack.c.l.b16 %v136
  %v1019 = vunpack.c.h.b16 %v136
  %v1020 = vunpack.c.l.b16 %v137
  %v1021 = vunpack.c.h.b16 %v137
  %v1022 = vunpack.c.l.b16 %v138
  %v1023 = vunpack.c.l.b16 %v139
  %v1024 = vunpack.c.h.b16 %v139
  %v1025 = vunpack.c.l.b16 %v140
  %v1026 = vunpack.c.h.b16 %v140
  %v1027 = vunpack.c.l.b16 %v141
  %v1028 = vunpack.c.h.b16 %v141
  %v1029 = vunpack.c.l.b16 %v142
  %v1030 = vunpack.c.h.b16 %v142
  %v1031 = vunpack.c.l.b16 %v143
  %v1032 = vunpack.c.l.b16 %v144
  %v1033 = vunpack.c.h.b16 %v144
  %v1034 = vunpack.c.l.b16 %v145
  %v1035 = vunpack.c.h.b16 %v145
  %v1036 = vunpack.c.l.b16 %v146
  %v1037 = vunpack.c.h.b16 %v146
  %v1038 = vunpack.c.l.b16 %v147
  %v1039 = vunpack.c.h.b16 %v147
  %v1040 = vunpack.c.l.b16 %v148
  %v1041 = vunpack.c.l.b16 %v149
  %v1042 = vunpack.c.h.b16 %v149
  %v1043 = vunpack.c.l.b16 %v150
  %v1044 = vunpack.c.h.b16 %v150
  %v1045 = vunpack.c.l.b16 %v151
  %v1046 = vunpack.c.h.b16 %v151
  %v1047 = vunpack.c.l.b16 %v152
  %v1048 = vunpack.c.h.b16 %v152
  %v1049 = vunpack.c.l.b16 %v153
  %v1050 = vunpack.c.l.b16 %v154
  %v1051 = vunpack.c.h.b16 %v154
  %v1052 = vunpack.c.l.b16 %v155
  %v1053 = vunpack.c.h.b16 %v155
  %v1054 = vunpack.c.l.b16 %v156
  %v1055 = vunpack.c.h.b16 %v156
  %v1056 = vunpack.c.l.b16 %v157
  %v1057 = vunpack.c.h.b16 %v157
  %v1058 = vunpack.c.l.b16 %v158
  %v1059 = vunpack.c.l.b16 %v159
  %v1060 = vunpack.c.h.b16 %v159
  %v1061 = vunpack.c.l.b16 %v160
  %v1062 = vunpack.c.h.b16 %v160
  %v1063 = vunpack.c.l.b16 %v161
  %v1064 = vunpack.c.h.b16 %v161
  %v1065 = vunpack.c.l.b16 %v162
  %v1066 = vunpack.c.h.b16 %v162
  %v1067 = vunpack.c.l.b16 %v163
  %v1068 = vunpack.c.l.b16 %v164
  %v1069 = vunpack.c.h.b16 %v164
  %v1070 = vunpack.c.l.b16 %v165
  %v1071 = vunpack.c.h.b16 %v165
  %v1072 = vunpack.c.l.b16 %v166
  %v1073 = vunpack.c.h.b16 %v166
  %v1074 = vunpack.c.l.b16 %v167
  %v1075 = vunpack.c.h.b16 %v167
  %v1076 = vunpack.c.l.b16 %v168
  %v1077 = vunpack.c.l.b16 %v169
  %v1078 = vunpack.c.h.b16 %v169
  %v1079 = vunpack.c.l.b16 %v170
  %v1080 = vunpack.c.h.b16 %v170
  %v1081 = vunpack.c.l.b16 %v171
  %v1082 = vunpack.c.h.b16 %v171
  %v1083 = vunpack.c.l.b16 %v172
  %v1084 = vunpack.c.h.b16 %v172
  %v1085 = vunpack.c.l.b16 %v173
  %v1086 = vunpack.c.l.b16 %v174
  %v1087 = vunpack.c.h.b16 %v174
  %v1088 = vunpack.c.l.b16 %v175
  %v1089 = vunpack.c.h.b16 %v175
  %v1090 = vunpack.c.l.b16 %v176
  %v1091 = vunpack.c.h.b16 %v176
  %v1092 = vunpack.c.l.b16 %v177
  %v1093 = vunpack.c.h.b16 %v177
  %v1094 = vunpack.c.l.b16 %v178
  %v1095 = vunpack.c.l.b16 %v179
  %v1096 = vunpack.c.h.b16 %v179
  %v1097 = vunpack.c.l.b16 %v180
  %v1098 = vunpack.c.h.b16 %v180
  %v1099 = vunpack.c.l.b16 %v181
  %v1100 = vunpack.c.h.b16 %v181
  %v1101 = vunpack.c.l.b16 %v182
  %v1102 = vunpack.c.h.b16 %v182
  %v1103 = vunpack.c.l.b16 %v183
  %v1104 = vunpack.c.l.b16 %v184
  %v1105 = vunpack.c.h.b16 %v184
  %v1106 = vunpack.c.l.b16 %v185
  %v1107 = vunpack.c.h.b16 %v185
  %v1108 = vunpack.c.l.b16 %v186
  %v1109 = vunpack.c.h.b16 %v186
  %v1110 = vunpack.c.l.b16 %v187
  %v1111 = vunpack.c.h.b16 %v187
  %v1112 = vunpack.c.l.b16 %v188
  %v1113 = vunpack.c.l.b16 %v189
  %v1114 = vunpack.c.h.b16 %v189
  %v1115 = vunpack.c.l.b16 %v190
  %v1116 = vunpack.c.h.b16 %v190
  %v1117 = vunpack.c.l.b16 %v191
  %v1118 = vunpack.c.h.b16 %v191
  %v1119 = vunpack.c.l.b16 %v192
  %v1120 = vunpack.c.h.b16 %v192
  %v1121 = vunpack.c.l.b16 %v193
  %v1122 = vunpack.c.l.b16 %v194
  %v1123 = vunpack.c.h.b16 %v194
  %v1124 = vunpack.c.l.b16 %v195
  %v1125 = vunpack.c.h.b16 %v195
  %v1126 = vunpack.c.l.b16 %v196
  %v1127 = vunpack.c.h.b16 %v196
  %v1128 = vunpack.c.l.b16 %v197
  %v1129 = vunpack.c.h.b16 %v197
  %v1130 = vunpack.c.l.b16 %v198
  %v1131 = vunpack.c.l.b16 %v199
  %v1132 = vunpack.c.h.b16 %v199
  %v1133 = vunpack.c.l.b16 %v200
  %v1134 = vunpack.c.h.b16 %v200
  %v1135 = vunpack.c.l.b16 %v201
  %v1136 = vunpack.c.h.b16 %v201
  %v1137 = vunpack.c.l.b16 %v202
  %v1138 = vunpack.c.h.b16 %v202
  %v1139 = vunpack.c.l.b16 %v203
  %v1140 = vunpack.c.l.b16 %v204
  %v1141 = vunpack.c.h.b16 %v204
  %v1142 = vunpack.c.l.b16 %v205
  %v1143 = vunpack.c.h.b16 %v205
  %v1144 = vunpack.c.l.b16 %v206
  %v1145 = vunpack.c.h.b16 %v206
  %v1146 = vunpack.c.l.b16 %v207
  %v1147 = vunpack.c.h.b16 %v207
  %v1148 = vunpack.c.l.b16 %v208
  %v1149 = vunpack.c.l.b16 %v209
  %v1150 = vunpack.c.h.b16 %v209
  %v1151 = vunpack.c.l.b16 %v210
  %v1152 = vunpack.c.h.b16 %v210
  %v1153 = vunpack.c.l.b16 %v211
  %v1154 = vunpack.c.h.b16 %v211
  %v1155 = vunpack.c.l.b16 %v212
  %v1156 = vunpack.c.h.b16 %v212
  %v1157 = vunpack.c.l.b16 %v213
  %v1158 = vunpack.c.l.b16 %v214
  %v1159 = vunpack.c.h.b16 %v214
  %v1160 = vunpack.c.l.b16 %v215
  %v1161 = vunpack.c.h.b16 %v215
  %v1162 = vunpack.c.l.b16 %v216
  %v1163 = vunpack.c.h.b16 %v216
  %v1164 = vunpack.c.l.b16 %v217
  %v1165 = vunpack.c.h.b16 %v217
  %v1166 = vunpack.c.l.b16 %v218
  %v1167 = vunpack.c.l.b16 %v219
  %v1168 = vunpack.c.h.b16 %v219
  %v1169 = vunpack.c.l.b16 %v220
  %v1170 = vunpack.c.h.b16 %v220
  %v1171 = vunpack.c.l.b16 %v221
  %v1172 = vunpack.c.h.b16 %v221
  %v1173 = vunpack.c.l.b16 %v222
  %v1174 = vunpack.c.h.b16 %v222
  %v1175 = vunpack.c.l.b16 %v223
  %v1176 = vunpack.c.l.b16 %v224
  %v1177 = vunpack.c.h.b16 %v224
  %v1178 = vunpack.c.l.b16 %v225
  %v1179 = vunpack.c.h.b16 %v225
  %v1180 = vunpack.c.l.b16 %v226
  %v1181 = vunpack.c.h.b16 %v226
  %v1182 = vunpack.c.l.b16 %v227
  %v1183 = vunpack.c.h.b16 %v227
  %v1184 = vunpack.c.l.b16 %v228
  %v1185 = vunpack.c.l.b16 %v229
  %v1186 = vunpack.c.h.b16 %v229
  %v1187 = vunpack.c.l.b16 %v230
  %v1188 = vunpack.c.h.b16 %v230
  %v1189 = vunpack.c.l.b16 %v231
  %v1190 = vunpack.c.h.b16 %v231
  %v1191 = vunpack.c.l.b16 %v232
  %v1192 = vunpack.c.h.b16 %v232
  %v1193 = vunpack.c.l.b16 %v233
  %v1194 = vunpack.c.l.b16 %v234
  %v1195 = vunpack.c.h.b16 %v234
  %v1196 = vunpack.c.l.b16 %v235
  %v1197 = vunpack.c.h.b16 %v235
  %v1198 = vunpack.c.l.b16 %v236
  %v1199 = vunpack.c.h.b16 %v236
  %v1200 = vunpack.c.l.b16 %v237
  %v1201 = vunpack.c.h.b16 %v237
  %v1202 = vunpack.c.l.b16 %v238
  %v1203 = vunpack.c.l.b16 %v239
  %v1204 = vunpack.c.h.b16 %v239
  %v1205 = vunpack.c.l.b16 %v240
  %v1206 = vunpack.c.h.b16 %v240
  %v1207 = vunpack.c.l.b16 %v241
  %v1208 = vunpack.c.h.b16 %v241
  %v1209 = vunpack.c.l.b16 %v242
  %v1210 = vunpack.c.h.b16 %v242
  %v1211 = vunpack.c.l.b16 %v243
  %v1212 = vunpack.c.l.b16 %v244
  %v1213 = vunpack.c.h.b16 %v244
  %v1214 = vunpack.c.l.b16 %v245
  %v1215 = vunpack.c.h.b16 %v245
  %v1216 = vunpack.c.l.b16 %v246
  %v1217 = vunpack.c.h.b16 %v246
  %v1218 = vunpack.c.l.b16 %v247
  %v1219 = vunpack.c.h.b16 %v247
  %v1220 = vunpack.c.l.b16 %v248
  %v1221 = vunpack.c.l.b16 %v249
  %v1222 = vunpack.c.h.b16 %v249
  %v1223 = vunpack.c.l.b16 %v250
  %v1224 = vunpack.c.h.b16 %v250
  %v1225 = vunpack.c.l.b16 %v251
  %v1226 = vunpack.c.h.b16 %v251
  %v1227 = vunpack.c.l.b16 %v252
  %v1228 = vunpack.c.h.b16 %v252
  %v1229 = vunpack.c.l.b16 %v253
  %v1230 = vunpack.c.l.b16 %v254
  %v1231 = vunpack.c.h.b16 %v254
  %v1232 = vunpack.c.l.b16 %v255
  %v1233 = vunpack.c.h.b16 %v255
  %v1234 = vunpack.c.l.b16 %v256
  %v1235 = vunpack.c.h.b16 %v256
  %v1236 = vunpack.c.l.b16 %v257
  %v1237 = vunpack.c.h.b16 %v257
  %v1238 = vunpack.c.l.b16 %v258
  %v1239 = vunpack.c.l.b16 %v259
  %v1240 = vunpack.c.h.b16 %v259
  %v1241 = vunpack.c.l.b16 %v260
  %v1242 = vunpack.c.h.b16 %v260
  %v1243 = vunpack.c.l.b16 %v261
  %v1244 = vunpack.c.h.b16 %v261
  %v1245 = vunpack.c.l.b16 %v262
  %v1246 = vunpack.c.h.b16 %v262
  %v1247 = vunpack.c.l.b16 %v263
  %v1248 = vunpack.c.l.b16 %v264
  %v1249 = vunpack.c.h.b16 %v264
  %v1250 = vunpack.c.l.b16 %v265
  %v1251 = vunpack.c.h.b16 %v265
  %v1252 = vunpack.c.l.b16 %v266
  %v1253 = vunpack.c.h.b16 %v266
  %v1254 = vunpack.c.l.b16 %v267
  %v1255 = vunpack.c.h.b16 %v267
  %v1256 = vunpack.c.l.b16 %v268
  %v1257 = vunpack.c.l.b16 %v269
  %v1258 = vunpack.c.h.b16 %v269
  %v1259 = vunpack.c.l.b16 %v270
  %v1260 = vunpack.c.h.b16 %v270
  %v1261 = vunpack.c.l.b16 %v271
  %v1262 = vunpack.c.h.b16 %v271
  %v1263 = vunpack.c.l.b16 %v272
  %v1264 = vunpack.c.h.b16 %v272
  %v1265 = vunpack.c.l.b16 %v273
  %v1266 = vunpack.c.l.b16 %v274
  %v1267 = vunpack.c.h.b16 %v274
  %v1268 = vunpack.c.l.b16 %v275
  %v1269 = vunpack.c.h.b16 %v275
  %v1270 = vunpack.c.l.b16 %v276
  %v1271 = vunpack.c.h.b16 %v276
  %v1272 = vunpack.c.l.b16 %v277
  %v1273 = vunpack.c.h.b16 %v277
  %v1274 = vunpack.c.l.b16 %v278
  %v1275 = vunpack.c.l.b16 %v279
  %v1276 = vunpack.c.h.b16 %v279
  %v1277 = vunpack.c.l.b16 %v280
  %v1278 = vunpack.c.h.b16 %v280
  %v1279 = vunpack.c.l.b16 %v281
  %v1280 = vunpack.c.h.b16 %v281
  %v1281 = vunpack.c.l.b16 %v282
  %v1282 = vunpack.c.h.b16 %v282
  %v1283 = vunpack.c.l.b16 %v283
  %v1284 = vunpack.c.l.b16 %v284
  %v1285 = vunpack.c.h.b16 %v284
  %v1286 = vunpack.c.l.b16 %v285
  %v1287 = vunpack.c.h.b16 %v285
  %v1288 = vunpack.c.l.b16 %v286
  %v1289 = vunpack.c.h.b16 %v286
  %v1290 = vunpack.c.l.b16 %v287
  %v1291 = vunpack.c.h.b16 %v287
  %v1292 = vunpack.c.l.b16 %v288
  %v1293 = vunpack.c.l.b16 %v289
  %v1294 = vunpack.c.h.b16 %v289
  %v1295 = vunpack.c.l.b16 %v290
  %v1296 = vunpack.c.h.b16 %v290
  %v1297 = vunpack.c.l.b16 %v291
  %v1298 = vunpack.c.h.b16 %v291
  %v1299 = vunpack.c.l.b16 %v292
  %v1300 = vunpack.c.h.b16 %v292
  %v1301 = vunpack.c.l.b16 %v293
  %v1302 = vunpack.c.l.b16 %v294
  %v1303 = vunpack.c.h.b16 %v294
  %v1304 = vunpack.c.l.b16 %v295
  %v1305 = vunpack.c.h.b16 %v295
  %v1306 = vunpack.c.l.b16 %v296
  %v1307 = vunpack.c.h.b16 %v296
  %v1308 = vunpack.c.l.b16 %v297
  %v1309 = vunpack.c.h.b16 %v297
  %v1310 = vunpack.c.l.b16 %v298
  %v1311 = vunpack.c.l.b16 %v299
  %v1312 = vunpack.c.h.b16 %v299
  %v1313 = vunpack.c.l.b16 %v300
  %v1314 = vunpack.c.h.b16 %v300
  %v1315 = vunpack.c.l.b16 %v301
  %v1316 = vunpack.c.h.b16 %v301
  %v1317 = vunpack.c.l.b16 %v302
  %v1318 = vunpack.c.h.b16 %v302
  %v1319 = vunpack.c.l.b16 %v303
  %v1320 = vunpack.c.l.b16 %v304
  %v1321 = vunpack.c.h.b16 %v304
  %v1322 = vunpack.c.l.b16 %v305
  %v1323 = vunpack.c.h.b16 %v305
  %v1324 = vunpack.c.l.b16 %v306
  %v1325 = vunpack.c.h.b16 %v306
  %v1326 = vunpack.c.l.b16 %v307
  %v1327 = vunpack.c.h.b16 %v307
  %v1328 = vunpack.c.l.b16 %v308
  %v1329 = vunpack.c.l.b16 %v309
  %v1330 = vunpack.c.h.b16 %v309
  %v1331 = vunpack.c.l.b16 %v310
  %v1332 = vunpack.c.h.b16 %v310
  %v1333 = vunpack.c.l.b16 %v311
  %v1334 = vunpack.c.h.b16 %v311
  %v1335 = vunpack.c.l.b16 %v312
  %v1336 = vunpack.c.h.b16 %v312
  %v1337 = vunpack.c.l.b16 %v313
  %v1338 = vunpack.c.l.b16 %v314
  %v1339 = vunpack.c.h.b16 %v314
  %v1340 = vunpack.c.l.b16 %v315
  %v1341 = vunpack.c.h.b16 %v315
  %v1342 = vunpack.c.l.b16 %v316
  %v1343 = vunpack.c.h.b16 %v316
  %v1344 = vunpack.c.l.b16 %v317
  %v1345 = vunpack.c.h.b16 %v317
  %v1346 = vunpack.c.l.b16 %v318
  %v1347 = vunpack.c.l.b16 %v319
  %v1348 = vunpack.c.h.b16 %v319
  %v1349 = vunpack.c.l.b16 %v320
  %v1350 = vunpack.c.h.b16 %v320
  %v1351 = vunpack.c.l.b16 %v321
  %v1352 = vunpack.c.h.b16 %v321
  %v1353 = vunpack.c.l.b16 %v322
  %v1354 = vunpack.c.h.b16 %v322
  %v1355 = vunpack.c.l.b16 %v323
  %v1356 = vunpack.c.l.b16 %v324
  %v1357 = vunpack.c.h.b16 %v324
  %v1358 = vunpack.c.l.b16 %v325
  %v1359 = vunpack.c.h.b16 %v325
  %v1360 = vunpack.c.l.b16 %v326
  %v1361 = vunpack.c.h.b16 %v326
  %v1362 = vunpack.c.l.b16 %v327
  %v1363 = vunpack.c.h.b16 %v327
  %v1364 = vunpack.c.l.b16 %v328
  %v1365 = vunpack.c.l.b16 %v329
  %v1366 = vunpack.c.h.b16 %v329
  %v1367 = vunpack.c.l.b16 %v330
  %v1368 = vunpack.c.h.b16 %v330
  %v1369 = vunpack.c.l.b16 %v331
  %v1370 = vunpack.c.h.b16 %v331
  %v1371 = vunpack.c.l.b16 %v332
  %v1372 = vunpack.c.h.b16 %v332
  %v1373 = vunpack.c.l.b16 %v333
  %v1374 = vpack.c.b16 %v807, %v798
  %v1375 = vpack.c.b16 %v808, %v799
  %v1376 = vpack.c.b16 %v809, %v800
  %v1377 = vpack.c.b16 %v810, %v801
  %v1378 = vpack.c.b16 %v811, %v802
  %v1379 = vpack.c.b16 %v812, %v803
  %v1380 = vpack.c.b16 %v813, %v804
  %v1381 = vpack.c.b16 %v814, %v805
  %v1382 = vpack.c.b16 %v815, %v806
  %v1383 = vpack.c.b16 %v825, %v816
  %v1384 = vpack.c.b16 %v826, %v817
  %v1385 = vpack.c.b16 %v827, %v818
  %v1386 = vpack.c.b16 %v828, %v819
  %v1387 = vpack.c.b16 %v829, %v820
  %v1388 = vpack.c.b16 %v830, %v821
  %v1389 = vpack.c.b16 %v831, %v822
  %v1390 = vpack.c.b16 %v832, %v823
  %v1391 = vpack.c.b16 %v833, %v824
  %v1392 = vpack.c.b16 %v843, %v834
  %v1393 = vpack.c.b16 %v844, %v835
  %v1394 = vpack.c.b16 %v845, %v836
  %v1395 = vpack.c.b16 %v846, %v837
  %v1396 = vpack.c.b16 %v847, %v838
  %v1397 = vpack.c.b16 %v848, %v839
  %v1398 = vpack.c.b16 %v849, %v840
  %v1399 = vpack.c.b16 %v850, %v841
  %v1400 = vpack.c.b16 %v851, %v842
  %v1401 = vpack.c.b16 %v861, %v852
  %v1402 = vpack.c.b16 %v862, %v853
  %v1403 = vpack.c.b16 %v863, %v854
  %v1404 = vpack.c.b16 %v864, %v855
  %v1405 = vpack.c.b16 %v865, %v856
  %v1406 = vpack.c.b16 %v866, %v857
  %v1407 = vpack.c.b16 %v867, %v858
  %v1408 = vpack.c.b16 %v868, %v859
  %v1409 = vpack.c.b16 %v869, %v860
  %v1410 = vpack.c.b16 %v879, %v870
  %v1411 = vpack.c.b16 %v880, %v871
  %v1412 = vpack.c.b16 %v881, %v872
  %v1413 = vpack.c.b16 %v882, %v873
  %v1414 = vpack.c.b16 %v883, %v874
  %v1415 = vpack.c.b16 %v884, %v875
  %v1416 = vpack.c.b16 %v885, %v876
  %v1417 = vpack.c.b16 %v886, %v877
  %v1418 = vpack.c.b16 %v887, %v878
  %v1419 = vpack.c.b16 %v897, %v888
  %v1420 = vpack.c.b16 %v898, %v889
  %v1421 = vpack.c.b16 %v899, %v890
  %v1422 = vpack.c.b16 %v900, %v891
  %v1423 = vpack.c.b16 %v901, %v892
  %v1424 = vpack.c.b16 %v902, %v893
  %v1425 = vpack.c.b16 %v903, %v894
  %v1426 = vpack.c.b16 %v904, %v895
  %v1427 = vpack.c.b16 %v905, %v896
  %v1428 = vpack.c.b16 %v915, %v906
  %v1429 = vpack.c.b16 %v916, %v907
  %v1430 = vpack.c.b16 %v917, %v908
  %v1431 = vpack.c.b16 %v918, %v909
  %v1432 = vpack.c.b16 %v919, %v910
  %v1433 = vpack.c.b16 %v920, %v911
  %v1434 = vpack.c.b16 %v921, %v912
  %v1435 = vpack.c.b16 %v922, %v913
  %v1436 = vpack.c.b16 %v923, %v914
  %v1437 = vpack.c.b16 %v933, %v924
  %v1438 = vpack.c.b16 %v934, %v925
  %v1439 = vpack.c.b16 %v935, %v926
  %v1440 = vpack.c.b16 %v936, %v927
  %v1441 = vpack.c.b16 %v937, %v928
  %v1442 = vpack.c.b16 %v938, %v929
  %v1443 = vpack.c.b16 %v939, %v930
  %v1444 = vpack.c.b16 %v940, %v931
  %v1445 = vpack.c.b16 %v941, %v932
  %v1446 = vpack.c.b16 %v951, %v942
  %v1447 = vpack.c.b16 %v952, %v943
  %v1448 = vpack.c.b16 %v953, %v944
  %v1449 = vpack.c.b16 %v954, %v945
  %v1450 = vpack.c.b16 %v955, %v946
  %v1451 = vpack.c.b16 %v956, %v947
  %v1452 = vpack.c.b16 %v957, %v948
  %v1453 = vpack.c.b16 %v958, %v949
  %v1454 = vpack.c.b16 %v959, %v950
  %v1455 = vpack.c.b16 %v969, %v960
  %v1456 = vpack.c.b16 %v970, %v961
  %v1457 = vpack.c.b16 %v971, %v962
  %v1458 = vpack.c.b16 %v972, %v963
  %v1459 = vpack.c.b16 %v973, %v964
  %v1460 = vpack.c.b16 %v974, %v965
  %v1461 = vpack.c.b16 %v975, %v966
  %v1462 = vpack.c.b16 %v976, %v967
  %v1463 = vpack.c.b16 %v977, %v968
  %v1464 = vpack.c.b16 %v987, %v978
  %v1465 = vpack.c.b16 %v988, %v979
  %v1466 = vpack.c.b16 %v989, %v980
  %v1467 = vpack.c.b16 %v990, %v981
  %v1468 = vpack.c.b16 %v991, %v982
  %v1469 = vpack.c.b16 %v992, %v983
  %v1470 = vpack.c.b16 %v993, %v984
  %v1471 = vpack.c.b16 %v994, %v985
  %v1472 = vpack.c.b16 %v995, %v986
  %v1473 = vpack.c.b16 %v1005, %v996
  %v1474 = vpack.c.b16 %v1006, %v997
  %v1475 = vpack.c.b16 %v1007, %v998
  %v1476 = vpack.c.b16 %v1008, %v999
  %v1477 = vpack.c.b16 %v1009, %v1000
  %v1478 = vpack.c.b16 %v1010, %v1001
  %v1479 = vpack.c.b16 %v1011, %v1002
  %v1480 = vpack.c.b16 %v1012, %v1003
  %v1481 = vpack.c.b16 %v1013, %v1004
  %v1482 = vpack.c.b16 %v1023, %v1014
  %v1483 = vpack.c.b16 %v1024, %v1015
  %v1484 = vpack.c.b16 %v1025, %v1016
  %v1485 = vpack.c.b16 %v1026, %v1017
  %v1486 = vpack.c.b16 %v1027, %v1018
  %v1487 = vpack.c.b16 %v1028, %v1019
  %v1488 = vpack.c.b16 %v1029, %v1020
  %v1489 = vpack.c.b16 %v1030, %v1021
  %v1490 = vpack.c.b16 %v1031, %v1022
  %v1491 = vpack.c.b16 %v1041, %v1032
  %v1492 = vpack.c.b16 %v1042, %v1033
  %v1493 = vpack.c.b16 %v1043, %v1034
  %v1494 = vpack.c.b16 %v1044, %v1035
  %v1495 = vpack.c.b16 %v1045, %v1036
  %v1496 = vpack.c.b16 %v1046, %v1037
  %v1497 = vpack.c.b16 %v1047, %v1038
  %v1498 = vpack.c.b16 %v1048, %v1039
  %v1499 = vpack.c.b16 %v1049, %v1040
  %v1500 = vpack.c.b16 %v1059, %v1050
  %v1501 = vpack.c.b16 %v1060, %v1051
  %v1502 = vpack.c.b16 %v1061, %v1052
  %v1503 = vpack.c.b16 %v1062, %v1053
  %v1504 = vpack.c.b16 %v1063, %v1054
  %v1505 = vpack.c.b16 %v1064, %v1055
  %v1506 = vpack.c.b16 %v1065, %v1056
  %v1507 = vpack.c.b16 %v1066, %v1057
  %v1508 = vpack.c.b16 %v1067, %v1058
  %v1509 = vpack.c.b16 %v1077, %v1068
  %v1510 = vpack.c.b16 %v1078, %v1069
  %v1511 = vpack.c.b16 %v1079, %v1070
  %v1512 = vpack.c.b16 %v1080, %v1071
  %v1513 = vpack.c.b16 %v1081, %v1072
  %v1514 = vpack.c.b16 %v1082, %v1073
  %v1515 = vpack.c.b16 %v1083, %v1074
  %v1516 = vpack.c.b16 %v1084, %v1075
  %v1517 = vpack.c.b16 %v1085, %v1076
  %v1518 = vpack.c.b16 %v1095, %v1086
  %v1519 = vpack.c.b16 %v1096, %v1087
  %v1520 = vpack.c.b16 %v1097, %v1088
  %v1521 = vpack.c.b16 %v1098, %v1089
  %v1522 = vpack.c.b16 %v1099, %v1090
  %v1523 = vpack.c.b16 %v1100, %v1091
  %v1524 = vpack.c.b16 %v1101, %v1092
  %v1525 = vpack.c.b16 %v1102, %v1093
  %v1526 = vpack.c.b16 %v1103, %v1094
  %v1527 = vpack.c.b16 %v1113, %v1104
  %v1528 = vpack.c.b16 %v1114, %v1105
  %v1529 = vpack.c.b16 %v1115, %v1106
  %v1530 = vpack.c.b16 %v1116, %v1107
  %v1531 = vpack.c.b16 %v1117, %v1108
  %v1532 = vpack.c.b16 %v1118, %v1109
  %v1533 = vpack.c.b16 %v1119, %v1110
  %v1534 = vpack.c.b16 %v1120, %v1111
  %v1535 = vpack.c.b16 %v1121, %v1112
  %v1536 = vpack.c.b16 %v1131, %v1122
  %v1537 = vpack.c.b16 %v1132, %v1123
  %v1538 = vpack.c.b16 %v1133, %v1124
  %v1539 = vpack.c.b16 %v1134, %v1125
  %v1540 = vpack.c.b16 %v1135, %v1126
  %v1541 = vpack.c.b16 %v1136, %v1127
  %v1542 = vpack.c.b16 %v1137, %v1128
  %v1543 = vpack.c.b16 %v1138, %v1129
  %v1544 = vpack.c.b16 %v1139, %v1130
  %v1545 = vpack.c.b16 %v1149, %v1140
  %v1546 = vpack.c.b16 %v1150, %v1141
  %v1547 = vpack.c.b16 %v1151, %v1142
  %v1548 = vpack.c.b16 %v1152, %v1143
  %v1549 = vpack.c.b16 %v1153, %v1144
  %v1550 = vpack.c.b16 %v1154, %v1145
  %v1551 = vpack.c.b16 %v1155, %v1146
  %v1552 = vpack.c.b16 %v1156, %v1147
  %v1553 = vpack.c.b16 %v1157, %v1148
  %v1554 = vpack.c.b16 %v1167, %v1158
  %v1555 = vpack.c.b16 %v1168, %v1159
  %v1556 = vpack.c.b16 %v1169, %v1160
  %v1557 = vpack.c.b16 %v1170, %v1161
  %v1558 = vpack.c.b16 %v1171, %v1162
  %v1559 = vpack.c.b16 %v1172, %v1163
  %v1560 = vpack.c.b16 %v1173, %v1164
  %v1561 = vpack.c.b16 %v1174, %v1165
  %v1562 = vpack.c.b16 %v1175, %v1166
  %v1563 = vpack.c.b16 %v1185, %v1176
  %v1564 = vpack.c.b16 %v1186, %v1177
  %v1565 = vpack.c.b16 %v1187, %v1178
  %v1566 = vpack.c.b16 %v1188, %v1179
  %v1567 = vpack.c.b16 %v1189, %v1180
  %v1568 = vpack.c.b16 %v1190, %v1181
  %v1569 = vpack.c.b16 %v1191, %v1182
  %v1570 = vpack.c.b16 %v1192, %v1183
  %v1571 = vpack.c.b16 %v1193, %v1184
  %v1572 = vpack.c.b16 %v1203, %v1194
  %v1573 = vpack.c.b16 %v1204, %v1195
  %v1574 = vpack.c.b16 %v1205, %v1196
  %v1575 = vpack.c.b16 %v1206, %v1197
  %v1576 = vpack.c.b16 %v1207, %v1198
  %v1577 = vpack.c.b16 %v1208, %v1199
  %v1578 = vpack.c.b16 %v1209, %v1200
  %v1579 = vpack.c.b16 %v1210, %v1201
  %v1580 = vpack.c.b16 %v1211, %v1202
  %v1581 = vpack.c.b16 %v1221, %v1212
  %v1582 = vpack.c.b16 %v1222, %v1213
  %v1583 = vpack.c.b16 %v1223, %v1214
  %v1584 = vpack.c.b16 %v1224, %v1215
  %v1585 = vpack.c.b16 %v1225, %v1216
  %v1586 = vpack.c.b16 %v1226, %v1217
  %v1587 = vpack.c.b16 %v1227, %v1218
  %v1588 = vpack.c.b16 %v1228, %v1219
  %v1589 = vpack.c.b16 %v1229, %v1220
  %v1590 = vpack.c.b16 %v1239, %v1230
  %v1591 = vpack.c.b16 %v1240, %v1231
  %v1592 = vpack.c.b16 %v1241, %v1232
  %v1593 = vpack.c.b16 %v1242, %v1233
  %v1594 = vpack.c.b16 %v1243, %v1234
  %v1595 = vpack.c.b16 %v1244, %v1235
  %v1596 = vpack.c.b16 %v1245, %v1236
  %v1597 = vpack.c.b16 %v1246, %v1237
  %v1598 = vpack.c.b16 %v1247, %v1238
  %v1599 = vpack.c.b16 %v1257, %v1248
  %v1600 = vpack.c.b16 %v1258, %v1249
  %v1601 = vpack.c.b16 %v1259, %v1250
  %v1602 = vpack.c.b16 %v1260, %v1251
  %v1603 = vpack.c.b16 %v1261, %v1252
  %v1604 = vpack.c.b16 %v1262, %v1253
  %v1605 = vpack.c.b16 %v1263, %v1254
  %v1606 = vpack.c.b16 %v1264, %v1255
  %v1607 = vpack.c.b16 %v1265, %v1256
  %v1608 = vpack.c.b16 %v1275, %v1266
  %v1609 = vpack.c.b16 %v1276, %v1267
  %v1610 = vpack.c.b16 %v1277, %v1268
  %v1611 = vpack.c.b16 %v1278, %v1269
  %v1612 = vpack.c.b16 %v1279, %v1270
  %v1613 = vpack.c.b16 %v1280, %v1271
  %v1614 = vpack.c.b16 %v1281, %v1272
  %v1615 = vpack.c.b16 %v1282, %v1273
  %v1616 = vpack.c.b16 %v1283, %v1274
  %v1617 = vpack.c.b16 %v1293, %v1284
  %v1618 = vpack.c.b16 %v1294, %v1285
  %v1619 = vpack.c.b16 %v1295, %v1286
  %v1620 = vpack.c.b16 %v1296, %v1287
  %v1621 = vpack.c.b16 %v1297, %v1288
  %v1622 = vpack.c.b16 %v1298, %v1289
  %v1623 = vpack.c.b16 %v1299, %v1290
  %v1624 = vpack.c.b16 %v1300, %v1291
  %v1625 = vpack.c.b16 %v1301, %v1292
  %v1626 = vpack.c.b16 %v1311, %v1302
  %v1627 = vpack.c.b16 %v1312, %v1303
  %v1628 = vpack.c.b16 %v1313, %v1304
  %v1629 = vpack.c.b16 %v1314, %v1305
  %v1630 = vpack.c.b16 %v1315, %v1306
  %v1631 = vpack.c.b16 %v1316, %v1307
  %v1632 = vpack.c.b16 %v1317, %v1308
  %v1633 = vpack.c.b16 %v1318, %v1309
  %v1634 = vpack.c.b16 %v1319, %v1310
  %v1635 = vpack.c.b16 %v1329, %v1320
  %v1636 = vpack.c.b16 %v1330, %v1321
  %v1637 = vpack.c.b16 %v1331, %v1322
  %v1638 = vpack.c.b16 %v1332, %v1323
  %v1639 = vpack.c.b16 %v1333, %v1324
  %v1640 = vpack.c.b16 %v1334, %v1325
  %v1641 = vpack.c.b16 %v1335, %v1326
  %v1642 = vpack.c.b16 %v1336, %v1327
  %v1643 = vpack.c.b16 %v1337, %v1328
  %v1644 = vpack.c.b16 %v1347, %v1338
  %v1645 = vpack.c.b16 %v1348, %v1339
  %v1646 = vpack.c.b16 %v1349, %v1340
  %v1647 = vpack.c.b16 %v1350, %v1341
  %v1648 = vpack.c.b16 %v1351, %v1342
  %v1649 = vpack.c.b16 %v1352, %v1343
  %v1650 = vpack.c.b16 %v1353, %v1344
  %v1651 = vpack.c.b16 %v1354, %v1345
  %v1652 = vpack.c.b16 %v1355, %v1346
  %v1653 = vpack.c.b16 %v1365, %v1356
  %v1654 = vpack.c.b16 %v1366, %v1357
  %v1655 = vpack.c.b16 %v1367, %v1358
  %v1656 = vpack.c.b16 %v1368, %v1359
  %v1657 = vpack.c.b16 %v1369, %v1360
  %v1658 = vpack.c.b16 %v1370, %v1361
  %v1659 = vpack.c.b16 %v1371, %v1362
  %v1660 = vpack.c.b16 %v1372, %v1363
  %v1661 = vpack.c.b16 %v1373, %v1364
  %v2094 = vunpack.c.l.b16 %v334
  %v2095 = vunpack.c.l.b16 %v335
  %v2096 = vunpack.c.l.b16 %v336
  %v2097 = vunpack.c.l.b16 %v337
  %v2098 = vunpack.c.l.b16 %v338
  %v2099 = vunpack.c.l.b16 %v339
  %v2100 = vunpack.c.l.b16 %v340
  %v2101 = vunpack.c.l.b16 %v341
  %v2102 = vunpack.c.l.b16 %v342
  %v2103 = vunpack.c.l.b16 %v343
  %v2104 = vunpack.c.l.b16 %v344
  %v2105 = vunpack.c.l.b16 %v345
  %v2106 = vunpack.c.l.b16 %v346
  %v2107 = vunpack.c.l.b16 %v347
  %v2108 = vunpack.c.l.b16 %v348
  %v2109 = vunpack.c.l.b16 %v349
  %v2110 = vunpack.c.l.b16 %v350
  %v2111 = vunpack.c.l.b16 %v351
  %v2112 = vunpack.c.l.b16 %v352
  %v2113 = vunpack.c.l.b16 %v353
  %v2114 = vunpack.c.l.b16 %v354
  %v2115 = vunpack.c.l.b16 %v355
  %v2116 = vunpack.c.l.b16 %v356
  %v2117 = vunpack.c.l.b16 %v357
  %v2118 = vunpack.c.l.b16 %v358
  %v2119 = vunpack.c.l.b16 %v359
  %v2120 = vunpack.c.l.b16 %v360
  %v2121 = vunpack.c.l.b16 %v361
  %v2122 = vunpack.c.l.b16 %v362
  %v2123 = vunpack.c.l.b16 %v363
  %v2124 = vunpack.c.l.b16 %v364
  %v2125 = vunpack.c.l.b16 %v365
  %v2126 = vunpack.c.l.b16 %v366
  %v2127 = vunpack.c.l.b16 %v367
  %v2128 = vunpack.c.l.b16 %v368
  %v2129 = vunpack.c.l.b16 %v369
  %v2130 = vunpack.c.l.b16 %v370
  %v2131 = vunpack.c.l.b16 %v371
  %v2132 = vunpack.c.l.b16 %v372
  %v2133 = vunpack.c.l.b16 %v373
  %v2134 = vunpack.c.l.b16 %v374
  %v2135 = vunpack.c.l.b16 %v375
  %v2136 = vunpack.c.l.b16 %v376
  %v2137 = vunpack.c.l.b16 %v377
  %v2138 = vunpack.c.l.b16 %v378
  %v2139 = vunpack.c.l.b16 %v379
  %v2140 = vunpack.c.l.b16 %v380
  %v2141 = vunpack.c.l.b16 %v381
  %v2142 = vunpack.c.l.b16 %v382
  %v2143 = vunpack.c.l.b16 %v383
  %v2144 = vunpack.c.l.b16 %v384
  %v2145 = vunpack.c.l.b16 %v385
  %v2146 = vunpack.c.l.b16 %v386
  %v2147 = vunpack.c.l.b16 %v387
  %v2148 = vunpack.c.l.b16 %v388
  %v2149 = vunpack.c.l.b16 %v389
  %v2150 = vunpack.c.l.b16 %v390
  %v2151 = vunpack.c.l.b16 %v391
  %v2152 = vunpack.c.l.b16 %v392
  %v2153 = vunpack.c.l.b16 %v393
  %v2154 = vunpack.c.l.b16 %v394
  %v2155 = vunpack.c.l.b16 %v395
  %v2156 = vunpack.c.l.b16 %v396
  %v2157 = vunpack.c.l.b16 %v397
  %v2158 = vunpack.c.l.b16 %v398
  %v2159 = vunpack.c.l.b16 %v399
  %v2160 = vunpack.c.l.b16 %v400
  %v2161 = vunpack.c.l.b16 %v401
  %v2162 = vunpack.c.l.b16 %v402
  %v2163 = vunpack.c.l.b16 %v403
  %v2164 = vunpack.c.l.b16 %v404
  %v2165 = vunpack.c.l.b16 %v405
  %v2166 = vunpack.c.l.b16 %v406
  %v2167 = vunpack.c.l.b16 %v407
  %v2168 = vunpack.c.l.b16 %v408
  %v2169 = vunpack.c.l.b16 %v409
  %v2170 = vunpack.c.l.b16 %v410
  %v2171 = vunpack.c.l.b16 %v411
  %v2172 = vunpack.c.l.b16 %v412
  %v2173 = vunpack.c.l.b16 %v413
  %v2174 = vunpack.c.l.b16 %v414
  %v2175 = vunpack.c.l.b16 %v415
  %v2176 = vunpack.c.l.b16 %v416
  %v2177 = vunpack.c.l.b16 %v417
  %v2178 = vunpack.c.l.b16 %v418
  %v2179 = vunpack.c.l.b16 %v419
  %v2180 = vunpack.c.l.b16 %v420
  %v2181 = vunpack.c.l.b16 %v421
  %v2182 = vunpack.c.l.b16 %v422
  %v2183 = vunpack.c.l.b16 %v423
  %v2184 = vunpack.c.l.b16 %v424
  %v2185 = vunpack.c.l.b16 %v425
  %v2186 = vunpack.c.l.b16 %v426
  %v2187 = vunpack.c.l.b16 %v427
  %v2188 = vunpack.c.l.b16 %v428
  %v2189 = vunpack.c.l.b16 %v429
  %v2190 = vunpack.c.l.b16 %v430
  %v2191 = vunpack.c.l.b16 %v431
  %v2192 = vunpack.c.l.b16 %v432
  %v2193 = vunpack.c.l.b16 %v433
  %v2194 = vunpack.c.l.b16 %v434
  %v2195 = vunpack.c.l.b16 %v435
  %v2196 = vunpack.c.l.b16 %v436
  %v2197 = vunpack.c.l.b16 %v437
  %v2198 = vunpack.c.l.b16 %v438
  %v2199 = vunpack.c.l.b16 %v439
  %v2200 = vunpack.c.l.b16 %v440
  %v2201 = vunpack.c.l.b16 %v441
  %v2202 = vunpack.c.l.b16 %v442
  %v2203 = vunpack.c.l.b16 %v443
  %v2204 = vunpack.c.l.b16 %v444
  %v2205 = vunpack.c.l.b16 %v445
  %v2206 = vunpack.c.l.b16 %v446
  %v2207 = vunpack.c.l.b16 %v447
  %v2208 = vunpack.c.l.b16 %v448
  %v2209 = vunpack.c.l.b16 %v449
  %v2210 = vunpack.c.l.b16 %v450
  %v2211 = vunpack.c.l.b16 %v451
  %v2212 = vunpack.c.l.b16 %v452
  %v2213 = vunpack.c.l.b16 %v453
  %v2214 = vunpack.c.l.b16 %v454
  %v2215 = vunpack.c.l.b16 %v455
  %v2216 = vunpack.c.l.b16 %v456
  %v2217 = vunpack.c.l.b16 %v457
  %v2218 = vunpack.c.l.b16 %v458
  %v2219 = vunpack.c.l.b16 %v459
  %v2220 = vunpack.c.l.b16 %v460
  %v2221 = vunpack.c.l.b16 %v461
  %v2222 = vunpack.c.l.b16 %v462
  %v2223 = vunpack.c.l.b16 %v463
  %v2224 = vunpack.c.l.b16 %v464
  %v2225 = vunpack.c.l.b16 %v465
  %v2226 = vunpack.c.l.b16 %v466
  %v2227 = vunpack.c.l.b16 %v467
  %v2228 = vunpack.c.l.b16 %v468
  %v2229 = vunpack.c.l.b16 %v469
  %v2230 = vunpack.c.l.b16 %v470
  %v2231 = vunpack.c.l.b16 %v471
  %v2232 = vunpack.c.l.b16 %v472
  %v2233 = vunpack.c.l.b16 %v473
  %v2234 = vunpack.c.l.b16 %v474
  %v2235 = vunpack.c.l.b16 %v475
  %v2236 = vunpack.c.l.b16 %v476
  %v2237 = vunpack.c.l.b16 %v477
  %v2238 = vpack.c.b16 %v2095, %v2094
  %v2239 = vpack.c.b16 %v2097, %v2096
  %v2240 = vpack.c.b16 %v2099, %v2098
  %v2241 = vpack.c.b16 %v2101, %v2100
  %v2242 = vpack.c.b16 %v2103, %v2102
  %v2243 = vpack.c.b16 %v2105, %v2104
  %v2244 = vpack.c.b16 %v2107, %v2106
  %v2245 = vpack.c.b16 %v2109, %v2108
  %v2246 = vpack.c.b16 %v2111, %v2110
  %v2247 = vpack.c.b16 %v2113, %v2112
  %v2248 = vpack.c.b16 %v2115, %v2114
  %v2249 = vpack.c.b16 %v2117, %v2116
  %v2250 = vpack.c.b16 %v2119, %v2118
  %v2251 = vpack.c.b16 %v2121, %v2120
  %v2252 = vpack.c.b16 %v2123, %v2122
  %v2253 = vpack.c.b16 %v2125, %v2124
  %v2254 = vpack.c.b16 %v2127, %v2126
  %v2255 = vpack.c.b16 %v2129, %v2128
  %v2256 = vpack.c.b16 %v2131, %v2130
  %v2257 = vpack.c.b16 %v2133, %v2132
  %v2258 = vpack.c.b16 %v2135, %v2134
  %v2259 = vpack.c.b16 %v2137, %v2136
  %v2260 = vpack.c.b16 %v2139, %v2138
  %v2261 = vpack.c.b16 %v2141, %v2140
  %v2262 = vpack.c.b16 %v2143, %v2142
  %v2263 = vpack.c.b16 %v2145, %v2144
  %v2264 = vpack.c.b16 %v2147, %v2146
  %v2265 = vpack.c.b16 %v2149, %v2148
  %v2266 = vpack.c.b16 %v2151, %v2150
  %v2267 = vpack.c.b16 %v2153, %v2152
  %v2268 = vpack.c.b16 %v2155, %v2154
  %v2269 = vpack.c.b16 %v2157, %v2156
  %v2270 = vpack.c.b16 %v2159, %v2158
  %v2271 = vpack.c.b16 %v2161, %v2160
  %v2272 = vpack.c.b16 %v2163, %v2162
  %v2273 = vpack.c.b16 %v2165, %v2164
  %v2274 = vpack.c.b16 %v2167, %v2166
  %v2275 = vpack.c.b16 %v2169, %v2168
  %v2276 = vpack.c.b16 %v2171, %v2170
  %v2277 = vpack.c.b16 %v2173, %v2172
  %v2278 = vpack.c.b16 %v2175, %v2174
  %v2279 = vpack.c.b16 %v2177, %v2176
  %v2280 = vpack.c.b16 %v2179, %v2178
  %v2281 = vpack.c.b16 %v2181, %v2180
  %v2282 = vpack.c.b16 %v2183, %v2182
  %v2283 = vpack.c.b16 %v2185, %v2184
  %v2284 = vpack.c.b16 %v2187, %v2186
  %v2285 = vpack.c.b16 %v2189, %v2188
  %v2286 = vpack.c.b16 %v2191, %v2190
  %v2287 = vpack.c.b16 %v2193, %v2192
  %v2288 = vpack.c.b16 %v2195, %v2194
  %v2289 = vpack.c.b16 %v2197, %v2196
  %v2290 = vpack.c.b16 %v2199, %v2198
  %v2291 = vpack.c.b16 %v2201, %v2200
  %v2292 = vpack.c.b16 %v2203, %v2202
  %v2293 = vpack.c.b16 %v2205, %v2204
  %v2294 = vpack.c.b16 %v2207, %v2206
  %v2295 = vpack.c.b16 %v2209, %v2208
  %v2296 = vpack.c.b16 %v2211, %v2210
  %v2297 = vpack.c.b16 %v2213, %v2212
  %v2298 = vpack.c.b16 %v2215, %v2214
  %v2299 = vpack.c.b16 %v2217, %v2216
  %v2300 = vpack.c.b16 %v2219, %v2218
  %v2301 = vpack.c.b16 %v2221, %v2220
  %v2302 = vpack.c.b16 %v2223, %v2222
  %v2303 = vpack.c.b16 %v2225, %v2224
  %v2304 = vpack.c.b16 %v2227, %v2226
  %v2305 = vpack.c.b16 %v2229, %v2228
  %v2306 = vpack.c.b16 %v2231, %v2230
  %v2307 = vpack.c.b16 %v2233, %v2232
  %v2308 = vpack.c.b16 %v2235, %v2234
  %v2309 = vpack.c.b16 %v2237, %v2236
  %2382 = vmatprep.subr.bf16.mxu0 0
  %2383 = vmatpush1.bf16.msra.mxu0 %v2238
  %2384 = vmatprep.subr.bf16.mxu0 0
  %2385 = vmatpush1.bf16.msra.mxu0 %v2239
  %2386 = vmatprep.subr.bf16.mxu0 0
  %2387 = vmatpush1.bf16.msra.mxu0 %v2240
  %2388 = vmatprep.subr.bf16.mxu0 0
  %2389 = vmatpush1.bf16.msra.mxu0 %v2241
  %2390 = vmatprep.subr.bf16.mxu0 0
  %2391 = vmatpush1.bf16.msra.mxu0 %v2242
  %2392 = vmatprep.subr.bf16.mxu0 0
  %2393 = vmatpush1.bf16.msra.mxu0 %v2243
  %2394 = vmatprep.subr.bf16.mxu0 0
  %2395 = vmatpush1.bf16.msra.mxu0 %v2244
  %2396 = vmatprep.subr.bf16.mxu0 0
  %2397 = vmatpush1.bf16.msra.mxu0 %v2245
  %2398 = vmatprep.subr.bf16.mxu0 0
  %2399 = vmatpush1.bf16.msra.mxu0 %v2246
  %2400 = vmatprep.subr.bf16.mxu0 0
  %2401 = vmatpush1.bf16.msra.mxu0 %v2247
  %2402 = vmatprep.subr.bf16.mxu0 0
  %2403 = vmatpush1.bf16.msra.mxu0 %v2248
  %2404 = vmatprep.subr.bf16.mxu0 0
  %2405 = vmatpush1.bf16.msra.mxu0 %v2249
  %2406 = vmatprep.subr.bf16.mxu0 0
  %2407 = vmatpush1.bf16.msra.mxu0 %v2250
  %2408 = vmatprep.subr.bf16.mxu0 0
  %2409 = vmatpush1.bf16.msra.mxu0 %v2251
  %2410 = vmatprep.subr.bf16.mxu0 0
  %2411 = vmatpush1.bf16.msra.mxu0 %v2252
  %2412 = vmatprep.subr.bf16.mxu0 0
  %2413 = vmatpush1.bf16.msra.mxu0 %v2253
  %2414 = vmatprep.mubr.bf16.mxu0 %v1375
  %2415 = vmatmul.mubr.bf16.gmra.mrb[0].mxu0 %v1374
  %v2416 = vpop.f32.mrb[0].mxu0
  %v2417 = vadd.f32 0.0, %v2416
  %v2418 = vpop.f32.mrb[0].mxu0
  %v2419 = vpop.f32.mrb[0].mxu0
  %v2420 = vadd.f32 0.0, %v2419
  %v2421 = vpop.f32.mrb[0].mxu0
  %2422 = vmatprep.mubr.bf16.mxu0 %v1384
  %2423 = vmatmul.mubr.bf16.gmra.mrb[0].mxu0 %v1383
  %v2424 = vpop.f32.mrb[0].mxu0
  %v2425 = vadd.f32 0.0, %v2424
  %v2426 = vpop.f32.mrb[0].mxu0
  %v2427 = vpop.f32.mrb[0].mxu0
  %v2428 = vadd.f32 0.0, %v2427
  %v2429 = vpop.f32.mrb[0].mxu0
  %2430 = vmatprep.mubr.bf16.mxu0 %v1393
  %2431 = vmatmul.mubr.bf16.gmra.mrb[0].mxu0 %v1392
  %v2432 = vpop.f32.mrb[0].mxu0
  %v2433 = vadd.f32 0.0, %v2432
  %v2434 = vpop.f32.mrb[0].mxu0
  %v2435 = vpop.f32.mrb[0].mxu0
  %v2436 = vadd.f32 0.0, %v2435
  %v2437 = vpop.f32.mrb[0].mxu0
  %2438 = vmatprep.mubr.bf16.mxu0 %v1402
  %2439 = vmatmul.mubr.bf16.gmra.mrb[0].mxu0 %v1401
  %v2440 = vpop.f32.mrb[0].mxu0
  %v2441 = vadd.f32 0.0, %v2440
  %v2442 = vpop.f32.mrb[0].mxu0
  %v2443 = vpop.f32.mrb[0].mxu0
  %v2444 = vadd.f32 0.0, %v2443
  %v2445 = vpop.f32.mrb[0].mxu0
  %2446 = vmatprep.mubr.bf16.mxu0 %v1411
  %2447 = vmatmul.mubr.bf16.gmra.mrb[0].mxu0 %v1410
  %v2448 = vpop.f32.mrb[0].mxu0
  %v2449 = vadd.f32 0.0, %v2448
  %v2450 = vpop.f32.mrb[0].mxu0
  %v2451 = vpop.f32.mrb[0].mxu0
  %v2452 = vadd.f32 0.0, %v2451
  %v2453 = vpop.f32.mrb[0].mxu0
  %2454 = vmatprep.mubr.bf16.mxu0 %v1420
  %2455 = vmatmul.mubr.bf16.gmra.mrb[0].mxu0 %v1419
  %v2456 = vpop.f32.mrb[0].mxu0
  %v2457 = vadd.f32 0.0, %v2456
  %v2458 = vpop.f32.mrb[0].mxu0
  %v2459 = vpop.f32.mrb[0].mxu0
  %v2460 = vadd.f32 0.0, %v2459
  %v2461 = vpop.f32.mrb[0].mxu0
  %2462 = vmatprep.mubr.bf16.mxu0 %v1429
  %2463 = vmatmul.mubr.bf16.gmra.mrb[0].mxu0 %v1428
  %v2464 = vpop.f32.mrb[0].mxu0
  %v2465 = vadd.f32 0.0, %v2464
  %v2466 = vpop.f32.mrb[0].mxu0
  %v2467 = vpop.f32.mrb[0].mxu0
  %v2468 = vadd.f32 0.0, %v2467
  %v2469 = vpop.f32.mrb[0].mxu0
  %2470 = vmatprep.mubr.bf16.mxu0 %v1438
  %2471 = vmatmul.mubr.bf16.gmra.mrb[0].mxu0 %v1437
  %v2472 = vpop.f32.mrb[0].mxu0
  %v2473 = vadd.f32 0.0, %v2472
  %v2474 = vpop.f32.mrb[0].mxu0
  %v2475 = vpop.f32.mrb[0].mxu0
  %v2476 = vadd.f32 0.0, %v2475
  %v2477 = vpop.f32.mrb[0].mxu0
  %2478 = vmatprep.mubr.bf16.mxu0 %v1447
  %2479 = vmatmul.mubr.bf16.gmra.mrb[0].mxu0 %v1446
  %v2480 = vpop.f32.mrb[0].mxu0
  %v2481 = vadd.f32 0.0, %v2480
  %v2482 = vpop.f32.mrb[0].mxu0
  %v2483 = vpop.f32.mrb[0].mxu0
  %v2484 = vadd.f32 0.0, %v2483
  %v2485 = vpop.f32.mrb[0].mxu0
  %2486 = vmatprep.mubr.bf16.mxu0 %v1456
  %2487 = vmatmul.mubr.bf16.gmra.mrb[0].mxu0 %v1455
  %v2488 = vpop.f32.mrb[0].mxu0
  %v2489 = vadd.f32 0.0, %v2488
  %v2490 = vpop.f32.mrb[0].mxu0
  %v2491 = vpop.f32.mrb[0].mxu0
  %v2492 = vadd.f32 0.0, %v2491
  %v2493 = vpop.f32.mrb[0].mxu0
  %2494 = vmatprep.mubr.bf16.mxu0 %v1465
  %2495 = vmatmul.mubr.bf16.gmra.mrb[0].mxu0 %v1464
  %v2496 = vpop.f32.mrb[0].mxu0
  %v2497 = vadd.f32 0.0, %v2496
  %v2498 = vpop.f32.mrb[0].mxu0
  %v2499 = vpop.f32.mrb[0].mxu0
  %v2500 = vadd.f32 0.0, %v2499
  %v2501 = vpop.f32.mrb[0].mxu0
  %2502 = vmatprep.mubr.bf16.mxu0 %v1474
  %2503 = vmatmul.mubr.bf16.gmra.mrb[0].mxu0 %v1473
  %v2504 = vpop.f32.mrb[0].mxu0
  %v2505 = vadd.f32 0.0, %v2504
  %v2506 = vpop.f32.mrb[0].mxu0
  %v2507 = vpop.f32.mrb[0].mxu0
  %v2508 = vadd.f32 0.0, %v2507
  %v2509 = vpop.f32.mrb[0].mxu0
  %2510 = vmatprep.mubr.bf16.mxu0 %v1483
  %2511 = vmatmul.mubr.bf16.gmra.mrb[0].mxu0 %v1482
  %v2512 = vpop.f32.mrb[0].mxu0
  %v2513 = vadd.f32 0.0, %v2512
  %v2514 = vpop.f32.mrb[0].mxu0
  %v2515 = vpop.f32.mrb[0].mxu0
  %v2516 = vadd.f32 0.0, %v2515
  %v2517 = vpop.f32.mrb[0].mxu0
  %2518 = vmatprep.mubr.bf16.mxu0 %v1492
  %2519 = vmatmul.mubr.bf16.gmra.mrb[0].mxu0 %v1491
  %v2520 = vpop.f32.mrb[0].mxu0
  %v2521 = vadd.f32 0.0, %v2520
  %v2522 = vpop.f32.mrb[0].mxu0
  %v2523 = vpop.f32.mrb[0].mxu0
  %v2524 = vadd.f32 0.0, %v2523
  %v2525 = vpop.f32.mrb[0].mxu0
  %2526 = vmatprep.mubr.bf16.mxu0 %v1501
  %2527 = vmatmul.mubr.bf16.gmra.mrb[0].mxu0 %v1500
  %v2528 = vpop.f32.mrb[0].mxu0
  %v2529 = vadd.f32 0.0, %v2528
  %v2530 = vpop.f32.mrb[0].mxu0
  %v2531 = vpop.f32.mrb[0].mxu0
  %v2532 = vadd.f32 0.0, %v2531
  %v2533 = vpop.f32.mrb[0].mxu0
  %2534 = vmatprep.mubr.bf16.mxu0 %v1510
  %2535 = vmatmul.mubr.bf16.gmra.mrb[0].mxu0 %v1509
  %v2536 = vpop.f32.mrb[0].mxu0
  %v2537 = vadd.f32 0.0, %v2536
  %v2538 = vpop.f32.mrb[0].mxu0
  %v2539 = vpop.f32.mrb[0].mxu0
  %v2540 = vadd.f32 0.0, %v2539
  %v2541 = vpop.f32.mrb[0].mxu0
  %2542 = vmatprep.mubr.bf16.mxu0 %v1519
  %2543 = vmatmul.mubr.bf16.gmra.mrb[0].mxu0 %v1518
  %v2544 = vpop.f32.mrb[0].mxu0
  %v2545 = vadd.f32 0.0, %v2544
  %v2546 = vpop.f32.mrb[0].mxu0
  %v2547 = vpop.f32.mrb[0].mxu0
  %v2548 = vadd.f32 0.0, %v2547
  %v2549 = vpop.f32.mrb[0].mxu0
  %2550 = vmatprep.mubr.bf16.mxu0 %v1528
  %2551 = vmatmul.mubr.bf16.gmra.mrb[0].mxu0 %v1527
  %v2552 = vpop.f32.mrb[0].mxu0
  %v2553 = vadd.f32 0.0, %v2552
  %v2554 = vpop.f32.mrb[0].mxu0
  %v2555 = vpop.f32.mrb[0].mxu0
  %v2556 = vadd.f32 0.0, %v2555
  %v2557 = vpop.f32.mrb[0].mxu0
  %2558 = vmatprep.mubr.bf16.mxu0 %v1537
  %2559 = vmatmul.mubr.bf16.gmra.mrb[0].mxu0 %v1536
  %v2560 = vpop.f32.mrb[0].mxu0
  %v2561 = vadd.f32 0.0, %v2560
  %v2562 = vpop.f32.mrb[0].mxu0
  %v2563 = vpop.f32.mrb[0].mxu0
  %v2564 = vadd.f32 0.0, %v2563
  %v2565 = vpop.f32.mrb[0].mxu0
  %2566 = vmatprep.mubr.bf16.mxu0 %v1546
  %2567 = vmatmul.mubr.bf16.gmra.mrb[0].mxu0 %v1545
  %v2568 = vpop.f32.mrb[0].mxu0
  %v2569 = vadd.f32 0.0, %v2568
  %v2570 = vpop.f32.mrb[0].mxu0
  %v2571 = vpop.f32.mrb[0].mxu0
  %v2572 = vadd.f32 0.0, %v2571
  %v2573 = vpop.f32.mrb[0].mxu0
  %2574 = vmatprep.mubr.bf16.mxu0 %v1555
  %2575 = vmatmul.mubr.bf16.gmra.mrb[0].mxu0 %v1554
  %v2576 = vpop.f32.mrb[0].mxu0
  %v2577 = vadd.f32 0.0, %v2576
  %v2578 = vpop.f32.mrb[0].mxu0
  %v2579 = vpop.f32.mrb[0].mxu0
  %v2580 = vadd.f32 0.0, %v2579
  %v2581 = vpop.f32.mrb[0].mxu0
  %2582 = vmatprep.mubr.bf16.mxu0 %v1564
  %2583 = vmatmul.mubr.bf16.gmra.mrb[0].mxu0 %v1563
  %v2584 = vpop.f32.mrb[0].mxu0
  %v2585 = vadd.f32 0.0, %v2584
  %v2586 = vpop.f32.mrb[0].mxu0
  %v2587 = vpop.f32.mrb[0].mxu0
  %v2588 = vadd.f32 0.0, %v2587
  %v2589 = vpop.f32.mrb[0].mxu0
  %2590 = vmatprep.mubr.bf16.mxu0 %v1573
  %2591 = vmatmul.mubr.bf16.gmra.mrb[0].mxu0 %v1572
  %v2592 = vpop.f32.mrb[0].mxu0
  %v2593 = vadd.f32 0.0, %v2592
  %v2594 = vpop.f32.mrb[0].mxu0
  %v2595 = vpop.f32.mrb[0].mxu0
  %v2596 = vadd.f32 0.0, %v2595
  %v2597 = vpop.f32.mrb[0].mxu0
  %2598 = vmatprep.mubr.bf16.mxu0 %v1582
  %2599 = vmatmul.mubr.bf16.gmra.mrb[0].mxu0 %v1581
  %v2600 = vpop.f32.mrb[0].mxu0
  %v2601 = vadd.f32 0.0, %v2600
  %v2602 = vpop.f32.mrb[0].mxu0
  %v2603 = vpop.f32.mrb[0].mxu0
  %v2604 = vadd.f32 0.0, %v2603
  %v2605 = vpop.f32.mrb[0].mxu0
  %2606 = vmatprep.mubr.bf16.mxu0 %v1591
  %2607 = vmatmul.mubr.bf16.gmra.mrb[0].mxu0 %v1590
  %v2608 = vpop.f32.mrb[0].mxu0
  %v2609 = vadd.f32 0.0, %v2608
  %v2610 = vpop.f32.mrb[0].mxu0
  %v2611 = vpop.f32.mrb[0].mxu0
  %v2612 = vadd.f32 0.0, %v2611
  %v2613 = vpop.f32.mrb[0].mxu0
  %2614 = vmatprep.mubr.bf16.mxu0 %v1600
  %2615 = vmatmul.mubr.bf16.gmra.mrb[0].mxu0 %v1599
  %v2616 = vpop.f32.mrb[0].mxu0
  %v2617 = vadd.f32 0.0, %v2616
  %v2618 = vpop.f32.mrb[0].mxu0
  %v2619 = vpop.f32.mrb[0].mxu0
  %v2620 = vadd.f32 0.0, %v2619
  %v2621 = vpop.f32.mrb[0].mxu0
  %2622 = vmatprep.mubr.bf16.mxu0 %v1609
  %2623 = vmatmul.mubr.bf16.gmra.mrb[0].mxu0 %v1608
  %v2624 = vpop.f32.mrb[0].mxu0
  %v2625 = vadd.f32 0.0, %v2624
  %v2626 = vpop.f32.mrb[0].mxu0
  %v2627 = vpop.f32.mrb[0].mxu0
  %v2628 = vadd.f32 0.0, %v2627
  %v2629 = vpop.f32.mrb[0].mxu0
  %2630 = vmatprep.mubr.bf16.mxu0 %v1618
  %2631 = vmatmul.mubr.bf16.gmra.mrb[0].mxu0 %v1617
  %v2632 = vpop.f32.mrb[0].mxu0
  %v2633 = vadd.f32 0.0, %v2632
  %v2634 = vpop.f32.mrb[0].mxu0
  %v2635 = vpop.f32.mrb[0].mxu0
  %v2636 = vadd.f32 0.0, %v2635
  %v2637 = vpop.f32.mrb[0].mxu0
  %2638 = vmatprep.mubr.bf16.mxu0 %v1627
  %2639 = vmatmul.mubr.bf16.gmra.mrb[0].mxu0 %v1626
  %v2640 = vpop.f32.mrb[0].mxu0
  %v2641 = vadd.f32 0.0, %v2640
  %v2642 = vpop.f32.mrb[0].mxu0
  %v2643 = vpop.f32.mrb[0].mxu0
  %v2644 = vadd.f32 0.0, %v2643
  %v2645 = vpop.f32.mrb[0].mxu0
  %2646 = vmatprep.mubr.bf16.mxu0 %v1636
  %2647 = vmatmul.mubr.bf16.gmra.mrb[0].mxu0 %v1635
  %v2648 = vpop.f32.mrb[0].mxu0
  %v2649 = vadd.f32 0.0, %v2648
  %v2650 = vpop.f32.mrb[0].mxu0
  %v2651 = vpop.f32.mrb[0].mxu0
  %v2652 = vadd.f32 0.0, %v2651
  %v2653 = vpop.f32.mrb[0].mxu0
  %2654 = vmatprep.mubr.bf16.mxu0 %v1645
  %2655 = vmatmul.mubr.bf16.gmra.mrb[0].mxu0 %v1644
  %v2656 = vpop.f32.mrb[0].mxu0
  %v2657 = vadd.f32 0.0, %v2656
  %v2658 = vpop.f32.mrb[0].mxu0
  %v2659 = vpop.f32.mrb[0].mxu0
  %v2660 = vadd.f32 0.0, %v2659
  %v2661 = vpop.f32.mrb[0].mxu0
  %2662 = vmatprep.mubr.bf16.mxu0 %v1654
  %2663 = vmatmul.mubr.bf16.gmra.mrb[0].mxu0 %v1653
  %v2664 = vpop.f32.mrb[0].mxu0
  %v2665 = vadd.f32 0.0, %v2664
  %v2666 = vpop.f32.mrb[0].mxu0
  %v2667 = vpop.f32.mrb[0].mxu0
  %v2668 = vadd.f32 0.0, %v2667
  %v2669 = vpop.f32.mrb[0].mxu0
  %2670 = vdwg.mxu0
  %2671 = vmatprep.subr.bf16.mxu0 0
  %2672 = vmatpush1.bf16.msra.mxu0 %v2254
  %2673 = vmatprep.subr.bf16.mxu0 0
  %2674 = vmatpush1.bf16.msra.mxu0 %v2255
  %2675 = vmatprep.subr.bf16.mxu0 0
  %2676 = vmatpush1.bf16.msra.mxu0 %v2256
  %2677 = vmatprep.subr.bf16.mxu0 0
  %2678 = vmatpush1.bf16.msra.mxu0 %v2257
  %2679 = vmatprep.subr.bf16.mxu0 0
  %2680 = vmatpush1.bf16.msra.mxu0 %v2258
  %2681 = vmatprep.subr.bf16.mxu0 0
  %2682 = vmatpush1.bf16.msra.mxu0 %v2259
  %2683 = vmatprep.subr.bf16.mxu0 0
  %2684 = vmatpush1.bf16.msra.mxu0 %v2260
  %2685 = vmatprep.subr.bf16.mxu0 0
  %2686 = vmatpush1.bf16.msra.mxu0 %v2261
  %2687 = vmatprep.subr.bf16.mxu0 0
  %2688 = vmatpush1.bf16.msra.mxu0 %v2262
  %2689 = vmatprep.subr.bf16.mxu0 0
  %2690 = vmatpush1.bf16.msra.mxu0 %v2263
  %2691 = vmatprep.subr.bf16.mxu0 0
  %2692 = vmatpush1.bf16.msra.mxu0 %v2264
  %2693 = vmatprep.subr.bf16.mxu0 0
  %2694 = vmatpush1.bf16.msra.mxu0 %v2265
  %2695 = vmatprep.subr.bf16.mxu0 0
  %2696 = vmatpush1.bf16.msra.mxu0 %v2266
  %2697 = vmatprep.subr.bf16.mxu0 0
  %2698 = vmatpush1.bf16.msra.mxu0 %v2267
  %2699 = vmatprep.subr.bf16.mxu0 0
  %2700 = vmatpush1.bf16.msra.mxu0 %v2268
  %2701 = vmatprep.subr.bf16.mxu0 0
  %2702 = vmatpush1.bf16.msra.mxu0 %v2269
  %2703 = vmatprep.mubr.bf16.mxu0 %v1377
  %2704 = vmatmul.mubr.bf16.gmra.mrb[0].mxu0 %v1376
  %v2705 = vpop.f32.mrb[0].mxu0
  %v2706 = vadd.f32 %v2417, %v2705
  %v2707 = vpop.f32.mrb[0].mxu0
  %v2708 = vpop.f32.mrb[0].mxu0
  %v2709 = vadd.f32 %v2420, %v2708
  %v2710 = vpop.f32.mrb[0].mxu0
  %2711 = vmatprep.mubr.bf16.mxu0 %v1386
  %2712 = vmatmul.mubr.bf16.gmra.mrb[0].mxu0 %v1385
  %v2713 = vpop.f32.mrb[0].mxu0
  %v2714 = vadd.f32 %v2425, %v2713
  %v2715 = vpop.f32.mrb[0].mxu0
  %v2716 = vpop.f32.mrb[0].mxu0
  %v2717 = vadd.f32 %v2428, %v2716
  %v2718 = vpop.f32.mrb[0].mxu0
  %2719 = vmatprep.mubr.bf16.mxu0 %v1395
  %2720 = vmatmul.mubr.bf16.gmra.mrb[0].mxu0 %v1394
  %v2721 = vpop.f32.mrb[0].mxu0
  %v2722 = vadd.f32 %v2433, %v2721
  %v2723 = vpop.f32.mrb[0].mxu0
  %v2724 = vpop.f32.mrb[0].mxu0
  %v2725 = vadd.f32 %v2436, %v2724
  %v2726 = vpop.f32.mrb[0].mxu0
  %2727 = vmatprep.mubr.bf16.mxu0 %v1404
  %2728 = vmatmul.mubr.bf16.gmra.mrb[0].mxu0 %v1403
  %v2729 = vpop.f32.mrb[0].mxu0
  %v2730 = vadd.f32 %v2441, %v2729
  %v2731 = vpop.f32.mrb[0].mxu0
  %v2732 = vpop.f32.mrb[0].mxu0
  %v2733 = vadd.f32 %v2444, %v2732
  %v2734 = vpop.f32.mrb[0].mxu0
  %2735 = vmatprep.mubr.bf16.mxu0 %v1413
  %2736 = vmatmul.mubr.bf16.gmra.mrb[0].mxu0 %v1412
  %v2737 = vpop.f32.mrb[0].mxu0
  %v2738 = vadd.f32 %v2449, %v2737
  %v2739 = vpop.f32.mrb[0].mxu0
  %v2740 = vpop.f32.mrb[0].mxu0
  %v2741 = vadd.f32 %v2452, %v2740
  %v2742 = vpop.f32.mrb[0].mxu0
  %2743 = vmatprep.mubr.bf16.mxu0 %v1422
  %2744 = vmatmul.mubr.bf16.gmra.mrb[0].mxu0 %v1421
  %v2745 = vpop.f32.mrb[0].mxu0
  %v2746 = vadd.f32 %v2457, %v2745
  %v2747 = vpop.f32.mrb[0].mxu0
  %v2748 = vpop.f32.mrb[0].mxu0
  %v2749 = vadd.f32 %v2460, %v2748
  %v2750 = vpop.f32.mrb[0].mxu0
  %2751 = vmatprep.mubr.bf16.mxu0 %v1431
  %2752 = vmatmul.mubr.bf16.gmra.mrb[0].mxu0 %v1430
  %v2753 = vpop.f32.mrb[0].mxu0
  %v2754 = vadd.f32 %v2465, %v2753
  %v2755 = vpop.f32.mrb[0].mxu0
  %v2756 = vpop.f32.mrb[0].mxu0
  %v2757 = vadd.f32 %v2468, %v2756
  %v2758 = vpop.f32.mrb[0].mxu0
  %2759 = vmatprep.mubr.bf16.mxu0 %v1440
  %2760 = vmatmul.mubr.bf16.gmra.mrb[0].mxu0 %v1439
  %v2761 = vpop.f32.mrb[0].mxu0
  %v2762 = vadd.f32 %v2473, %v2761
  %v2763 = vpop.f32.mrb[0].mxu0
  %v2764 = vpop.f32.mrb[0].mxu0
  %v2765 = vadd.f32 %v2476, %v2764
  %v2766 = vpop.f32.mrb[0].mxu0
  %2767 = vmatprep.mubr.bf16.mxu0 %v1449
  %2768 = vmatmul.mubr.bf16.gmra.mrb[0].mxu0 %v1448
  %v2769 = vpop.f32.mrb[0].mxu0
  %v2770 = vadd.f32 %v2481, %v2769
  %v2771 = vpop.f32.mrb[0].mxu0
  %v2772 = vpop.f32.mrb[0].mxu0
  %v2773 = vadd.f32 %v2484, %v2772
  %v2774 = vpop.f32.mrb[0].mxu0
  %2775 = vmatprep.mubr.bf16.mxu0 %v1458
  %2776 = vmatmul.mubr.bf16.gmra.mrb[0].mxu0 %v1457
  %v2777 = vpop.f32.mrb[0].mxu0
  %v2778 = vadd.f32 %v2489, %v2777
  %v2779 = vpop.f32.mrb[0].mxu0
  %v2780 = vpop.f32.mrb[0].mxu0
  %v2781 = vadd.f32 %v2492, %v2780
  %v2782 = vpop.f32.mrb[0].mxu0
  %2783 = vmatprep.mubr.bf16.mxu0 %v1467
  %2784 = vmatmul.mubr.bf16.gmra.mrb[0].mxu0 %v1466
  %v2785 = vpop.f32.mrb[0].mxu0
  %v2786 = vadd.f32 %v2497, %v2785
  %v2787 = vpop.f32.mrb[0].mxu0
  %v2788 = vpop.f32.mrb[0].mxu0
  %v2789 = vadd.f32 %v2500, %v2788
  %v2790 = vpop.f32.mrb[0].mxu0
  %2791 = vmatprep.mubr.bf16.mxu0 %v1476
  %2792 = vmatmul.mubr.bf16.gmra.mrb[0].mxu0 %v1475
  %v2793 = vpop.f32.mrb[0].mxu0
  %v2794 = vadd.f32 %v2505, %v2793
  %v2795 = vpop.f32.mrb[0].mxu0
  %v2796 = vpop.f32.mrb[0].mxu0
  %v2797 = vadd.f32 %v2508, %v2796
  %v2798 = vpop.f32.mrb[0].mxu0
  %2799 = vmatprep.mubr.bf16.mxu0 %v1485
  %2800 = vmatmul.mubr.bf16.gmra.mrb[0].mxu0 %v1484
  %v2801 = vpop.f32.mrb[0].mxu0
  %v2802 = vadd.f32 %v2513, %v2801
  %v2803 = vpop.f32.mrb[0].mxu0
  %v2804 = vpop.f32.mrb[0].mxu0
  %v2805 = vadd.f32 %v2516, %v2804
  %v2806 = vpop.f32.mrb[0].mxu0
  %2807 = vmatprep.mubr.bf16.mxu0 %v1494
  %2808 = vmatmul.mubr.bf16.gmra.mrb[0].mxu0 %v1493
  %v2809 = vpop.f32.mrb[0].mxu0
  %v2810 = vadd.f32 %v2521, %v2809
  %v2811 = vpop.f32.mrb[0].mxu0
  %v2812 = vpop.f32.mrb[0].mxu0
  %v2813 = vadd.f32 %v2524, %v2812
  %v2814 = vpop.f32.mrb[0].mxu0
  %2815 = vmatprep.mubr.bf16.mxu0 %v1503
  %2816 = vmatmul.mubr.bf16.gmra.mrb[0].mxu0 %v1502
  %v2817 = vpop.f32.mrb[0].mxu0
  %v2818 = vadd.f32 %v2529, %v2817
  %v2819 = vpop.f32.mrb[0].mxu0
  %v2820 = vpop.f32.mrb[0].mxu0
  %v2821 = vadd.f32 %v2532, %v2820
  %v2822 = vpop.f32.mrb[0].mxu0
  %2823 = vmatprep.mubr.bf16.mxu0 %v1512
  %2824 = vmatmul.mubr.bf16.gmra.mrb[0].mxu0 %v1511
  %v2825 = vpop.f32.mrb[0].mxu0
  %v2826 = vadd.f32 %v2537, %v2825
  %v2827 = vpop.f32.mrb[0].mxu0
  %v2828 = vpop.f32.mrb[0].mxu0
  %v2829 = vadd.f32 %v2540, %v2828
  %v2830 = vpop.f32.mrb[0].mxu0
  %2831 = vmatprep.mubr.bf16.mxu0 %v1521
  %2832 = vmatmul.mubr.bf16.gmra.mrb[0].mxu0 %v1520
  %v2833 = vpop.f32.mrb[0].mxu0
  %v2834 = vadd.f32 %v2545, %v2833
  %v2835 = vpop.f32.mrb[0].mxu0
  %v2836 = vpop.f32.mrb[0].mxu0
  %v2837 = vadd.f32 %v2548, %v2836
  %v2838 = vpop.f32.mrb[0].mxu0
  %2839 = vmatprep.mubr.bf16.mxu0 %v1530
  %2840 = vmatmul.mubr.bf16.gmra.mrb[0].mxu0 %v1529
  %v2841 = vpop.f32.mrb[0].mxu0
  %v2842 = vadd.f32 %v2553, %v2841
  %v2843 = vpop.f32.mrb[0].mxu0
  %v2844 = vpop.f32.mrb[0].mxu0
  %v2845 = vadd.f32 %v2556, %v2844
  %v2846 = vpop.f32.mrb[0].mxu0
  %2847 = vmatprep.mubr.bf16.mxu0 %v1539
  %2848 = vmatmul.mubr.bf16.gmra.mrb[0].mxu0 %v1538
  %v2849 = vpop.f32.mrb[0].mxu0
  %v2850 = vadd.f32 %v2561, %v2849
  %v2851 = vpop.f32.mrb[0].mxu0
  %v2852 = vpop.f32.mrb[0].mxu0
  %v2853 = vadd.f32 %v2564, %v2852
  %v2854 = vpop.f32.mrb[0].mxu0
  %2855 = vmatprep.mubr.bf16.mxu0 %v1548
  %2856 = vmatmul.mubr.bf16.gmra.mrb[0].mxu0 %v1547
  %v2857 = vpop.f32.mrb[0].mxu0
  %v2858 = vadd.f32 %v2569, %v2857
  %v2859 = vpop.f32.mrb[0].mxu0
  %v2860 = vpop.f32.mrb[0].mxu0
  %v2861 = vadd.f32 %v2572, %v2860
  %v2862 = vpop.f32.mrb[0].mxu0
  %2863 = vmatprep.mubr.bf16.mxu0 %v1557
  %2864 = vmatmul.mubr.bf16.gmra.mrb[0].mxu0 %v1556
  %v2865 = vpop.f32.mrb[0].mxu0
  %v2866 = vadd.f32 %v2577, %v2865
  %v2867 = vpop.f32.mrb[0].mxu0
  %v2868 = vpop.f32.mrb[0].mxu0
  %v2869 = vadd.f32 %v2580, %v2868
  %v2870 = vpop.f32.mrb[0].mxu0
  %2871 = vmatprep.mubr.bf16.mxu0 %v1566
  %2872 = vmatmul.mubr.bf16.gmra.mrb[0].mxu0 %v1565
  %v2873 = vpop.f32.mrb[0].mxu0
  %v2874 = vadd.f32 %v2585, %v2873
  %v2875 = vpop.f32.mrb[0].mxu0
  %v2876 = vpop.f32.mrb[0].mxu0
  %v2877 = vadd.f32 %v2588, %v2876
  %v2878 = vpop.f32.mrb[0].mxu0
  %2879 = vmatprep.mubr.bf16.mxu0 %v1575
  %2880 = vmatmul.mubr.bf16.gmra.mrb[0].mxu0 %v1574
  %v2881 = vpop.f32.mrb[0].mxu0
  %v2882 = vadd.f32 %v2593, %v2881
  %v2883 = vpop.f32.mrb[0].mxu0
  %v2884 = vpop.f32.mrb[0].mxu0
  %v2885 = vadd.f32 %v2596, %v2884
  %v2886 = vpop.f32.mrb[0].mxu0
  %2887 = vmatprep.mubr.bf16.mxu0 %v1584
  %2888 = vmatmul.mubr.bf16.gmra.mrb[0].mxu0 %v1583
  %v2889 = vpop.f32.mrb[0].mxu0
  %v2890 = vadd.f32 %v2601, %v2889
  %v2891 = vpop.f32.mrb[0].mxu0
  %v2892 = vpop.f32.mrb[0].mxu0
  %v2893 = vadd.f32 %v2604, %v2892
  %v2894 = vpop.f32.mrb[0].mxu0
  %2895 = vmatprep.mubr.bf16.mxu0 %v1593
  %2896 = vmatmul.mubr.bf16.gmra.mrb[0].mxu0 %v1592
  %v2897 = vpop.f32.mrb[0].mxu0
  %v2898 = vadd.f32 %v2609, %v2897
  %v2899 = vpop.f32.mrb[0].mxu0
  %v2900 = vpop.f32.mrb[0].mxu0
  %v2901 = vadd.f32 %v2612, %v2900
  %v2902 = vpop.f32.mrb[0].mxu0
  %2903 = vmatprep.mubr.bf16.mxu0 %v1602
  %2904 = vmatmul.mubr.bf16.gmra.mrb[0].mxu0 %v1601
  %v2905 = vpop.f32.mrb[0].mxu0
  %v2906 = vadd.f32 %v2617, %v2905
  %v2907 = vpop.f32.mrb[0].mxu0
  %v2908 = vpop.f32.mrb[0].mxu0
  %v2909 = vadd.f32 %v2620, %v2908
  %v2910 = vpop.f32.mrb[0].mxu0
  %2911 = vmatprep.mubr.bf16.mxu0 %v1611
  %2912 = vmatmul.mubr.bf16.gmra.mrb[0].mxu0 %v1610
  %v2913 = vpop.f32.mrb[0].mxu0
  %v2914 = vadd.f32 %v2625, %v2913
  %v2915 = vpop.f32.mrb[0].mxu0
  %v2916 = vpop.f32.mrb[0].mxu0
  %v2917 = vadd.f32 %v2628, %v2916
  %v2918 = vpop.f32.mrb[0].mxu0
  %2919 = vmatprep.mubr.bf16.mxu0 %v1620
  %2920 = vmatmul.mubr.bf16.gmra.mrb[0].mxu0 %v1619
  %v2921 = vpop.f32.mrb[0].mxu0
  %v2922 = vadd.f32 %v2633, %v2921
  %v2923 = vpop.f32.mrb[0].mxu0
  %v2924 = vpop.f32.mrb[0].mxu0
  %v2925 = vadd.f32 %v2636, %v2924
  %v2926 = vpop.f32.mrb[0].mxu0
  %2927 = vmatprep.mubr.bf16.mxu0 %v1629
  %2928 = vmatmul.mubr.bf16.gmra.mrb[0].mxu0 %v1628
  %v2929 = vpop.f32.mrb[0].mxu0
  %v2930 = vadd.f32 %v2641, %v2929
  %v2931 = vpop.f32.mrb[0].mxu0
  %v2932 = vpop.f32.mrb[0].mxu0
  %v2933 = vadd.f32 %v2644, %v2932
  %v2934 = vpop.f32.mrb[0].mxu0
  %2935 = vmatprep.mubr.bf16.mxu0 %v1638
  %2936 = vmatmul.mubr.bf16.gmra.mrb[0].mxu0 %v1637
  %v2937 = vpop.f32.mrb[0].mxu0
  %v2938 = vadd.f32 %v2649, %v2937
  %v2939 = vpop.f32.mrb[0].mxu0
  %v2940 = vpop.f32.mrb[0].mxu0
  %v2941 = vadd.f32 %v2652, %v2940
  %v2942 = vpop.f32.mrb[0].mxu0
  %2943 = vmatprep.mubr.bf16.mxu0 %v1647
  %2944 = vmatmul.mubr.bf16.gmra.mrb[0].mxu0 %v1646
  %v2945 = vpop.f32.mrb[0].mxu0
  %v2946 = vadd.f32 %v2657, %v2945
  %v2947 = vpop.f32.mrb[0].mxu0
  %v2948 = vpop.f32.mrb[0].mxu0
  %v2949 = vadd.f32 %v2660, %v2948
  %v2950 = vpop.f32.mrb[0].mxu0
  %2951 = vmatprep.mubr.bf16.mxu0 %v1656
  %2952 = vmatmul.mubr.bf16.gmra.mrb[0].mxu0 %v1655
  %v2953 = vpop.f32.mrb[0].mxu0
  %v2954 = vadd.f32 %v2665, %v2953
  %v2955 = vpop.f32.mrb[0].mxu0
  %v2956 = vpop.f32.mrb[0].mxu0
  %v2957 = vadd.f32 %v2668, %v2956
  %v2958 = vpop.f32.mrb[0].mxu0
  %2959 = vdwg.mxu0
  %2960 = vmatprep.subr.bf16.mxu0 0
  %2961 = vmatpush1.bf16.msra.mxu0 %v2270
  %2962 = vmatprep.subr.bf16.mxu0 0
  %2963 = vmatpush1.bf16.msra.mxu0 %v2271
  %2964 = vmatprep.subr.bf16.mxu0 0
  %2965 = vmatpush1.bf16.msra.mxu0 %v2272
  %2966 = vmatprep.subr.bf16.mxu0 0
  %2967 = vmatpush1.bf16.msra.mxu0 %v2273
  %2968 = vmatprep.subr.bf16.mxu0 0
  %2969 = vmatpush1.bf16.msra.mxu0 %v2274
  %2970 = vmatprep.subr.bf16.mxu0 0
  %2971 = vmatpush1.bf16.msra.mxu0 %v2275
  %2972 = vmatprep.subr.bf16.mxu0 0
  %2973 = vmatpush1.bf16.msra.mxu0 %v2276
  %2974 = vmatprep.subr.bf16.mxu0 0
  %2975 = vmatpush1.bf16.msra.mxu0 %v2277
  %2976 = vmatprep.subr.bf16.mxu0 0
  %2977 = vmatpush1.bf16.msra.mxu0 %v2278
  %2978 = vmatprep.subr.bf16.mxu0 0
  %2979 = vmatpush1.bf16.msra.mxu0 %v2279
  %2980 = vmatprep.subr.bf16.mxu0 0
  %2981 = vmatpush1.bf16.msra.mxu0 %v2280
  %2982 = vmatprep.subr.bf16.mxu0 0
  %2983 = vmatpush1.bf16.msra.mxu0 %v2281
  %2984 = vmatprep.subr.bf16.mxu0 0
  %2985 = vmatpush1.bf16.msra.mxu0 %v2282
  %2986 = vmatprep.subr.bf16.mxu0 0
  %2987 = vmatpush1.bf16.msra.mxu0 %v2283
  %2988 = vmatprep.subr.bf16.mxu0 0
  %2989 = vmatpush1.bf16.msra.mxu0 %v2284
  %2990 = vmatprep.subr.bf16.mxu0 0
  %2991 = vmatpush1.bf16.msra.mxu0 %v2285
  %2992 = vmatprep.mubr.bf16.mxu0 %v1379
  %2993 = vmatmul.mubr.bf16.gmra.mrb[0].mxu0 %v1378
  %v2994 = vpop.f32.mrb[0].mxu0
  %v2995 = vadd.f32 %v2706, %v2994
  %v2996 = vpop.f32.mrb[0].mxu0
  %v2997 = vpop.f32.mrb[0].mxu0
  %v2998 = vadd.f32 %v2709, %v2997
  %v2999 = vpop.f32.mrb[0].mxu0
  %3000 = vmatprep.mubr.bf16.mxu0 %v1388
  %3001 = vmatmul.mubr.bf16.gmra.mrb[0].mxu0 %v1387
  %v3002 = vpop.f32.mrb[0].mxu0
  %v3003 = vadd.f32 %v2714, %v3002
  %v3004 = vpop.f32.mrb[0].mxu0
  %v3005 = vpop.f32.mrb[0].mxu0
  %v3006 = vadd.f32 %v2717, %v3005
  %v3007 = vpop.f32.mrb[0].mxu0
  %3008 = vmatprep.mubr.bf16.mxu0 %v1397
  %3009 = vmatmul.mubr.bf16.gmra.mrb[0].mxu0 %v1396
  %v3010 = vpop.f32.mrb[0].mxu0
  %v3011 = vadd.f32 %v2722, %v3010
  %v3012 = vpop.f32.mrb[0].mxu0
  %v3013 = vpop.f32.mrb[0].mxu0
  %v3014 = vadd.f32 %v2725, %v3013
  %v3015 = vpop.f32.mrb[0].mxu0
  %3016 = vmatprep.mubr.bf16.mxu0 %v1406
  %3017 = vmatmul.mubr.bf16.gmra.mrb[0].mxu0 %v1405
  %v3018 = vpop.f32.mrb[0].mxu0
  %v3019 = vadd.f32 %v2730, %v3018
  %v3020 = vpop.f32.mrb[0].mxu0
  %v3021 = vpop.f32.mrb[0].mxu0
  %v3022 = vadd.f32 %v2733, %v3021
  %v3023 = vpop.f32.mrb[0].mxu0
  %3024 = vmatprep.mubr.bf16.mxu0 %v1415
  %3025 = vmatmul.mubr.bf16.gmra.mrb[0].mxu0 %v1414
  %v3026 = vpop.f32.mrb[0].mxu0
  %v3027 = vadd.f32 %v2738, %v3026
  %v3028 = vpop.f32.mrb[0].mxu0
  %v3029 = vpop.f32.mrb[0].mxu0
  %v3030 = vadd.f32 %v2741, %v3029
  %v3031 = vpop.f32.mrb[0].mxu0
  %3032 = vmatprep.mubr.bf16.mxu0 %v1424
  %3033 = vmatmul.mubr.bf16.gmra.mrb[0].mxu0 %v1423
  %v3034 = vpop.f32.mrb[0].mxu0
  %v3035 = vadd.f32 %v2746, %v3034
  %v3036 = vpop.f32.mrb[0].mxu0
  %v3037 = vpop.f32.mrb[0].mxu0
  %v3038 = vadd.f32 %v2749, %v3037
  %v3039 = vpop.f32.mrb[0].mxu0
  %3040 = vmatprep.mubr.bf16.mxu0 %v1433
  %3041 = vmatmul.mubr.bf16.gmra.mrb[0].mxu0 %v1432
  %v3042 = vpop.f32.mrb[0].mxu0
  %v3043 = vadd.f32 %v2754, %v3042
  %v3044 = vpop.f32.mrb[0].mxu0
  %v3045 = vpop.f32.mrb[0].mxu0
  %v3046 = vadd.f32 %v2757, %v3045
  %v3047 = vpop.f32.mrb[0].mxu0
  %3048 = vmatprep.mubr.bf16.mxu0 %v1442
  %3049 = vmatmul.mubr.bf16.gmra.mrb[0].mxu0 %v1441
  %v3050 = vpop.f32.mrb[0].mxu0
  %v3051 = vadd.f32 %v2762, %v3050
  %v3052 = vpop.f32.mrb[0].mxu0
  %v3053 = vpop.f32.mrb[0].mxu0
  %v3054 = vadd.f32 %v2765, %v3053
  %v3055 = vpop.f32.mrb[0].mxu0
  %3056 = vmatprep.mubr.bf16.mxu0 %v1451
  %3057 = vmatmul.mubr.bf16.gmra.mrb[0].mxu0 %v1450
  %v3058 = vpop.f32.mrb[0].mxu0
  %v3059 = vadd.f32 %v2770, %v3058
  %v3060 = vpop.f32.mrb[0].mxu0
  %v3061 = vpop.f32.mrb[0].mxu0
  %v3062 = vadd.f32 %v2773, %v3061
  %v3063 = vpop.f32.mrb[0].mxu0
  %3064 = vmatprep.mubr.bf16.mxu0 %v1460
  %3065 = vmatmul.mubr.bf16.gmra.mrb[0].mxu0 %v1459
  %v3066 = vpop.f32.mrb[0].mxu0
  %v3067 = vadd.f32 %v2778, %v3066
  %v3068 = vpop.f32.mrb[0].mxu0
  %v3069 = vpop.f32.mrb[0].mxu0
  %v3070 = vadd.f32 %v2781, %v3069
  %v3071 = vpop.f32.mrb[0].mxu0
  %3072 = vmatprep.mubr.bf16.mxu0 %v1469
  %3073 = vmatmul.mubr.bf16.gmra.mrb[0].mxu0 %v1468
  %v3074 = vpop.f32.mrb[0].mxu0
  %v3075 = vadd.f32 %v2786, %v3074
  %v3076 = vpop.f32.mrb[0].mxu0
  %v3077 = vpop.f32.mrb[0].mxu0
  %v3078 = vadd.f32 %v2789, %v3077
  %v3079 = vpop.f32.mrb[0].mxu0
  %3080 = vmatprep.mubr.bf16.mxu0 %v1478
  %3081 = vmatmul.mubr.bf16.gmra.mrb[0].mxu0 %v1477
  %v3082 = vpop.f32.mrb[0].mxu0
  %v3083 = vadd.f32 %v2794, %v3082
  %v3084 = vpop.f32.mrb[0].mxu0
  %v3085 = vpop.f32.mrb[0].mxu0
  %v3086 = vadd.f32 %v2797, %v3085
  %v3087 = vpop.f32.mrb[0].mxu0
  %3088 = vmatprep.mubr.bf16.mxu0 %v1487
  %3089 = vmatmul.mubr.bf16.gmra.mrb[0].mxu0 %v1486
  %v3090 = vpop.f32.mrb[0].mxu0
  %v3091 = vadd.f32 %v2802, %v3090
  %v3092 = vpop.f32.mrb[0].mxu0
  %v3093 = vpop.f32.mrb[0].mxu0
  %v3094 = vadd.f32 %v2805, %v3093
  %v3095 = vpop.f32.mrb[0].mxu0
  %3096 = vmatprep.mubr.bf16.mxu0 %v1496
  %3097 = vmatmul.mubr.bf16.gmra.mrb[0].mxu0 %v1495
  %v3098 = vpop.f32.mrb[0].mxu0
  %v3099 = vadd.f32 %v2810, %v3098
  %v3100 = vpop.f32.mrb[0].mxu0
  %v3101 = vpop.f32.mrb[0].mxu0
  %v3102 = vadd.f32 %v2813, %v3101
  %v3103 = vpop.f32.mrb[0].mxu0
  %3104 = vmatprep.mubr.bf16.mxu0 %v1505
  %3105 = vmatmul.mubr.bf16.gmra.mrb[0].mxu0 %v1504
  %v3106 = vpop.f32.mrb[0].mxu0
  %v3107 = vadd.f32 %v2818, %v3106
  %v3108 = vpop.f32.mrb[0].mxu0
  %v3109 = vpop.f32.mrb[0].mxu0
  %v3110 = vadd.f32 %v2821, %v3109
  %v3111 = vpop.f32.mrb[0].mxu0
  %3112 = vmatprep.mubr.bf16.mxu0 %v1514
  %3113 = vmatmul.mubr.bf16.gmra.mrb[0].mxu0 %v1513
  %v3114 = vpop.f32.mrb[0].mxu0
  %v3115 = vadd.f32 %v2826, %v3114
  %v3116 = vpop.f32.mrb[0].mxu0
  %v3117 = vpop.f32.mrb[0].mxu0
  %v3118 = vadd.f32 %v2829, %v3117
  %v3119 = vpop.f32.mrb[0].mxu0
  %3120 = vmatprep.mubr.bf16.mxu0 %v1523
  %3121 = vmatmul.mubr.bf16.gmra.mrb[0].mxu0 %v1522
  %v3122 = vpop.f32.mrb[0].mxu0
  %v3123 = vadd.f32 %v2834, %v3122
  %v3124 = vpop.f32.mrb[0].mxu0
  %v3125 = vpop.f32.mrb[0].mxu0
  %v3126 = vadd.f32 %v2837, %v3125
  %v3127 = vpop.f32.mrb[0].mxu0
  %3128 = vmatprep.mubr.bf16.mxu0 %v1532
  %3129 = vmatmul.mubr.bf16.gmra.mrb[0].mxu0 %v1531
  %v3130 = vpop.f32.mrb[0].mxu0
  %v3131 = vadd.f32 %v2842, %v3130
  %v3132 = vpop.f32.mrb[0].mxu0
  %v3133 = vpop.f32.mrb[0].mxu0
  %v3134 = vadd.f32 %v2845, %v3133
  %v3135 = vpop.f32.mrb[0].mxu0
  %3136 = vmatprep.mubr.bf16.mxu0 %v1541
  %3137 = vmatmul.mubr.bf16.gmra.mrb[0].mxu0 %v1540
  %v3138 = vpop.f32.mrb[0].mxu0
  %v3139 = vadd.f32 %v2850, %v3138
  %v3140 = vpop.f32.mrb[0].mxu0
  %v3141 = vpop.f32.mrb[0].mxu0
  %v3142 = vadd.f32 %v2853, %v3141
  %v3143 = vpop.f32.mrb[0].mxu0
  %3144 = vmatprep.mubr.bf16.mxu0 %v1550
  %3145 = vmatmul.mubr.bf16.gmra.mrb[0].mxu0 %v1549
  %v3146 = vpop.f32.mrb[0].mxu0
  %v3147 = vadd.f32 %v2858, %v3146
  %v3148 = vpop.f32.mrb[0].mxu0
  %v3149 = vpop.f32.mrb[0].mxu0
  %v3150 = vadd.f32 %v2861, %v3149
  %v3151 = vpop.f32.mrb[0].mxu0
  %3152 = vmatprep.mubr.bf16.mxu0 %v1559
  %3153 = vmatmul.mubr.bf16.gmra.mrb[0].mxu0 %v1558
  %v3154 = vpop.f32.mrb[0].mxu0
  %v3155 = vadd.f32 %v2866, %v3154
  %v3156 = vpop.f32.mrb[0].mxu0
  %v3157 = vpop.f32.mrb[0].mxu0
  %v3158 = vadd.f32 %v2869, %v3157
  %v3159 = vpop.f32.mrb[0].mxu0
  %3160 = vmatprep.mubr.bf16.mxu0 %v1568
  %3161 = vmatmul.mubr.bf16.gmra.mrb[0].mxu0 %v1567
  %v3162 = vpop.f32.mrb[0].mxu0
  %v3163 = vadd.f32 %v2874, %v3162
  %v3164 = vpop.f32.mrb[0].mxu0
  %v3165 = vpop.f32.mrb[0].mxu0
  %v3166 = vadd.f32 %v2877, %v3165
  %v3167 = vpop.f32.mrb[0].mxu0
  %3168 = vmatprep.mubr.bf16.mxu0 %v1577
  %3169 = vmatmul.mubr.bf16.gmra.mrb[0].mxu0 %v1576
  %v3170 = vpop.f32.mrb[0].mxu0
  %v3171 = vadd.f32 %v2882, %v3170
  %v3172 = vpop.f32.mrb[0].mxu0
  %v3173 = vpop.f32.mrb[0].mxu0
  %v3174 = vadd.f32 %v2885, %v3173
  %v3175 = vpop.f32.mrb[0].mxu0
  %3176 = vmatprep.mubr.bf16.mxu0 %v1586
  %3177 = vmatmul.mubr.bf16.gmra.mrb[0].mxu0 %v1585
  %v3178 = vpop.f32.mrb[0].mxu0
  %v3179 = vadd.f32 %v2890, %v3178
  %v3180 = vpop.f32.mrb[0].mxu0
  %v3181 = vpop.f32.mrb[0].mxu0
  %v3182 = vadd.f32 %v2893, %v3181
  %v3183 = vpop.f32.mrb[0].mxu0
  %3184 = vmatprep.mubr.bf16.mxu0 %v1595
  %3185 = vmatmul.mubr.bf16.gmra.mrb[0].mxu0 %v1594
  %v3186 = vpop.f32.mrb[0].mxu0
  %v3187 = vadd.f32 %v2898, %v3186
  %v3188 = vpop.f32.mrb[0].mxu0
  %v3189 = vpop.f32.mrb[0].mxu0
  %v3190 = vadd.f32 %v2901, %v3189
  %v3191 = vpop.f32.mrb[0].mxu0
  %3192 = vmatprep.mubr.bf16.mxu0 %v1604
  %3193 = vmatmul.mubr.bf16.gmra.mrb[0].mxu0 %v1603
  %v3194 = vpop.f32.mrb[0].mxu0
  %v3195 = vadd.f32 %v2906, %v3194
  %v3196 = vpop.f32.mrb[0].mxu0
  %v3197 = vpop.f32.mrb[0].mxu0
  %v3198 = vadd.f32 %v2909, %v3197
  %v3199 = vpop.f32.mrb[0].mxu0
  %3200 = vmatprep.mubr.bf16.mxu0 %v1613
  %3201 = vmatmul.mubr.bf16.gmra.mrb[0].mxu0 %v1612
  %v3202 = vpop.f32.mrb[0].mxu0
  %v3203 = vadd.f32 %v2914, %v3202
  %v3204 = vpop.f32.mrb[0].mxu0
  %v3205 = vpop.f32.mrb[0].mxu0
  %v3206 = vadd.f32 %v2917, %v3205
  %v3207 = vpop.f32.mrb[0].mxu0
  %3208 = vmatprep.mubr.bf16.mxu0 %v1622
  %3209 = vmatmul.mubr.bf16.gmra.mrb[0].mxu0 %v1621
  %v3210 = vpop.f32.mrb[0].mxu0
  %v3211 = vadd.f32 %v2922, %v3210
  %v3212 = vpop.f32.mrb[0].mxu0
  %v3213 = vpop.f32.mrb[0].mxu0
  %v3214 = vadd.f32 %v2925, %v3213
  %v3215 = vpop.f32.mrb[0].mxu0
  %3216 = vmatprep.mubr.bf16.mxu0 %v1631
  %3217 = vmatmul.mubr.bf16.gmra.mrb[0].mxu0 %v1630
  %v3218 = vpop.f32.mrb[0].mxu0
  %v3219 = vadd.f32 %v2930, %v3218
  %v3220 = vpop.f32.mrb[0].mxu0
  %v3221 = vpop.f32.mrb[0].mxu0
  %v3222 = vadd.f32 %v2933, %v3221
  %v3223 = vpop.f32.mrb[0].mxu0
  %3224 = vmatprep.mubr.bf16.mxu0 %v1640
  %3225 = vmatmul.mubr.bf16.gmra.mrb[0].mxu0 %v1639
  %v3226 = vpop.f32.mrb[0].mxu0
  %v3227 = vadd.f32 %v2938, %v3226
  %v3228 = vpop.f32.mrb[0].mxu0
  %v3229 = vpop.f32.mrb[0].mxu0
  %v3230 = vadd.f32 %v2941, %v3229
  %v3231 = vpop.f32.mrb[0].mxu0
  %3232 = vmatprep.mubr.bf16.mxu0 %v1649
  %3233 = vmatmul.mubr.bf16.gmra.mrb[0].mxu0 %v1648
  %v3234 = vpop.f32.mrb[0].mxu0
  %v3235 = vadd.f32 %v2946, %v3234
  %v3236 = vpop.f32.mrb[0].mxu0
  %v3237 = vpop.f32.mrb[0].mxu0
  %v3238 = vadd.f32 %v2949, %v3237
  %v3239 = vpop.f32.mrb[0].mxu0
  %3240 = vmatprep.mubr.bf16.mxu0 %v1658
  %3241 = vmatmul.mubr.bf16.gmra.mrb[0].mxu0 %v1657
  %v3242 = vpop.f32.mrb[0].mxu0
  %v3243 = vadd.f32 %v2954, %v3242
  %v3244 = vpop.f32.mrb[0].mxu0
  %v3245 = vpop.f32.mrb[0].mxu0
  %v3246 = vadd.f32 %v2957, %v3245
  %v3247 = vpop.f32.mrb[0].mxu0
  %3248 = vdwg.mxu0
  %3249 = vmatprep.subr.bf16.mxu0 0
  %3250 = vmatpush1.bf16.msra.mxu0 %v2286
  %3251 = vmatprep.subr.bf16.mxu0 0
  %3252 = vmatpush1.bf16.msra.mxu0 %v2287
  %3253 = vmatprep.subr.bf16.mxu0 0
  %3254 = vmatpush1.bf16.msra.mxu0 %v2288
  %3255 = vmatprep.subr.bf16.mxu0 0
  %3256 = vmatpush1.bf16.msra.mxu0 %v2289
  %3257 = vmatprep.subr.bf16.mxu0 0
  %3258 = vmatpush1.bf16.msra.mxu0 %v2290
  %3259 = vmatprep.subr.bf16.mxu0 0
  %3260 = vmatpush1.bf16.msra.mxu0 %v2291
  %3261 = vmatprep.subr.bf16.mxu0 0
  %3262 = vmatpush1.bf16.msra.mxu0 %v2292
  %3263 = vmatprep.subr.bf16.mxu0 0
  %3264 = vmatpush1.bf16.msra.mxu0 %v2293
  %3265 = vmatprep.subr.bf16.mxu0 0
  %3266 = vmatpush1.bf16.msra.mxu0 %v2294
  %3267 = vmatprep.subr.bf16.mxu0 0
  %3268 = vmatpush1.bf16.msra.mxu0 %v2295
  %3269 = vmatprep.subr.bf16.mxu0 0
  %3270 = vmatpush1.bf16.msra.mxu0 %v2296
  %3271 = vmatprep.subr.bf16.mxu0 0
  %3272 = vmatpush1.bf16.msra.mxu0 %v2297
  %3273 = vmatprep.subr.bf16.mxu0 0
  %3274 = vmatpush1.bf16.msra.mxu0 %v2298
  %3275 = vmatprep.subr.bf16.mxu0 0
  %3276 = vmatpush1.bf16.msra.mxu0 %v2299
  %3277 = vmatprep.subr.bf16.mxu0 0
  %3278 = vmatpush1.bf16.msra.mxu0 %v2300
  %3279 = vmatprep.subr.bf16.mxu0 0
  %3280 = vmatpush1.bf16.msra.mxu0 %v2301
  %3281 = vmatprep.mubr.bf16.mxu0 %v1381
  %3282 = vmatmul.mubr.bf16.gmra.mrb[0].mxu0 %v1380
  %v3283 = vpop.f32.mrb[0].mxu0
  %v3284 = vadd.f32 %v2995, %v3283
  %v3285 = vpop.f32.mrb[0].mxu0
  %v3286 = vpop.f32.mrb[0].mxu0
  %v3287 = vadd.f32 %v2998, %v3286
  %v3288 = vpop.f32.mrb[0].mxu0
  %3289 = vmatprep.mubr.bf16.mxu0 %v1390
  %3290 = vmatmul.mubr.bf16.gmra.mrb[0].mxu0 %v1389
  %v3291 = vpop.f32.mrb[0].mxu0
  %v3292 = vadd.f32 %v3003, %v3291
  %v3293 = vpop.f32.mrb[0].mxu0
  %v3294 = vpop.f32.mrb[0].mxu0
  %v3295 = vadd.f32 %v3006, %v3294
  %v3296 = vpop.f32.mrb[0].mxu0
  %3297 = vmatprep.mubr.bf16.mxu0 %v1399
  %3298 = vmatmul.mubr.bf16.gmra.mrb[0].mxu0 %v1398
  %v3299 = vpop.f32.mrb[0].mxu0
  %v3300 = vadd.f32 %v3011, %v3299
  %v3301 = vpop.f32.mrb[0].mxu0
  %v3302 = vpop.f32.mrb[0].mxu0
  %v3303 = vadd.f32 %v3014, %v3302
  %v3304 = vpop.f32.mrb[0].mxu0
  %3305 = vmatprep.mubr.bf16.mxu0 %v1408
  %3306 = vmatmul.mubr.bf16.gmra.mrb[0].mxu0 %v1407
  %v3307 = vpop.f32.mrb[0].mxu0
  %v3308 = vadd.f32 %v3019, %v3307
  %v3309 = vpop.f32.mrb[0].mxu0
  %v3310 = vpop.f32.mrb[0].mxu0
  %v3311 = vadd.f32 %v3022, %v3310
  %v3312 = vpop.f32.mrb[0].mxu0
  %3313 = vmatprep.mubr.bf16.mxu0 %v1417
  %3314 = vmatmul.mubr.bf16.gmra.mrb[0].mxu0 %v1416
  %v3315 = vpop.f32.mrb[0].mxu0
  %v3316 = vadd.f32 %v3027, %v3315
  %v3317 = vpop.f32.mrb[0].mxu0
  %v3318 = vpop.f32.mrb[0].mxu0
  %v3319 = vadd.f32 %v3030, %v3318
  %v3320 = vpop.f32.mrb[0].mxu0
  %3321 = vmatprep.mubr.bf16.mxu0 %v1426
  %3322 = vmatmul.mubr.bf16.gmra.mrb[0].mxu0 %v1425
  %v3323 = vpop.f32.mrb[0].mxu0
  %v3324 = vadd.f32 %v3035, %v3323
  %v3325 = vpop.f32.mrb[0].mxu0
  %v3326 = vpop.f32.mrb[0].mxu0
  %v3327 = vadd.f32 %v3038, %v3326
  %v3328 = vpop.f32.mrb[0].mxu0
  %3329 = vmatprep.mubr.bf16.mxu0 %v1435
  %3330 = vmatmul.mubr.bf16.gmra.mrb[0].mxu0 %v1434
  %v3331 = vpop.f32.mrb[0].mxu0
  %v3332 = vadd.f32 %v3043, %v3331
  %v3333 = vpop.f32.mrb[0].mxu0
  %v3334 = vpop.f32.mrb[0].mxu0
  %v3335 = vadd.f32 %v3046, %v3334
  %v3336 = vpop.f32.mrb[0].mxu0
  %3337 = vmatprep.mubr.bf16.mxu0 %v1444
  %3338 = vmatmul.mubr.bf16.gmra.mrb[0].mxu0 %v1443
  %v3339 = vpop.f32.mrb[0].mxu0
  %v3340 = vadd.f32 %v3051, %v3339
  %v3341 = vpop.f32.mrb[0].mxu0
  %v3342 = vpop.f32.mrb[0].mxu0
  %v3343 = vadd.f32 %v3054, %v3342
  %v3344 = vpop.f32.mrb[0].mxu0
  %3345 = vmatprep.mubr.bf16.mxu0 %v1453
  %3346 = vmatmul.mubr.bf16.gmra.mrb[0].mxu0 %v1452
  %v3347 = vpop.f32.mrb[0].mxu0
  %v3348 = vadd.f32 %v3059, %v3347
  %v3349 = vpop.f32.mrb[0].mxu0
  %v3350 = vpop.f32.mrb[0].mxu0
  %v3351 = vadd.f32 %v3062, %v3350
  %v3352 = vpop.f32.mrb[0].mxu0
  %3353 = vmatprep.mubr.bf16.mxu0 %v1462
  %3354 = vmatmul.mubr.bf16.gmra.mrb[0].mxu0 %v1461
  %v3355 = vpop.f32.mrb[0].mxu0
  %v3356 = vadd.f32 %v3067, %v3355
  %v3357 = vpop.f32.mrb[0].mxu0
  %v3358 = vpop.f32.mrb[0].mxu0
  %v3359 = vadd.f32 %v3070, %v3358
  %v3360 = vpop.f32.mrb[0].mxu0
  %3361 = vmatprep.mubr.bf16.mxu0 %v1471
  %3362 = vmatmul.mubr.bf16.gmra.mrb[0].mxu0 %v1470
  %v3363 = vpop.f32.mrb[0].mxu0
  %v3364 = vadd.f32 %v3075, %v3363
  %v3365 = vpop.f32.mrb[0].mxu0
  %v3366 = vpop.f32.mrb[0].mxu0
  %v3367 = vadd.f32 %v3078, %v3366
  %v3368 = vpop.f32.mrb[0].mxu0
  %3369 = vmatprep.mubr.bf16.mxu0 %v1480
  %3370 = vmatmul.mubr.bf16.gmra.mrb[0].mxu0 %v1479
  %v3371 = vpop.f32.mrb[0].mxu0
  %v3372 = vadd.f32 %v3083, %v3371
  %v3373 = vpop.f32.mrb[0].mxu0
  %v3374 = vpop.f32.mrb[0].mxu0
  %v3375 = vadd.f32 %v3086, %v3374
  %v3376 = vpop.f32.mrb[0].mxu0
  %3377 = vmatprep.mubr.bf16.mxu0 %v1489
  %3378 = vmatmul.mubr.bf16.gmra.mrb[0].mxu0 %v1488
  %v3379 = vpop.f32.mrb[0].mxu0
  %v3380 = vadd.f32 %v3091, %v3379
  %v3381 = vpop.f32.mrb[0].mxu0
  %v3382 = vpop.f32.mrb[0].mxu0
  %v3383 = vadd.f32 %v3094, %v3382
  %v3384 = vpop.f32.mrb[0].mxu0
  %3385 = vmatprep.mubr.bf16.mxu0 %v1498
  %3386 = vmatmul.mubr.bf16.gmra.mrb[0].mxu0 %v1497
  %v3387 = vpop.f32.mrb[0].mxu0
  %v3388 = vadd.f32 %v3099, %v3387
  %v3389 = vpop.f32.mrb[0].mxu0
  %v3390 = vpop.f32.mrb[0].mxu0
  %v3391 = vadd.f32 %v3102, %v3390
  %v3392 = vpop.f32.mrb[0].mxu0
  %3393 = vmatprep.mubr.bf16.mxu0 %v1507
  %3394 = vmatmul.mubr.bf16.gmra.mrb[0].mxu0 %v1506
  %v3395 = vpop.f32.mrb[0].mxu0
  %v3396 = vadd.f32 %v3107, %v3395
  %v3397 = vpop.f32.mrb[0].mxu0
  %v3398 = vpop.f32.mrb[0].mxu0
  %v3399 = vadd.f32 %v3110, %v3398
  %v3400 = vpop.f32.mrb[0].mxu0
  %3401 = vmatprep.mubr.bf16.mxu0 %v1516
  %3402 = vmatmul.mubr.bf16.gmra.mrb[0].mxu0 %v1515
  %v3403 = vpop.f32.mrb[0].mxu0
  %v3404 = vadd.f32 %v3115, %v3403
  %v3405 = vpop.f32.mrb[0].mxu0
  %v3406 = vpop.f32.mrb[0].mxu0
  %v3407 = vadd.f32 %v3118, %v3406
  %v3408 = vpop.f32.mrb[0].mxu0
  %3409 = vmatprep.mubr.bf16.mxu0 %v1525
  %3410 = vmatmul.mubr.bf16.gmra.mrb[0].mxu0 %v1524
  %v3411 = vpop.f32.mrb[0].mxu0
  %v3412 = vadd.f32 %v3123, %v3411
  %v3413 = vpop.f32.mrb[0].mxu0
  %v3414 = vpop.f32.mrb[0].mxu0
  %v3415 = vadd.f32 %v3126, %v3414
  %v3416 = vpop.f32.mrb[0].mxu0
  %3417 = vmatprep.mubr.bf16.mxu0 %v1534
  %3418 = vmatmul.mubr.bf16.gmra.mrb[0].mxu0 %v1533
  %v3419 = vpop.f32.mrb[0].mxu0
  %v3420 = vadd.f32 %v3131, %v3419
  %v3421 = vpop.f32.mrb[0].mxu0
  %v3422 = vpop.f32.mrb[0].mxu0
  %v3423 = vadd.f32 %v3134, %v3422
  %v3424 = vpop.f32.mrb[0].mxu0
  %3425 = vmatprep.mubr.bf16.mxu0 %v1543
  %3426 = vmatmul.mubr.bf16.gmra.mrb[0].mxu0 %v1542
  %v3427 = vpop.f32.mrb[0].mxu0
  %v3428 = vadd.f32 %v3139, %v3427
  %v3429 = vpop.f32.mrb[0].mxu0
  %v3430 = vpop.f32.mrb[0].mxu0
  %v3431 = vadd.f32 %v3142, %v3430
  %v3432 = vpop.f32.mrb[0].mxu0
  %3433 = vmatprep.mubr.bf16.mxu0 %v1552
  %3434 = vmatmul.mubr.bf16.gmra.mrb[0].mxu0 %v1551
  %v3435 = vpop.f32.mrb[0].mxu0
  %v3436 = vadd.f32 %v3147, %v3435
  %v3437 = vpop.f32.mrb[0].mxu0
  %v3438 = vpop.f32.mrb[0].mxu0
  %v3439 = vadd.f32 %v3150, %v3438
  %v3440 = vpop.f32.mrb[0].mxu0
  %3441 = vmatprep.mubr.bf16.mxu0 %v1561
  %3442 = vmatmul.mubr.bf16.gmra.mrb[0].mxu0 %v1560
  %v3443 = vpop.f32.mrb[0].mxu0
  %v3444 = vadd.f32 %v3155, %v3443
  %v3445 = vpop.f32.mrb[0].mxu0
  %v3446 = vpop.f32.mrb[0].mxu0
  %v3447 = vadd.f32 %v3158, %v3446
  %v3448 = vpop.f32.mrb[0].mxu0
  %3449 = vmatprep.mubr.bf16.mxu0 %v1570
  %3450 = vmatmul.mubr.bf16.gmra.mrb[0].mxu0 %v1569
  %v3451 = vpop.f32.mrb[0].mxu0
  %v3452 = vadd.f32 %v3163, %v3451
  %v3453 = vpop.f32.mrb[0].mxu0
  %v3454 = vpop.f32.mrb[0].mxu0
  %v3455 = vadd.f32 %v3166, %v3454
  %v3456 = vpop.f32.mrb[0].mxu0
  %3457 = vmatprep.mubr.bf16.mxu0 %v1579
  %3458 = vmatmul.mubr.bf16.gmra.mrb[0].mxu0 %v1578
  %v3459 = vpop.f32.mrb[0].mxu0
  %v3460 = vadd.f32 %v3171, %v3459
  %v3461 = vpop.f32.mrb[0].mxu0
  %v3462 = vpop.f32.mrb[0].mxu0
  %v3463 = vadd.f32 %v3174, %v3462
  %v3464 = vpop.f32.mrb[0].mxu0
  %3465 = vmatprep.mubr.bf16.mxu0 %v1588
  %3466 = vmatmul.mubr.bf16.gmra.mrb[0].mxu0 %v1587
  %v3467 = vpop.f32.mrb[0].mxu0
  %v3468 = vadd.f32 %v3179, %v3467
  %v3469 = vpop.f32.mrb[0].mxu0
  %v3470 = vpop.f32.mrb[0].mxu0
  %v3471 = vadd.f32 %v3182, %v3470
  %v3472 = vpop.f32.mrb[0].mxu0
  %3473 = vmatprep.mubr.bf16.mxu0 %v1597
  %3474 = vmatmul.mubr.bf16.gmra.mrb[0].mxu0 %v1596
  %v3475 = vpop.f32.mrb[0].mxu0
  %v3476 = vadd.f32 %v3187, %v3475
  %v3477 = vpop.f32.mrb[0].mxu0
  %v3478 = vpop.f32.mrb[0].mxu0
  %v3479 = vadd.f32 %v3190, %v3478
  %v3480 = vpop.f32.mrb[0].mxu0
  %3481 = vmatprep.mubr.bf16.mxu0 %v1606
  %3482 = vmatmul.mubr.bf16.gmra.mrb[0].mxu0 %v1605
  %v3483 = vpop.f32.mrb[0].mxu0
  %v3484 = vadd.f32 %v3195, %v3483
  %v3485 = vpop.f32.mrb[0].mxu0
  %v3486 = vpop.f32.mrb[0].mxu0
  %v3487 = vadd.f32 %v3198, %v3486
  %v3488 = vpop.f32.mrb[0].mxu0
  %3489 = vmatprep.mubr.bf16.mxu0 %v1615
  %3490 = vmatmul.mubr.bf16.gmra.mrb[0].mxu0 %v1614
  %v3491 = vpop.f32.mrb[0].mxu0
  %v3492 = vadd.f32 %v3203, %v3491
  %v3493 = vpop.f32.mrb[0].mxu0
  %v3494 = vpop.f32.mrb[0].mxu0
  %v3495 = vadd.f32 %v3206, %v3494
  %v3496 = vpop.f32.mrb[0].mxu0
  %3497 = vmatprep.mubr.bf16.mxu0 %v1624
  %3498 = vmatmul.mubr.bf16.gmra.mrb[0].mxu0 %v1623
  %v3499 = vpop.f32.mrb[0].mxu0
  %v3500 = vadd.f32 %v3211, %v3499
  %v3501 = vpop.f32.mrb[0].mxu0
  %v3502 = vpop.f32.mrb[0].mxu0
  %v3503 = vadd.f32 %v3214, %v3502
  %v3504 = vpop.f32.mrb[0].mxu0
  %3505 = vmatprep.mubr.bf16.mxu0 %v1633
  %3506 = vmatmul.mubr.bf16.gmra.mrb[0].mxu0 %v1632
  %v3507 = vpop.f32.mrb[0].mxu0
  %v3508 = vadd.f32 %v3219, %v3507
  %v3509 = vpop.f32.mrb[0].mxu0
  %v3510 = vpop.f32.mrb[0].mxu0
  %v3511 = vadd.f32 %v3222, %v3510
  %v3512 = vpop.f32.mrb[0].mxu0
  %3513 = vmatprep.mubr.bf16.mxu0 %v1642
  %3514 = vmatmul.mubr.bf16.gmra.mrb[0].mxu0 %v1641
  %v3515 = vpop.f32.mrb[0].mxu0
  %v3516 = vadd.f32 %v3227, %v3515
  %v3517 = vpop.f32.mrb[0].mxu0
  %v3518 = vpop.f32.mrb[0].mxu0
  %v3519 = vadd.f32 %v3230, %v3518
  %v3520 = vpop.f32.mrb[0].mxu0
  %3521 = vmatprep.mubr.bf16.mxu0 %v1651
  %3522 = vmatmul.mubr.bf16.gmra.mrb[0].mxu0 %v1650
  %v3523 = vpop.f32.mrb[0].mxu0
  %v3524 = vadd.f32 %v3235, %v3523
  %v3525 = vpop.f32.mrb[0].mxu0
  %v3526 = vpop.f32.mrb[0].mxu0
  %v3527 = vadd.f32 %v3238, %v3526
  %v3528 = vpop.f32.mrb[0].mxu0
  %3529 = vmatprep.mubr.bf16.mxu0 %v1660
  %3530 = vmatmul.mubr.bf16.gmra.mrb[0].mxu0 %v1659
  %v3531 = vpop.f32.mrb[0].mxu0
  %v3532 = vadd.f32 %v3243, %v3531
  %v3533 = vpop.f32.mrb[0].mxu0
  %v3534 = vpop.f32.mrb[0].mxu0
  %v3535 = vadd.f32 %v3246, %v3534
  %v3536 = vpop.f32.mrb[0].mxu0
  %3537 = vdwg.mxu0
  %3538 = vmatprep.subr.bf16.mxu0 0
  %3539 = vmatpush1.bf16.msra.mxu0 %v2302
  %3540 = vmatprep.subr.bf16.mxu0 0
  %3541 = vmatpush1.bf16.msra.mxu0 %v2303
  %3542 = vmatprep.subr.bf16.mxu0 0
  %3543 = vmatpush1.bf16.msra.mxu0 %v2304
  %3544 = vmatprep.subr.bf16.mxu0 0
  %3545 = vmatpush1.bf16.msra.mxu0 %v2305
  %3546 = vmatprep.subr.bf16.mxu0 0
  %3547 = vmatpush1.bf16.msra.mxu0 %v2306
  %3548 = vmatprep.subr.bf16.mxu0 0
  %3549 = vmatpush1.bf16.msra.mxu0 %v2307
  %3550 = vmatprep.subr.bf16.mxu0 0
  %3551 = vmatpush1.bf16.msra.mxu0 %v2308
  %3552 = vmatprep.subr.bf16.mxu0 0
  %3553 = vmatpush1.bf16.msra.mxu0 %v2309
  %3554 = vmatprep.subr.bf16.mxu0 0
  %3555 = vmatpush1.bf16.msra.mxu0 0
  %3556 = vmatprep.subr.bf16.mxu0 0
  %3557 = vmatpush1.bf16.msra.mxu0 0
  %3558 = vmatprep.subr.bf16.mxu0 0
  %3559 = vmatpush1.bf16.msra.mxu0 0
  %3560 = vmatprep.subr.bf16.mxu0 0
  %3561 = vmatpush1.bf16.msra.mxu0 0
  %3562 = vmatprep.subr.bf16.mxu0 0
  %3563 = vmatpush1.bf16.msra.mxu0 0
  %3564 = vmatprep.subr.bf16.mxu0 0
  %3565 = vmatpush1.bf16.msra.mxu0 0
  %3566 = vmatprep.subr.bf16.mxu0 0
  %3567 = vmatpush1.bf16.msra.mxu0 0
  %3568 = vmatprep.subr.bf16.mxu0 0
  %3569 = vmatpush1.bf16.msra.mxu0 0
  %3570 = vmatprep.mubr.bf16.mxu0 0
  %3571 = vmatmul.mubr.bf16.gmra.mrb[0].mxu0 %v1382
  %v3572 = vpop.f32.mrb[0].mxu0
  %v3573 = vadd.f32 %v3284, %v3572
  %v3574 = vpop.f32.mrb[0].mxu0
  %v3575 = vpop.f32.mrb[0].mxu0
  %v3576 = vadd.f32 %v3287, %v3575
  %v3577 = vpop.f32.mrb[0].mxu0
  %3578 = vmatprep.mubr.bf16.mxu0 0
  %3579 = vmatmul.mubr.bf16.gmra.mrb[0].mxu0 %v1391
  %v3580 = vpop.f32.mrb[0].mxu0
  %v3581 = vadd.f32 %v3292, %v3580
  %v3582 = vpop.f32.mrb[0].mxu0
  %v3583 = vpop.f32.mrb[0].mxu0
  %v3584 = vadd.f32 %v3295, %v3583
  %v3585 = vpop.f32.mrb[0].mxu0
  %3586 = vmatprep.mubr.bf16.mxu0 0
  %3587 = vmatmul.mubr.bf16.gmra.mrb[0].mxu0 %v1400
  %v3588 = vpop.f32.mrb[0].mxu0
  %v3589 = vadd.f32 %v3300, %v3588
  %v3590 = vpop.f32.mrb[0].mxu0
  %v3591 = vpop.f32.mrb[0].mxu0
  %v3592 = vadd.f32 %v3303, %v3591
  %v3593 = vpop.f32.mrb[0].mxu0
  %3594 = vmatprep.mubr.bf16.mxu0 0
  %3595 = vmatmul.mubr.bf16.gmra.mrb[0].mxu0 %v1409
  %v3596 = vpop.f32.mrb[0].mxu0
  %v3597 = vadd.f32 %v3308, %v3596
  %v3598 = vpop.f32.mrb[0].mxu0
  %v3599 = vpop.f32.mrb[0].mxu0
  %v3600 = vadd.f32 %v3311, %v3599
  %v3601 = vpop.f32.mrb[0].mxu0
  %3602 = vmatprep.mubr.bf16.mxu0 0
  %3603 = vmatmul.mubr.bf16.gmra.mrb[0].mxu0 %v1418
  %v3604 = vpop.f32.mrb[0].mxu0
  %v3605 = vadd.f32 %v3316, %v3604
  %v3606 = vpop.f32.mrb[0].mxu0
  %v3607 = vpop.f32.mrb[0].mxu0
  %v3608 = vadd.f32 %v3319, %v3607
  %v3609 = vpop.f32.mrb[0].mxu0
  %3610 = vmatprep.mubr.bf16.mxu0 0
  %3611 = vmatmul.mubr.bf16.gmra.mrb[0].mxu0 %v1427
  %v3612 = vpop.f32.mrb[0].mxu0
  %v3613 = vadd.f32 %v3324, %v3612
  %v3614 = vpop.f32.mrb[0].mxu0
  %v3615 = vpop.f32.mrb[0].mxu0
  %v3616 = vadd.f32 %v3327, %v3615
  %v3617 = vpop.f32.mrb[0].mxu0
  %3618 = vmatprep.mubr.bf16.mxu0 0
  %3619 = vmatmul.mubr.bf16.gmra.mrb[0].mxu0 %v1436
  %v3620 = vpop.f32.mrb[0].mxu0
  %v3621 = vadd.f32 %v3332, %v3620
  %v3622 = vpop.f32.mrb[0].mxu0
  %v3623 = vpop.f32.mrb[0].mxu0
  %v3624 = vadd.f32 %v3335, %v3623
  %v3625 = vpop.f32.mrb[0].mxu0
  %3626 = vmatprep.mubr.bf16.mxu0 0
  %3627 = vmatmul.mubr.bf16.gmra.mrb[0].mxu0 %v1445
  %v3628 = vpop.f32.mrb[0].mxu0
  %v3629 = vadd.f32 %v3340, %v3628
  %v3630 = vpop.f32.mrb[0].mxu0
  %v3631 = vpop.f32.mrb[0].mxu0
  %v3632 = vadd.f32 %v3343, %v3631
  %v3633 = vpop.f32.mrb[0].mxu0
  %3634 = vmatprep.mubr.bf16.mxu0 0
  %3635 = vmatmul.mubr.bf16.gmra.mrb[0].mxu0 %v1454
  %v3636 = vpop.f32.mrb[0].mxu0
  %v3637 = vadd.f32 %v3348, %v3636
  %v3638 = vpop.f32.mrb[0].mxu0
  %v3639 = vpop.f32.mrb[0].mxu0
  %v3640 = vadd.f32 %v3351, %v3639
  %v3641 = vpop.f32.mrb[0].mxu0
  %3642 = vmatprep.mubr.bf16.mxu0 0
  %3643 = vmatmul.mubr.bf16.gmra.mrb[0].mxu0 %v1463
  %v3644 = vpop.f32.mrb[0].mxu0
  %v3645 = vadd.f32 %v3356, %v3644
  %v3646 = vpop.f32.mrb[0].mxu0
  %v3647 = vpop.f32.mrb[0].mxu0
  %v3648 = vadd.f32 %v3359, %v3647
  %v3649 = vpop.f32.mrb[0].mxu0
  %3650 = vmatprep.mubr.bf16.mxu0 0
  %3651 = vmatmul.mubr.bf16.gmra.mrb[0].mxu0 %v1472
  %v3652 = vpop.f32.mrb[0].mxu0
  %v3653 = vadd.f32 %v3364, %v3652
  %v3654 = vpop.f32.mrb[0].mxu0
  %v3655 = vpop.f32.mrb[0].mxu0
  %v3656 = vadd.f32 %v3367, %v3655
  %v3657 = vpop.f32.mrb[0].mxu0
  %3658 = vmatprep.mubr.bf16.mxu0 0
  %3659 = vmatmul.mubr.bf16.gmra.mrb[0].mxu0 %v1481
  %v3660 = vpop.f32.mrb[0].mxu0
  %v3661 = vadd.f32 %v3372, %v3660
  %v3662 = vpop.f32.mrb[0].mxu0
  %v3663 = vpop.f32.mrb[0].mxu0
  %v3664 = vadd.f32 %v3375, %v3663
  %v3665 = vpop.f32.mrb[0].mxu0
  %3666 = vmatprep.mubr.bf16.mxu0 0
  %3667 = vmatmul.mubr.bf16.gmra.mrb[0].mxu0 %v1490
  %v3668 = vpop.f32.mrb[0].mxu0
  %v3669 = vadd.f32 %v3380, %v3668
  %v3670 = vpop.f32.mrb[0].mxu0
  %v3671 = vpop.f32.mrb[0].mxu0
  %v3672 = vadd.f32 %v3383, %v3671
  %v3673 = vpop.f32.mrb[0].mxu0
  %3674 = vmatprep.mubr.bf16.mxu0 0
  %3675 = vmatmul.mubr.bf16.gmra.mrb[0].mxu0 %v1499
  %v3676 = vpop.f32.mrb[0].mxu0
  %v3677 = vadd.f32 %v3388, %v3676
  %v3678 = vpop.f32.mrb[0].mxu0
  %v3679 = vpop.f32.mrb[0].mxu0
  %v3680 = vadd.f32 %v3391, %v3679
  %v3681 = vpop.f32.mrb[0].mxu0
  %3682 = vmatprep.mubr.bf16.mxu0 0
  %3683 = vmatmul.mubr.bf16.gmra.mrb[0].mxu0 %v1508
  %v3684 = vpop.f32.mrb[0].mxu0
  %v3685 = vadd.f32 %v3396, %v3684
  %v3686 = vpop.f32.mrb[0].mxu0
  %v3687 = vpop.f32.mrb[0].mxu0
  %v3688 = vadd.f32 %v3399, %v3687
  %v3689 = vpop.f32.mrb[0].mxu0
  %3690 = vmatprep.mubr.bf16.mxu0 0
  %3691 = vmatmul.mubr.bf16.gmra.mrb[0].mxu0 %v1517
  %v3692 = vpop.f32.mrb[0].mxu0
  %v3693 = vadd.f32 %v3404, %v3692
  %v3694 = vpop.f32.mrb[0].mxu0
  %v3695 = vpop.f32.mrb[0].mxu0
  %v3696 = vadd.f32 %v3407, %v3695
  %v3697 = vpop.f32.mrb[0].mxu0
  %3698 = vmatprep.mubr.bf16.mxu0 0
  %3699 = vmatmul.mubr.bf16.gmra.mrb[0].mxu0 %v1526
  %v3700 = vpop.f32.mrb[0].mxu0
  %v3701 = vadd.f32 %v3412, %v3700
  %v3702 = vpop.f32.mrb[0].mxu0
  %v3703 = vpop.f32.mrb[0].mxu0
  %v3704 = vadd.f32 %v3415, %v3703
  %v3705 = vpop.f32.mrb[0].mxu0
  %3706 = vmatprep.mubr.bf16.mxu0 0
  %3707 = vmatmul.mubr.bf16.gmra.mrb[0].mxu0 %v1535
  %v3708 = vpop.f32.mrb[0].mxu0
  %v3709 = vadd.f32 %v3420, %v3708
  %v3710 = vpop.f32.mrb[0].mxu0
  %v3711 = vpop.f32.mrb[0].mxu0
  %v3712 = vadd.f32 %v3423, %v3711
  %v3713 = vpop.f32.mrb[0].mxu0
  %3714 = vmatprep.mubr.bf16.mxu0 0
  %3715 = vmatmul.mubr.bf16.gmra.mrb[0].mxu0 %v1544
  %v3716 = vpop.f32.mrb[0].mxu0
  %v3717 = vadd.f32 %v3428, %v3716
  %v3718 = vpop.f32.mrb[0].mxu0
  %v3719 = vpop.f32.mrb[0].mxu0
  %v3720 = vadd.f32 %v3431, %v3719
  %v3721 = vpop.f32.mrb[0].mxu0
  %3722 = vmatprep.mubr.bf16.mxu0 0
  %3723 = vmatmul.mubr.bf16.gmra.mrb[0].mxu0 %v1553
  %v3724 = vpop.f32.mrb[0].mxu0
  %v3725 = vadd.f32 %v3436, %v3724
  %v3726 = vpop.f32.mrb[0].mxu0
  %v3727 = vpop.f32.mrb[0].mxu0
  %v3728 = vadd.f32 %v3439, %v3727
  %v3729 = vpop.f32.mrb[0].mxu0
  %3730 = vmatprep.mubr.bf16.mxu0 0
  %3731 = vmatmul.mubr.bf16.gmra.mrb[0].mxu0 %v1562
  %v3732 = vpop.f32.mrb[0].mxu0
  %v3733 = vadd.f32 %v3444, %v3732
  %v3734 = vpop.f32.mrb[0].mxu0
  %v3735 = vpop.f32.mrb[0].mxu0
  %v3736 = vadd.f32 %v3447, %v3735
  %v3737 = vpop.f32.mrb[0].mxu0
  %3738 = vmatprep.mubr.bf16.mxu0 0
  %3739 = vmatmul.mubr.bf16.gmra.mrb[0].mxu0 %v1571
  %v3740 = vpop.f32.mrb[0].mxu0
  %v3741 = vadd.f32 %v3452, %v3740
  %v3742 = vpop.f32.mrb[0].mxu0
  %v3743 = vpop.f32.mrb[0].mxu0
  %v3744 = vadd.f32 %v3455, %v3743
  %v3745 = vpop.f32.mrb[0].mxu0
  %3746 = vmatprep.mubr.bf16.mxu0 0
  %3747 = vmatmul.mubr.bf16.gmra.mrb[0].mxu0 %v1580
  %v3748 = vpop.f32.mrb[0].mxu0
  %v3749 = vadd.f32 %v3460, %v3748
  %v3750 = vpop.f32.mrb[0].mxu0
  %v3751 = vpop.f32.mrb[0].mxu0
  %v3752 = vadd.f32 %v3463, %v3751
  %v3753 = vpop.f32.mrb[0].mxu0
  %3754 = vmatprep.mubr.bf16.mxu0 0
  %3755 = vmatmul.mubr.bf16.gmra.mrb[0].mxu0 %v1589
  %v3756 = vpop.f32.mrb[0].mxu0
  %v3757 = vadd.f32 %v3468, %v3756
  %v3758 = vpop.f32.mrb[0].mxu0
  %v3759 = vpop.f32.mrb[0].mxu0
  %v3760 = vadd.f32 %v3471, %v3759
  %v3761 = vpop.f32.mrb[0].mxu0
  %3762 = vmatprep.mubr.bf16.mxu0 0
  %3763 = vmatmul.mubr.bf16.gmra.mrb[0].mxu0 %v1598
  %v3764 = vpop.f32.mrb[0].mxu0
  %v3765 = vadd.f32 %v3476, %v3764
  %v3766 = vpop.f32.mrb[0].mxu0
  %v3767 = vpop.f32.mrb[0].mxu0
  %v3768 = vadd.f32 %v3479, %v3767
  %v3769 = vpop.f32.mrb[0].mxu0
  %3770 = vmatprep.mubr.bf16.mxu0 0
  %3771 = vmatmul.mubr.bf16.gmra.mrb[0].mxu0 %v1607
  %v3772 = vpop.f32.mrb[0].mxu0
  %v3773 = vadd.f32 %v3484, %v3772
  %v3774 = vpop.f32.mrb[0].mxu0
  %v3775 = vpop.f32.mrb[0].mxu0
  %v3776 = vadd.f32 %v3487, %v3775
  %v3777 = vpop.f32.mrb[0].mxu0
  %3778 = vmatprep.mubr.bf16.mxu0 0
  %3779 = vmatmul.mubr.bf16.gmra.mrb[0].mxu0 %v1616
  %v3780 = vpop.f32.mrb[0].mxu0
  %v3781 = vadd.f32 %v3492, %v3780
  %v3782 = vpop.f32.mrb[0].mxu0
  %v3783 = vpop.f32.mrb[0].mxu0
  %v3784 = vadd.f32 %v3495, %v3783
  %v3785 = vpop.f32.mrb[0].mxu0
  %3786 = vmatprep.mubr.bf16.mxu0 0
  %3787 = vmatmul.mubr.bf16.gmra.mrb[0].mxu0 %v1625
  %v3788 = vpop.f32.mrb[0].mxu0
  %v3789 = vadd.f32 %v3500, %v3788
  %v3790 = vpop.f32.mrb[0].mxu0
  %v3791 = vpop.f32.mrb[0].mxu0
  %v3792 = vadd.f32 %v3503, %v3791
  %v3793 = vpop.f32.mrb[0].mxu0
  %3794 = vmatprep.mubr.bf16.mxu0 0
  %3795 = vmatmul.mubr.bf16.gmra.mrb[0].mxu0 %v1634
  %v3796 = vpop.f32.mrb[0].mxu0
  %v3797 = vadd.f32 %v3508, %v3796
  %v3798 = vpop.f32.mrb[0].mxu0
  %v3799 = vpop.f32.mrb[0].mxu0
  %v3800 = vadd.f32 %v3511, %v3799
  %v3801 = vpop.f32.mrb[0].mxu0
  %3802 = vmatprep.mubr.bf16.mxu0 0
  %3803 = vmatmul.mubr.bf16.gmra.mrb[0].mxu0 %v1643
  %v3804 = vpop.f32.mrb[0].mxu0
  %v3805 = vadd.f32 %v3516, %v3804
  %v3806 = vpop.f32.mrb[0].mxu0
  %v3807 = vpop.f32.mrb[0].mxu0
  %v3808 = vadd.f32 %v3519, %v3807
  %v3809 = vpop.f32.mrb[0].mxu0
  %3810 = vmatprep.mubr.bf16.mxu0 0
  %3811 = vmatmul.mubr.bf16.gmra.mrb[0].mxu0 %v1652
  %v3812 = vpop.f32.mrb[0].mxu0
  %v3813 = vadd.f32 %v3524, %v3812
  %v3814 = vpop.f32.mrb[0].mxu0
  %v3815 = vpop.f32.mrb[0].mxu0
  %v3816 = vadd.f32 %v3527, %v3815
  %v3817 = vpop.f32.mrb[0].mxu0
  %3818 = vmatprep.mubr.bf16.mxu0 0
  %3819 = vmatmul.mubr.bf16.gmra.mrb[0].mxu0 %v1661
  %v3820 = vpop.f32.mrb[0].mxu0
  %v3821 = vadd.f32 %v3532, %v3820
  %v3822 = vpop.f32.mrb[0].mxu0
  %v3823 = vpop.f32.mrb[0].mxu0
  %v3824 = vadd.f32 %v3535, %v3823
  %v3825 = vpop.f32.mrb[0].mxu0
  %3826 = vdwg.mxu0
  %v3827 = vpack.c.bf16 %v3576, %v3573
  %v3828 = vpack.c.bf16 %v3584, %v3581
  %v3829 = vpack.c.bf16 %v3592, %v3589
  %v3830 = vpack.c.bf16 %v3600, %v3597
  %v3831 = vpack.c.bf16 %v3608, %v3605
  %v3832 = vpack.c.bf16 %v3616, %v3613
  %v3833 = vpack.c.bf16 %v3624, %v3621
  %v3834 = vpack.c.bf16 %v3632, %v3629
  %v3835 = vpack.c.bf16 %v3640, %v3637
  %v3836 = vpack.c.bf16 %v3648, %v3645
  %v3837 = vpack.c.bf16 %v3656, %v3653
  %v3838 = vpack.c.bf16 %v3664, %v3661
  %v3839 = vpack.c.bf16 %v3672, %v3669
  %v3840 = vpack.c.bf16 %v3680, %v3677
  %v3841 = vpack.c.bf16 %v3688, %v3685
  %v3842 = vpack.c.bf16 %v3696, %v3693
  %v3843 = vpack.c.bf16 %v3704, %v3701
  %v3844 = vpack.c.bf16 %v3712, %v3709
  %v3845 = vpack.c.bf16 %v3720, %v3717
  %v3846 = vpack.c.bf16 %v3728, %v3725
  %v3847 = vpack.c.bf16 %v3736, %v3733
  %v3848 = vpack.c.bf16 %v3744, %v3741
  %v3849 = vpack.c.bf16 %v3752, %v3749
  %v3850 = vpack.c.bf16 %v3760, %v3757
  %v3851 = vpack.c.bf16 %v3768, %v3765
  %v3852 = vpack.c.bf16 %v3776, %v3773
  %v3853 = vpack.c.bf16 %v3784, %v3781
  %v3854 = vpack.c.bf16 %v3792, %v3789
  %v3855 = vpack.c.bf16 %v3800, %v3797
  %v3856 = vpack.c.bf16 %v3808, %v3805
  %v3857 = vpack.c.bf16 %v3816, %v3813
  %v3858 = vpack.c.bf16 %v3824, %v3821
  %v3891 = vunpack.c.l.b16 %v3827
  %v3892 = vunpack.c.h.b16 %v3827
  %v3893 = vunpack.c.l.b16 %v3828
  %v3894 = vunpack.c.h.b16 %v3828
  %v3895 = vunpack.c.l.b16 %v3829
  %v3896 = vunpack.c.h.b16 %v3829
  %v3897 = vunpack.c.l.b16 %v3830
  %v3898 = vunpack.c.h.b16 %v3830
  %v3899 = vunpack.c.l.b16 %v3831
  %v3900 = vunpack.c.h.b16 %v3831
  %v3901 = vunpack.c.l.b16 %v3832
  %v3902 = vunpack.c.h.b16 %v3832
  %v3903 = vunpack.c.l.b16 %v3833
  %v3904 = vunpack.c.h.b16 %v3833
  %v3905 = vunpack.c.l.b16 %v3834
  %v3906 = vunpack.c.h.b16 %v3834
  %v3907 = vunpack.c.l.b16 %v3835
  %v3908 = vunpack.c.h.b16 %v3835
  %v3909 = vunpack.c.l.b16 %v3836
  %v3910 = vunpack.c.h.b16 %v3836
  %v3911 = vunpack.c.l.b16 %v3837
  %v3912 = vunpack.c.h.b16 %v3837
  %v3913 = vunpack.c.l.b16 %v3838
  %v3914 = vunpack.c.h.b16 %v3838
  %v3915 = vunpack.c.l.b16 %v3839
  %v3916 = vunpack.c.h.b16 %v3839
  %v3917 = vunpack.c.l.b16 %v3840
  %v3918 = vunpack.c.h.b16 %v3840
  %v3919 = vunpack.c.l.b16 %v3841
  %v3920 = vunpack.c.h.b16 %v3841
  %v3921 = vunpack.c.l.b16 %v3842
  %v3922 = vunpack.c.h.b16 %v3842
  %v3923 = vunpack.c.l.b16 %v3843
  %v3924 = vunpack.c.h.b16 %v3843
  %v3925 = vunpack.c.l.b16 %v3844
  %v3926 = vunpack.c.h.b16 %v3844
  %v3927 = vunpack.c.l.b16 %v3845
  %v3928 = vunpack.c.h.b16 %v3845
  %v3929 = vunpack.c.l.b16 %v3846
  %v3930 = vunpack.c.h.b16 %v3846
  %v3931 = vunpack.c.l.b16 %v3847
  %v3932 = vunpack.c.h.b16 %v3847
  %v3933 = vunpack.c.l.b16 %v3848
  %v3934 = vunpack.c.h.b16 %v3848
  %v3935 = vunpack.c.l.b16 %v3849
  %v3936 = vunpack.c.h.b16 %v3849
  %v3937 = vunpack.c.l.b16 %v3850
  %v3938 = vunpack.c.h.b16 %v3850
  %v3939 = vunpack.c.l.b16 %v3851
  %v3940 = vunpack.c.h.b16 %v3851
  %v3941 = vunpack.c.l.b16 %v3852
  %v3942 = vunpack.c.h.b16 %v3852
  %v3943 = vunpack.c.l.b16 %v3853
  %v3944 = vunpack.c.h.b16 %v3853
  %v3945 = vunpack.c.l.b16 %v3854
  %v3946 = vunpack.c.h.b16 %v3854
  %v3947 = vunpack.c.l.b16 %v3855
  %v3948 = vunpack.c.h.b16 %v3855
  %v3949 = vunpack.c.l.b16 %v3856
  %v3950 = vunpack.c.h.b16 %v3856
  %v3951 = vunpack.c.l.b16 %v3857
  %v3952 = vunpack.c.h.b16 %v3857
  %v3953 = vunpack.c.l.b16 %v3858
  %v3954 = vunpack.c.h.b16 %v3858
  %v3955 = vpack.c.b16 %v3891, %v3891
  %v3956 = vpack.c.b16 %v3892, %v3892
  %v3957 = vpack.c.b16 %v3893, %v3893
  %v3958 = vpack.c.b16 %v3894, %v3894
  %v3959 = vpack.c.b16 %v3895, %v3895
  %v3960 = vpack.c.b16 %v3896, %v3896
  %v3961 = vpack.c.b16 %v3897, %v3897
  %v3962 = vpack.c.b16 %v3898, %v3898
  %v3963 = vpack.c.b16 %v3899, %v3899
  %v3964 = vpack.c.b16 %v3900, %v3900
  %v3965 = vpack.c.b16 %v3901, %v3901
  %v3966 = vpack.c.b16 %v3902, %v3902
  %v3967 = vpack.c.b16 %v3903, %v3903
  %v3968 = vpack.c.b16 %v3904, %v3904
  %v3969 = vpack.c.b16 %v3905, %v3905
  %v3970 = vpack.c.b16 %v3906, %v3906
  %v3971 = vpack.c.b16 %v3907, %v3907
  %v3972 = vpack.c.b16 %v3908, %v3908
  %v3973 = vpack.c.b16 %v3909, %v3909
  %v3974 = vpack.c.b16 %v3910, %v3910
  %v3975 = vpack.c.b16 %v3911, %v3911
  %v3976 = vpack.c.b16 %v3912, %v3912
  %v3977 = vpack.c.b16 %v3913, %v3913
  %v3978 = vpack.c.b16 %v3914, %v3914
  %v3979 = vpack.c.b16 %v3915, %v3915
  %v3980 = vpack.c.b16 %v3916, %v3916
  %v3981 = vpack.c.b16 %v3917, %v3917
  %v3982 = vpack.c.b16 %v3918, %v3918
  %v3983 = vpack.c.b16 %v3919, %v3919
  %v3984 = vpack.c.b16 %v3920, %v3920
  %v3985 = vpack.c.b16 %v3921, %v3921
  %v3986 = vpack.c.b16 %v3922, %v3922
  %v3987 = vpack.c.b16 %v3923, %v3923
  %v3988 = vpack.c.b16 %v3924, %v3924
  %v3989 = vpack.c.b16 %v3925, %v3925
  %v3990 = vpack.c.b16 %v3926, %v3926
  %v3991 = vpack.c.b16 %v3927, %v3927
  %v3992 = vpack.c.b16 %v3928, %v3928
  %v3993 = vpack.c.b16 %v3929, %v3929
  %v3994 = vpack.c.b16 %v3930, %v3930
  %v3995 = vpack.c.b16 %v3931, %v3931
  %v3996 = vpack.c.b16 %v3932, %v3932
  %v3997 = vpack.c.b16 %v3933, %v3933
  %v3998 = vpack.c.b16 %v3934, %v3934
  %v3999 = vpack.c.b16 %v3935, %v3935
  %v4000 = vpack.c.b16 %v3936, %v3936
  %v4001 = vpack.c.b16 %v3937, %v3937
  %v4002 = vpack.c.b16 %v3938, %v3938
  %v4003 = vpack.c.b16 %v3939, %v3939
  %v4004 = vpack.c.b16 %v3940, %v3940
  %v4005 = vpack.c.b16 %v3941, %v3941
  %v4006 = vpack.c.b16 %v3942, %v3942
  %v4007 = vpack.c.b16 %v3943, %v3943
  %v4008 = vpack.c.b16 %v3944, %v3944
  %v4009 = vpack.c.b16 %v3945, %v3945
  %v4010 = vpack.c.b16 %v3946, %v3946
  %v4011 = vpack.c.b16 %v3947, %v3947
  %v4012 = vpack.c.b16 %v3948, %v3948
  %v4013 = vpack.c.b16 %v3949, %v3949
  %v4014 = vpack.c.b16 %v3950, %v3950
  %v4015 = vpack.c.b16 %v3951, %v3951
  %v4016 = vpack.c.b16 %v3952, %v3952
  %v4017 = vpack.c.b16 %v3953, %v3953
  %v4018 = vpack.c.b16 %v3954, %v3954
  %4083 = vst [vmem:[%s2] sm:$0xf] %v3955
  %4084 = vst [vmem:[%s2 + $0x4] sm:$0xf] %v3956
  %4085 = vst [vmem:[%s2 + $0x8] sm:$0xf] %v3957
  %4086 = vst [vmem:[%s2 + $0xc] sm:$0xf] %v3958
  %4087 = vst [vmem:[%s2 + $0x10] sm:$0xf] %v3959
  %4088 = vst [vmem:[%s2 + $0x14] sm:$0xf] %v3960
  %4089 = vst [vmem:[%s2 + $0x18] sm:$0xf] %v3961
  %4090 = vst [vmem:[%s2 + $0x1c] sm:$0xf] %v3962
  %4091 = vst [vmem:[%s2 + $0x20] sm:$0xf] %v3963
  %4092 = vst [vmem:[%s2 + $0x24] sm:$0xf] %v3964
  %4093 = vst [vmem:[%s2 + $0x28] sm:$0xf] %v3965
  %4094 = vst [vmem:[%s2 + $0x2c] sm:$0xf] %v3966
  %4095 = vst [vmem:[%s2 + $0x30] sm:$0xf] %v3967
  %4096 = vst [vmem:[%s2 + $0x34] sm:$0xf] %v3968
  %4097 = vst [vmem:[%s2 + $0x38] sm:$0xf] %v3969
  %4098 = vst [vmem:[%s2 + $0x3c] sm:$0xf] %v3970
  %4099 = vst [vmem:[%s2 + $0x40] sm:$0xf] %v3971
  %4100 = vst [vmem:[%s2 + $0x44] sm:$0xf] %v3972
  %4101 = vst [vmem:[%s2 + $0x48] sm:$0xf] %v3973
  %4102 = vst [vmem:[%s2 + $0x4c] sm:$0xf] %v3974
  %4103 = vst [vmem:[%s2 + $0x50] sm:$0xf] %v3975
  %4104 = vst [vmem:[%s2 + $0x54] sm:$0xf] %v3976
  %4105 = vst [vmem:[%s2 + $0x58] sm:$0xf] %v3977
  %4106 = vst [vmem:[%s2 + $0x5c] sm:$0xf] %v3978
  %4107 = vst [vmem:[%s2 + $0x60] sm:$0xf] %v3979
  %4108 = vst [vmem:[%s2 + $0x64] sm:$0xf] %v3980
  %4109 = vst [vmem:[%s2 + $0x68] sm:$0xf] %v3981
  %4110 = vst [vmem:[%s2 + $0x6c] sm:$0xf] %v3982
  %4111 = vst [vmem:[%s2 + $0x70] sm:$0xf] %v3983
  %4112 = vst [vmem:[%s2 + $0x74] sm:$0xf] %v3984
  %4113 = vst [vmem:[%s2 + $0x78] sm:$0xf] %v3985
  %4114 = vst [vmem:[%s2 + $0x7c] sm:$0xf] %v3986
  %4115 = vst [vmem:[%s2 + $0x80] sm:$0xf] %v3987
  %4116 = vst [vmem:[%s2 + $0x84] sm:$0xf] %v3988
  %4117 = vst [vmem:[%s2 + $0x88] sm:$0xf] %v3989
  %4118 = vst [vmem:[%s2 + $0x8c] sm:$0xf] %v3990
  %4119 = vst [vmem:[%s2 + $0x90] sm:$0xf] %v3991
  %4120 = vst [vmem:[%s2 + $0x94] sm:$0xf] %v3992
  %4121 = vst [vmem:[%s2 + $0x98] sm:$0xf] %v3993
  %4122 = vst [vmem:[%s2 + $0x9c] sm:$0xf] %v3994
  %4123 = vst [vmem:[%s2 + $0xa0] sm:$0xf] %v3995
  %4124 = vst [vmem:[%s2 + $0xa4] sm:$0xf] %v3996
  %4125 = vst [vmem:[%s2 + $0xa8] sm:$0xf] %v3997
  %4126 = vst [vmem:[%s2 + $0xac] sm:$0xf] %v3998
  %4127 = vst [vmem:[%s2 + $0xb0] sm:$0xf] %v3999
  %4128 = vst [vmem:[%s2 + $0xb4] sm:$0xf] %v4000
  %4129 = vst [vmem:[%s2 + $0xb8] sm:$0xf] %v4001
  %4130 = vst [vmem:[%s2 + $0xbc] sm:$0xf] %v4002
  %4131 = vst [vmem:[%s2 + $0xc0] sm:$0xf] %v4003
  %4132 = vst [vmem:[%s2 + $0xc4] sm:$0xf] %v4004
  %4133 = vst [vmem:[%s2 + $0xc8] sm:$0xf] %v4005
  %4134 = vst [vmem:[%s2 + $0xcc] sm:$0xf] %v4006
  %4135 = vst [vmem:[%s2 + $0xd0] sm:$0xf] %v4007
  %4136 = vst [vmem:[%s2 + $0xd4] sm:$0xf] %v4008
  %4137 = vst [vmem:[%s2 + $0xd8] sm:$0xf] %v4009
  %4138 = vst [vmem:[%s2 + $0xdc] sm:$0xf] %v4010
  %4139 = vst [vmem:[%s2 + $0xe0] sm:$0xf] %v4011
  %4140 = vst [vmem:[%s2 + $0xe4] sm:$0xf] %v4012
  %4141 = vst [vmem:[%s2 + $0xe8] sm:$0xf] %v4013
  %4142 = vst [vmem:[%s2 + $0xec] sm:$0xf] %v4014
  %4143 = vst [vmem:[%s2 + $0xf0] sm:$0xf] %v4015
  %4144 = vst [vmem:[%s2 + $0xf4] sm:$0xf] %v4016
  %4145 = vst [vmem:[%s2 + $0xf8] sm:$0xf] %v4017
  %4146 = vst [vmem:[%s2 + $0xfc] sm:$0xf] %v4018
  %v4147 = vadd.f32 %v3573, %v3576
  %v4148 = vadd.f32 %v4147, %v3581
  %v4149 = vadd.f32 %v4148, %v3584
  %v4150 = vadd.f32 %v4149, %v3589
  %v4151 = vadd.f32 %v4150, %v3592
  %v4152 = vadd.f32 %v4151, %v3597
  %v4153 = vadd.f32 %v4152, %v3600
  %v4154 = vadd.f32 %v4153, %v3605
  %v4155 = vadd.f32 %v4154, %v3608
  %v4156 = vadd.f32 %v4155, %v3613
  %v4157 = vadd.f32 %v4156, %v3616
  %v4158 = vadd.f32 %v4157, %v3621
  %v4159 = vadd.f32 %v4158, %v3624
  %v4160 = vadd.f32 %v4159, %v3629
  %v4161 = vadd.f32 %v4160, %v3632
  %v4162 = vadd.f32 %v4161, %v3637
  %v4163 = vadd.f32 %v4162, %v3640
  %v4164 = vadd.f32 %v4163, %v3645
  %v4165 = vadd.f32 %v4164, %v3648
  %v4166 = vadd.f32 %v4165, %v3653
  %v4167 = vadd.f32 %v4166, %v3656
  %v4168 = vadd.f32 %v4167, %v3661
  %v4169 = vadd.f32 %v4168, %v3664
  %v4170 = vadd.f32 %v4169, %v3669
  %v4171 = vadd.f32 %v4170, %v3672
  %v4172 = vadd.f32 %v4171, %v3677
  %v4173 = vadd.f32 %v4172, %v3680
  %v4174 = vadd.f32 %v4173, %v3685
  %v4175 = vadd.f32 %v4174, %v3688
  %v4176 = vadd.f32 %v4175, %v3693
  %v4177 = vadd.f32 %v4176, %v3696
  %v4178 = vadd.f32 %v4177, %v3701
  %v4179 = vadd.f32 %v4178, %v3704
  %v4180 = vadd.f32 %v4179, %v3709
  %v4181 = vadd.f32 %v4180, %v3712
  %v4182 = vadd.f32 %v4181, %v3717
  %v4183 = vadd.f32 %v4182, %v3720
  %v4184 = vadd.f32 %v4183, %v3725
  %v4185 = vadd.f32 %v4184, %v3728
  %v4186 = vadd.f32 %v4185, %v3733
  %v4187 = vadd.f32 %v4186, %v3736
  %v4188 = vadd.f32 %v4187, %v3741
  %v4189 = vadd.f32 %v4188, %v3744
  %v4190 = vadd.f32 %v4189, %v3749
  %v4191 = vadd.f32 %v4190, %v3752
  %v4192 = vadd.f32 %v4191, %v3757
  %v4193 = vadd.f32 %v4192, %v3760
  %v4194 = vadd.f32 %v4193, %v3765
  %v4195 = vadd.f32 %v4194, %v3768
  %v4196 = vadd.f32 %v4195, %v3773
  %v4197 = vadd.f32 %v4196, %v3776
  %v4198 = vadd.f32 %v4197, %v3781
  %v4199 = vadd.f32 %v4198, %v3784
  %v4200 = vadd.f32 %v4199, %v3789
  %v4201 = vadd.f32 %v4200, %v3792
  %v4202 = vadd.f32 %v4201, %v3797
  %v4203 = vadd.f32 %v4202, %v3800
  %v4204 = vadd.f32 %v4203, %v3805
  %v4205 = vadd.f32 %v4204, %v3808
  %v4206 = vadd.f32 %v4205, %v3813
  %v4207 = vadd.f32 %v4206, %v3816
  %v4208 = vadd.f32 %v4207, %v3821
  %v4209 = vadd.f32 %v4208, %v3824
  %v4210 = vrot.slane %v4209, 4
  %v4211 = vadd.f32 %v4209, %v4210
  %v4212 = vrot.slane %v4211, 2
  %v4213 = vadd.f32 %v4211, %v4212
  %v4214 = vrot.slane %v4213, 1
  %v4215 = vadd.f32 %v4213, %v4214
  %4216 = vst [vmem:[%s3] sm:$0x1] %v4215
  %v4217 = vmul.f32 %v3573, %v3573
  %v4218 = vmul.f32 %v3576, %v3576
  %v4219 = vmul.f32 %v3581, %v3581
  %v4220 = vmul.f32 %v3584, %v3584
  %v4221 = vmul.f32 %v3589, %v3589
  %v4222 = vmul.f32 %v3592, %v3592
  %v4223 = vmul.f32 %v3597, %v3597
  %v4224 = vmul.f32 %v3600, %v3600
  %v4225 = vmul.f32 %v3605, %v3605
  %v4226 = vmul.f32 %v3608, %v3608
  %v4227 = vmul.f32 %v3613, %v3613
  %v4228 = vmul.f32 %v3616, %v3616
  %v4229 = vmul.f32 %v3621, %v3621
  %v4230 = vmul.f32 %v3624, %v3624
  %v4231 = vmul.f32 %v3629, %v3629
  %v4232 = vmul.f32 %v3632, %v3632
  %v4233 = vmul.f32 %v3637, %v3637
  %v4234 = vmul.f32 %v3640, %v3640
  %v4235 = vmul.f32 %v3645, %v3645
  %v4236 = vmul.f32 %v3648, %v3648
  %v4237 = vmul.f32 %v3653, %v3653
  %v4238 = vmul.f32 %v3656, %v3656
  %v4239 = vmul.f32 %v3661, %v3661
  %v4240 = vmul.f32 %v3664, %v3664
  %v4241 = vmul.f32 %v3669, %v3669
  %v4242 = vmul.f32 %v3672, %v3672
  %v4243 = vmul.f32 %v3677, %v3677
  %v4244 = vmul.f32 %v3680, %v3680
  %v4245 = vmul.f32 %v3685, %v3685
  %v4246 = vmul.f32 %v3688, %v3688
  %v4247 = vmul.f32 %v3693, %v3693
  %v4248 = vmul.f32 %v3696, %v3696
  %v4249 = vmul.f32 %v3701, %v3701
  %v4250 = vmul.f32 %v3704, %v3704
  %v4251 = vmul.f32 %v3709, %v3709
  %v4252 = vmul.f32 %v3712, %v3712
  %v4253 = vmul.f32 %v3717, %v3717
  %v4254 = vmul.f32 %v3720, %v3720
  %v4255 = vmul.f32 %v3725, %v3725
  %v4256 = vmul.f32 %v3728, %v3728
  %v4257 = vmul.f32 %v3733, %v3733
  %v4258 = vmul.f32 %v3736, %v3736
  %v4259 = vmul.f32 %v3741, %v3741
  %v4260 = vmul.f32 %v3744, %v3744
  %v4261 = vmul.f32 %v3749, %v3749
  %v4262 = vmul.f32 %v3752, %v3752
  %v4263 = vmul.f32 %v3757, %v3757
  %v4264 = vmul.f32 %v3760, %v3760
  %v4265 = vmul.f32 %v3765, %v3765
  %v4266 = vmul.f32 %v3768, %v3768
  %v4267 = vmul.f32 %v3773, %v3773
  %v4268 = vmul.f32 %v3776, %v3776
  %v4269 = vmul.f32 %v3781, %v3781
  %v4270 = vmul.f32 %v3784, %v3784
  %v4271 = vmul.f32 %v3789, %v3789
  %v4272 = vmul.f32 %v3792, %v3792
  %v4273 = vmul.f32 %v3797, %v3797
  %v4274 = vmul.f32 %v3800, %v3800
  %v4275 = vmul.f32 %v3805, %v3805
  %v4276 = vmul.f32 %v3808, %v3808
  %v4277 = vmul.f32 %v3813, %v3813
  %v4278 = vmul.f32 %v3816, %v3816
  %v4279 = vmul.f32 %v3821, %v3821
  %v4280 = vmul.f32 %v3824, %v3824
  %v4281 = vadd.f32 %v4217, %v4218
  %v4282 = vadd.f32 %v4281, %v4219
  %v4283 = vadd.f32 %v4282, %v4220
  %v4284 = vadd.f32 %v4283, %v4221
  %v4285 = vadd.f32 %v4284, %v4222
  %v4286 = vadd.f32 %v4285, %v4223
  %v4287 = vadd.f32 %v4286, %v4224
  %v4288 = vadd.f32 %v4287, %v4225
  %v4289 = vadd.f32 %v4288, %v4226
  %v4290 = vadd.f32 %v4289, %v4227
  %v4291 = vadd.f32 %v4290, %v4228
  %v4292 = vadd.f32 %v4291, %v4229
  %v4293 = vadd.f32 %v4292, %v4230
  %v4294 = vadd.f32 %v4293, %v4231
  %v4295 = vadd.f32 %v4294, %v4232
  %v4296 = vadd.f32 %v4295, %v4233
  %v4297 = vadd.f32 %v4296, %v4234
  %v4298 = vadd.f32 %v4297, %v4235
  %v4299 = vadd.f32 %v4298, %v4236
  %v4300 = vadd.f32 %v4299, %v4237
  %v4301 = vadd.f32 %v4300, %v4238
  %v4302 = vadd.f32 %v4301, %v4239
  %v4303 = vadd.f32 %v4302, %v4240
  %v4304 = vadd.f32 %v4303, %v4241
  %v4305 = vadd.f32 %v4304, %v4242
  %v4306 = vadd.f32 %v4305, %v4243
  %v4307 = vadd.f32 %v4306, %v4244
  %v4308 = vadd.f32 %v4307, %v4245
  %v4309 = vadd.f32 %v4308, %v4246
  %v4310 = vadd.f32 %v4309, %v4247
  %v4311 = vadd.f32 %v4310, %v4248
  %v4312 = vadd.f32 %v4311, %v4249
  %v4313 = vadd.f32 %v4312, %v4250
  %v4314 = vadd.f32 %v4313, %v4251
  %v4315 = vadd.f32 %v4314, %v4252
  %v4316 = vadd.f32 %v4315, %v4253
  %v4317 = vadd.f32 %v4316, %v4254
  %v4318 = vadd.f32 %v4317, %v4255
  %v4319 = vadd.f32 %v4318, %v4256
  %v4320 = vadd.f32 %v4319, %v4257
  %v4321 = vadd.f32 %v4320, %v4258
  %v4322 = vadd.f32 %v4321, %v4259
  %v4323 = vadd.f32 %v4322, %v4260
  %v4324 = vadd.f32 %v4323, %v4261
  %v4325 = vadd.f32 %v4324, %v4262
  %v4326 = vadd.f32 %v4325, %v4263
  %v4327 = vadd.f32 %v4326, %v4264
  %v4328 = vadd.f32 %v4327, %v4265
  %v4329 = vadd.f32 %v4328, %v4266
  %v4330 = vadd.f32 %v4329, %v4267
  %v4331 = vadd.f32 %v4330, %v4268
  %v4332 = vadd.f32 %v4331, %v4269
  %v4333 = vadd.f32 %v4332, %v4270
  %v4334 = vadd.f32 %v4333, %v4271
  %v4335 = vadd.f32 %v4334, %v4272
  %v4336 = vadd.f32 %v4335, %v4273
  %v4337 = vadd.f32 %v4336, %v4274
  %v4338 = vadd.f32 %v4337, %v4275
  %v4339 = vadd.f32 %v4338, %v4276
  %v4340 = vadd.f32 %v4339, %v4277
  %v4341 = vadd.f32 %v4340, %v4278
  %v4342 = vadd.f32 %v4341, %v4279
  %v4343 = vadd.f32 %v4342, %v4280
  %v4344 = vrot.slane %v4343, 4
  %v4345 = vadd.f32 %v4343, %v4344
  %v4346 = vrot.slane %v4345, 2
  %v4347 = vadd.f32 %v4345, %v4346
  %v4348 = vrot.slane %v4347, 1
  %v4349 = vadd.f32 %v4347, %v4348
  %4350 = vst [vmem:[%s3 + $0x1] sm:$0x1] %v4349
  // Predicated region
  $region10: #{aspp_forward.2} parent=0 // pred_check
    _
  $region11: #{aspp_forward.2} parent=0 // pred_check_branch
    %4352 = sbr.rel (0) target = $region13
  $region12: #{aspp_forward.2} parent=0 // pred_region
    _
  $region13: #{aspp_forward.2} parent=0 // pred_fallthru
    _
  // Predicated region
  $region14: #{aspp_forward.2} parent=0 // pred_check
    _
  $region15: #{aspp_forward.2} parent=0 // pred_check_branch
    %4354 = sbr.rel (0) target = $region17
  $region16: #{aspp_forward.2} parent=0 // pred_region
    _
  $region17: #{aspp_forward.2} parent=0 // pred_fallthru
    _
  // Predicated region
  $region18: #{aspp_forward.2} parent=0 // pred_check
    _
  $region19: #{aspp_forward.2} parent=0 // pred_check_branch
    %4356 = sbr.rel (0) target = $region21
  $region20: #{aspp_forward.2} parent=0 // pred_region
    _
  $region21: #{aspp_forward.2} parent=0 // pred_fallthru
    _
  // Predicated region
  $region22: #{aspp_forward.2} parent=0 // pred_check
    _
  $region23: #{aspp_forward.2} parent=0 // pred_check_branch
    %4358 = sbr.rel (0) target = $region25
  $region24: #{aspp_forward.2} parent=0 // pred_region
    _
  $region25: #{aspp_forward.2} parent=0 // pred_fallthru
    _

</llo_original>
